<compile_context>
chip_gen: v7x
topology: tpu7x:2x2x1
jax: 0.10.0
libtpu: 0.0.40
codegen_flags: <defaults>
</compile_context>

<pallas_src>
import jax
import jax.numpy as jnp
from jax.experimental import pallas as pl
from jax.experimental.pallas import tpu as pltpu

BN_EPS = 1e-5


# ----------------------------------------------------------------------------
# In-kernel helpers
# ----------------------------------------------------------------------------
def _store_padded(buf_ref, x):
    """Write x into rows [1, 1+L) of a zero-halo scratch buffer (pad=1)."""
    buf_ref[...] = jnp.zeros_like(buf_ref)
    buf_ref[pl.ds(1, x.shape[0]), :] = x.astype(buf_ref.dtype)


def _conv3_from_pad(buf_ref, w_ref):
    """3-tap stride-1 conv: padded (L+2, Cin) scratch x packed (3*Cin, Cout).

    Returns an f32 (L, Cout) accumulator (bf16 x bf16 MXU dots, f32 accum).
    """
    lin = buf_ref.shape[0] - 2
    cin = buf_ref.shape[1]
    acc = jnp.dot(buf_ref[pl.ds(0, lin), :], w_ref[pl.ds(0, cin), :],
                  preferred_element_type=jnp.float32)
    for j in (1, 2):
        acc = acc + jnp.dot(buf_ref[pl.ds(j, lin), :],
                            w_ref[pl.ds(j * cin, cin), :],
                            preferred_element_type=jnp.float32)
    return acc


def _even_rows(y):
    """Exact even-row decimation y[0::2] via a 0/1 selection matmul.

    Avoids strided slices; the selection matrix has exactly one 1.0 per row so
    the f32 matmul is exact.  Shapes here are tiny (<= 32x64).
    """
    lin = y.shape[0]
    lout = lin // 2
    col = jax.lax.broadcasted_iota(jnp.int32, (lout, lin), 1)
    row2 = jax.lax.broadcasted_iota(jnp.int32, (lout, lin), 0) * 2
    sel = (col == row2).astype(jnp.float32)
    return jnp.dot(sel, y.astype(jnp.float32), preferred_element_type=jnp.float32)


# ----------------------------------------------------------------------------
# Fused forward kernel (one sample per grid step)
# ----------------------------------------------------------------------------
def _resnet1d_fused_kernel(
    x_ref, sw_ref, sb_ref,
    w11_ref, b11_ref, w12_ref, b12_ref,
    w21_ref, b21_ref, wd2_ref, bd2_ref, w22_ref, b22_ref,
    w31_ref, b31_ref, wd3_ref, bd3_ref, w32_ref, b32_ref,
    w41_ref, b41_ref, wd4_ref, bd4_ref, w42_ref, b42_ref,
    wfc_ref, bfc_ref,
    o_ref,
    sx_ref, smp_ref, p16_ref, p8_ref, p4_ref, p2_ref,
):
    l_in = x_ref.shape[0]

    # ---- stem: Conv1d(1 -> 32, k=7, s=2, p=3) + folded BN + ReLU -----------
    # Cin == 1 -> the 7 taps are VPU broadcast-FMAs; compute the full stride-1
    # output then keep even rows (exact stride-2).
    sx_ref[...] = jnp.zeros_like(sx_ref)
    sx_ref[pl.ds(3, l_in), :] = x_ref[...]
    c_stem = sw_ref.shape[1]
    acc = jnp.zeros((l_in, c_stem), jnp.float32)
    for j in range(7):
        acc = acc + sx_ref[pl.ds(j, l_in), :] * sw_ref[pl.ds(j, 1), :]
    y = jnp.maximum(acc + sb_ref[...], 0.0)                       # (L, 32)
    y = _even_rows(y)                                             # (L/2, 32)

    # ---- MaxPool1d(k=3, s=2, p=1); zero padding valid since y >= 0 ---------
    lm = y.shape[0]
    smp_ref[...] = jnp.zeros_like(smp_ref)
    smp_ref[pl.ds(1, lm), :] = y
    m = jnp.maximum(jnp.maximum(smp_ref[pl.ds(0, lm), :],
                                smp_ref[pl.ds(1, lm), :]),
                    smp_ref[pl.ds(2, lm), :])                     # (L/2, 32)
    a = _even_rows(m)                                             # (L/4, 32)

    # ---- BasicBlock helpers (dropout between convs is identity in eval) ----
    def block_s1(x_in, pad_ref, w1, b1, w2, b2):
        _store_padded(pad_ref, x_in)
        h = jnp.maximum(_conv3_from_pad(pad_ref, w1) + b1[...], 0.0)
        _store_padded(pad_ref, h)
        out = _conv3_from_pad(pad_ref, w2) + b2[...] + x_in
        return jnp.maximum(out, 0.0)

    def block_s2(x_in, pad_in_ref, pad_out_ref, w1, b1, wd, bd, w2, b2):
        _store_padded(pad_in_ref, x_in)
        h = jnp.maximum(_even_rows(_conv3_from_pad(pad_in_ref, w1)) + b1[...],
                        0.0)
        ident = jnp.dot(_even_rows(x_in).astype(jnp.bfloat16), wd[...],
                        preferred_element_type=jnp.float32) + bd[...]
        _store_padded(pad_out_ref, h)
        out = _conv3_from_pad(pad_out_ref, w2) + b2[...] + ident
        return jnp.maximum(out, 0.0)

    # ---- layer1 .. layer4 ---------------------------------------------------
    a = block_s1(a, p16_ref, w11_ref, b11_ref, w12_ref, b12_ref)          # (L/4, 32)
    a = block_s2(a, p16_ref, p8_ref, w21_ref, b21_ref, wd2_ref, bd2_ref,
                 w22_ref, b22_ref)                                         # (L/8, 64)
    a = block_s2(a, p8_ref, p4_ref, w31_ref, b31_ref, wd3_ref, bd3_ref,
                 w32_ref, b32_ref)                                         # (L/16, 128)
    a = block_s2(a, p4_ref, p2_ref, w41_ref, b41_ref, wd4_ref, bd4_ref,
                 w42_ref, b42_ref)                                         # (L/32, 256)

    # ---- head: AdaptiveAvgPool1d(1) + flatten + Dropout(eval) + Linear -----
    pooled = jnp.mean(a, axis=0, keepdims=True)                            # (1, 256)
    logits = jnp.dot(pooled.astype(jnp.bfloat16), wfc_ref[...],
                     preferred_element_type=jnp.float32) + bfc_ref[...]
    o_ref[...] = logits                                                    # (1, n_cls)


# ----------------------------------------------------------------------------
# Wrapper (one pallas_call for the whole network)
# ----------------------------------------------------------------------------
def resnet1d_forward(x, packed):
    """x: (B, 1, L) float, PyTorch NCL layout -> (B, num_classes) f32 logits."""
    B, cin, L = x.shape
    assert cin == 1 and L % 32 == 0, (cin, L)
    # Channels-last (B, L, 1); with C == 1 the transpose is a free reshape.
    xl = x.reshape(B, L, 1).astype(jnp.float32)

    flat = [
        packed['stem_w'], packed['stem_b'],
        packed['l1_w1'], packed['l1_b1'], packed['l1_w2'], packed['l1_b2'],
        packed['l2_w1'], packed['l2_b1'], packed['l2_wd'], packed['l2_bd'],
        packed['l2_w2'], packed['l2_b2'],
        packed['l3_w1'], packed['l3_b1'], packed['l3_wd'], packed['l3_bd'],
        packed['l3_w2'], packed['l3_b2'],
        packed['l4_w1'], packed['l4_b1'], packed['l4_wd'], packed['l4_bd'],
        packed['l4_w2'], packed['l4_b2'],
        packed['fc_w'], packed['fc_b'],
    ]
    n_cls = packed['fc_w'].shape[1]

    def _const_spec(arr):
        # Full-array block; constant index map => DMA'd once, stays resident.
        return pl.BlockSpec(tuple(arr.shape), lambda b, _n=arr.ndim: (0,) * _n)

    in_specs = [pl.BlockSpec((None, L, 1), lambda b: (b, 0, 0))]
    in_specs += [_const_spec(arr) for arr in flat]

    out = pl.pallas_call(
        _resnet1d_fused_kernel,
        out_shape=jax.ShapeDtypeStruct((B, 1, n_cls), jnp.float32),
        grid=(B,),
        in_specs=in_specs,
        out_specs=pl.BlockSpec((None, 1, n_cls), lambda b: (b, 0, 0)),
        scratch_shapes=[
            pltpu.VMEM((L + 6, 1), jnp.float32),           # padded stem input
            pltpu.VMEM((L // 2 + 2, 32), jnp.float32),     # padded maxpool input
            pltpu.VMEM((L // 4 + 2, 32), jnp.bfloat16),    # layer1 / layer2-conv1
            pltpu.VMEM((L // 8 + 2, 64), jnp.bfloat16),    # layer2-conv2 / layer3-conv1
            pltpu.VMEM((L // 16 + 2, 128), jnp.bfloat16),  # layer3-conv2 / layer4-conv1
            pltpu.VMEM((L // 32 + 2, 256), jnp.bfloat16),  # layer4-conv2
        ],
        compiler_params=pltpu.CompilerParams(
            dimension_semantics=("parallel",)),
    )(xl, *flat)
    return out.reshape(B, n_cls)


# ----------------------------------------------------------------------------
# Parameter construction (deterministic, synthetic) + packing / BN folding
# ----------------------------------------------------------------------------
def _bn_params(c):
    return (jnp.ones((c,), jnp.float32), jnp.zeros((c,), jnp.float32),
            jnp.zeros((c,), jnp.float32), jnp.ones((c,), jnp.float32))


def _kaiming_conv(key, cout, cin, k):
    # kaiming_normal_(mode='fan_out', nonlinearity='relu')
    fan_out = cout * k
    std = (2.0 / fan_out) ** 0.5
    return std * jax.random.normal(key, (cout, cin, k), jnp.float32)


def make_params(key, layers=(1, 1, 1, 1), num_classes=4):
    keys = iter(jax.random.split(key, 128))
    params = {
        'conv1_w': _kaiming_conv(next(keys), 32, 1, 7),
        'bn1': _bn_params(32),
    }
    inplanes = 32
    all_layers = []
    for planes, nblocks, stride in zip([32, 64, 128, 256], layers, [1, 2, 2, 2]):
        layer_blocks = []
        for bi in range(nblocks):
            s = stride if bi == 0 else 1
            bp = {
                'stride': s,
                'conv1_w': _kaiming_conv(next(keys), planes, inplanes, 3),
                'bn1': _bn_params(planes),
                'conv2_w': _kaiming_conv(next(keys), planes, planes, 3),
                'bn2': _bn_params(planes),
            }
            if s != 1 or inplanes != planes:
                bp['down_w'] = _kaiming_conv(next(keys), planes, inplanes, 1)
                bp['down_bn'] = _bn_params(planes)
            layer_blocks.append(bp)
            inplanes = planes
        all_layers.append(layer_blocks)
    params['layers'] = all_layers

    limit = 1.0 / (256 ** 0.5)
    params['fc_w'] = jax.random.uniform(next(keys), (num_classes, 256),
                                        jnp.float32, -limit, limit)
    params['fc_b'] = jax.random.uniform(next(keys), (num_classes,),
                                        jnp.float32, -limit, limit)
    return params


def _fold_bn(w, bn):
    # w: (Cout, Cin, K) PyTorch conv layout.  Returns ((K*Cin, Cout), (1, Cout))
    # with eval-mode BN folded into the weight columns and the bias.
    gamma, beta, mean, var = bn
    scale = gamma / jnp.sqrt(var + BN_EPS)
    bias = beta - mean * scale
    cout, cin, k = w.shape
    wp = jnp.transpose(w, (2, 1, 0)).reshape(k * cin, cout) * scale[None, :]
    return wp, bias.reshape(1, cout)


def pack_params(params):
    packed = {}
    sw, sb = _fold_bn(params['conv1_w'], params['bn1'])
    packed['stem_w'], packed['stem_b'] = sw, sb        # f32: Cin==1 -> VPU path
    for name, layer_blocks in zip(['l1', 'l2', 'l3', 'l4'], params['layers']):
        assert len(layer_blocks) == 1, "kernel is wired for layers=[1,1,1,1]"
        bp = layer_blocks[0]
        w1, b1 = _fold_bn(bp['conv1_w'], bp['bn1'])
        w2, b2 = _fold_bn(bp['conv2_w'], bp['bn2'])
        packed[f'{name}_w1'] = w1.astype(jnp.bfloat16)
        packed[f'{name}_b1'] = b1
        packed[f'{name}_w2'] = w2.astype(jnp.bfloat16)
        packed[f'{name}_b2'] = b2
        if 'down_w' in bp:
            wd, bd = _fold_bn(bp['down_w'], bp['down_bn'])
            packed[f'{name}_wd'] = wd.astype(jnp.bfloat16)
            packed[f'{name}_bd'] = bd
    packed['fc_w'] = params['fc_w'].T.astype(jnp.bfloat16)   # (256, num_classes)
    packed['fc_b'] = params['fc_b'].reshape(1, -1)
    return packed


# ----------------------------------------------------------------------------
if __name__ == "__main__":
    key = jax.random.PRNGKey(0)
    k_param, k_x = jax.random.split(key)

    params = make_params(k_param, layers=(1, 1, 1, 1), num_classes=4)
    packed = pack_params(params)

    x = jax.random.normal(k_x, (2, 1, 64), jnp.float32)   # (batch, channels=1, length)

    fwd = jax.jit(resnet1d_forward)
    out = jax.block_until_ready(fwd(x, packed))

    assert out.shape == (2, 4), out.shape
    assert bool(jnp.all(jnp.isfinite(out)))
    print("KERNEL_OK")
</pallas_src>

<mosaic_0001>
module attributes {stable_mosaic.version = 11 : i64} {
  func.func @_resnet1d_fused_kernel(%arg0: i32, %arg1: memref<1x64x1xf32, #tpu.memory_space<vmem>>, %arg2: memref<7x32xf32, #tpu.memory_space<vmem>>, %arg3: memref<1x32xf32, #tpu.memory_space<vmem>>, %arg4: memref<96x32xbf16, #tpu.memory_space<vmem>>, %arg5: memref<1x32xf32, #tpu.memory_space<vmem>>, %arg6: memref<96x32xbf16, #tpu.memory_space<vmem>>, %arg7: memref<1x32xf32, #tpu.memory_space<vmem>>, %arg8: memref<96x64xbf16, #tpu.memory_space<vmem>>, %arg9: memref<1x64xf32, #tpu.memory_space<vmem>>, %arg10: memref<32x64xbf16, #tpu.memory_space<vmem>>, %arg11: memref<1x64xf32, #tpu.memory_space<vmem>>, %arg12: memref<192x64xbf16, #tpu.memory_space<vmem>>, %arg13: memref<1x64xf32, #tpu.memory_space<vmem>>, %arg14: memref<192x128xbf16, #tpu.memory_space<vmem>>, %arg15: memref<1x128xf32, #tpu.memory_space<vmem>>, %arg16: memref<64x128xbf16, #tpu.memory_space<vmem>>, %arg17: memref<1x128xf32, #tpu.memory_space<vmem>>, %arg18: memref<384x128xbf16, #tpu.memory_space<vmem>>, %arg19: memref<1x128xf32, #tpu.memory_space<vmem>>, %arg20: memref<384x256xbf16, #tpu.memory_space<vmem>>, %arg21: memref<1x256xf32, #tpu.memory_space<vmem>>, %arg22: memref<128x256xbf16, #tpu.memory_space<vmem>>, %arg23: memref<1x256xf32, #tpu.memory_space<vmem>>, %arg24: memref<768x256xbf16, #tpu.memory_space<vmem>>, %arg25: memref<1x256xf32, #tpu.memory_space<vmem>>, %arg26: memref<256x4xbf16, #tpu.memory_space<vmem>>, %arg27: memref<1x4xf32, #tpu.memory_space<vmem>>, %arg28: memref<1x1x4xf32, #tpu.memory_space<vmem>>, %arg29: memref<70x1xf32, #tpu.memory_space<vmem>>, %arg30: memref<34x32xf32, #tpu.memory_space<vmem>>, %arg31: memref<18x32xbf16, #tpu.memory_space<vmem>>, %arg32: memref<10x64xbf16, #tpu.memory_space<vmem>>, %arg33: memref<6x128xbf16, #tpu.memory_space<vmem>>, %arg34: memref<4x256xbf16, #tpu.memory_space<vmem>>) attributes {dimension_semantics = [#tpu.dimension_semantics<parallel>], iteration_bounds = array<i64: 2>, scalar_prefetch = 0 : i64, scratch_operands = 6 : i64, tpu.core_type = #tpu.core_type<tc>, window_params = [{transform_indices = @transform_0, window_bounds = array<i64: 1, 64, 1>}, {pipeline_mode = #tpu.pipeline_mode<synchronous>, transform_indices = @transform_1, window_bounds = array<i64: 7, 32>}, {pipeline_mode = #tpu.pipeline_mode<synchronous>, transform_indices = @transform_2, window_bounds = array<i64: 1, 32>}, {pipeline_mode = #tpu.pipeline_mode<synchronous>, transform_indices = @transform_3, window_bounds = array<i64: 96, 32>}, {pipeline_mode = #tpu.pipeline_mode<synchronous>, transform_indices = @transform_4, window_bounds = array<i64: 1, 32>}, {pipeline_mode = #tpu.pipeline_mode<synchronous>, transform_indices = @transform_5, window_bounds = array<i64: 96, 32>}, {pipeline_mode = #tpu.pipeline_mode<synchronous>, transform_indices = @transform_6, window_bounds = array<i64: 1, 32>}, {pipeline_mode = #tpu.pipeline_mode<synchronous>, transform_indices = @transform_7, window_bounds = array<i64: 96, 64>}, {pipeline_mode = #tpu.pipeline_mode<synchronous>, transform_indices = @transform_8, window_bounds = array<i64: 1, 64>}, {pipeline_mode = #tpu.pipeline_mode<synchronous>, transform_indices = @transform_9, window_bounds = array<i64: 32, 64>}, {pipeline_mode = #tpu.pipeline_mode<synchronous>, transform_indices = @transform_10, window_bounds = array<i64: 1, 64>}, {pipeline_mode = #tpu.pipeline_mode<synchronous>, transform_indices = @transform_11, window_bounds = array<i64: 192, 64>}, {pipeline_mode = #tpu.pipeline_mode<synchronous>, transform_indices = @transform_12, window_bounds = array<i64: 1, 64>}, {pipeline_mode = #tpu.pipeline_mode<synchronous>, transform_indices = @transform_13, window_bounds = array<i64: 192, 128>}, {pipeline_mode = #tpu.pipeline_mode<synchronous>, transform_indices = @transform_14, window_bounds = array<i64: 1, 128>}, {pipeline_mode = #tpu.pipeline_mode<synchronous>, transform_indices = @transform_15, window_bounds = array<i64: 64, 128>}, {pipeline_mode = #tpu.pipeline_mode<synchronous>, transform_indices = @transform_16, window_bounds = array<i64: 1, 128>}, {pipeline_mode = #tpu.pipeline_mode<synchronous>, transform_indices = @transform_17, window_bounds = array<i64: 384, 128>}, {pipeline_mode = #tpu.pipeline_mode<synchronous>, transform_indices = @transform_18, window_bounds = array<i64: 1, 128>}, {pipeline_mode = #tpu.pipeline_mode<synchronous>, transform_indices = @transform_19, window_bounds = array<i64: 384, 256>}, {pipeline_mode = #tpu.pipeline_mode<synchronous>, transform_indices = @transform_20, window_bounds = array<i64: 1, 256>}, {pipeline_mode = #tpu.pipeline_mode<synchronous>, transform_indices = @transform_21, window_bounds = array<i64: 128, 256>}, {pipeline_mode = #tpu.pipeline_mode<synchronous>, transform_indices = @transform_22, window_bounds = array<i64: 1, 256>}, {pipeline_mode = #tpu.pipeline_mode<synchronous>, transform_indices = @transform_23, window_bounds = array<i64: 768, 256>}, {pipeline_mode = #tpu.pipeline_mode<synchronous>, transform_indices = @transform_24, window_bounds = array<i64: 1, 256>}, {pipeline_mode = #tpu.pipeline_mode<synchronous>, transform_indices = @transform_25, window_bounds = array<i64: 256, 4>}, {pipeline_mode = #tpu.pipeline_mode<synchronous>, transform_indices = @transform_26, window_bounds = array<i64: 1, 4>}, {transform_indices = @transform_27, window_bounds = array<i64: 1, 1, 4>}]} {
    %cst = arith.constant 0.000000e+00 : f32
    %0 = vector.broadcast %cst : f32 to vector<70x1xf32>
    %c0 = arith.constant 0 : index
    %c0_0 = arith.constant 0 : index
    %1 = vector.load %arg29[%c0, %c0_0] : memref<70x1xf32, #tpu.memory_space<vmem>>, vector<70x1xf32>
    tpu.vector_store %arg29[%c0, %c0_0], %0 {strides = array<i32>} : memref<70x1xf32, #tpu.memory_space<vmem>>, vector<70x1xf32>,
    %c0_1 = arith.constant 0 : index
    %c0_2 = arith.constant 0 : index
    %c0_3 = arith.constant 0 : index
    %2 = vector.load %arg1[%c0_1, %c0_2, %c0_3] : memref<1x64x1xf32, #tpu.memory_space<vmem>>, vector<1x64x1xf32>
    %3 = vector.shape_cast %2 : vector<1x64x1xf32> to vector<64x1xf32>
    %c3 = arith.constant 3 : index
    %c0_4 = arith.constant 0 : index
    %4 = vector.load %arg29[%c3, %c0_4] : memref<70x1xf32, #tpu.memory_space<vmem>>, vector<64x1xf32>
    tpu.vector_store %arg29[%c3, %c0_4], %3 {strides = array<i32>} : memref<70x1xf32, #tpu.memory_space<vmem>>, vector<64x1xf32>,
    %cst_5 = arith.constant 0.000000e+00 : f32
    %5 = vector.broadcast %cst_5 : f32 to vector<64x32xf32>
    %c0_6 = arith.constant 0 : index
    %c0_7 = arith.constant 0 : index
    %6 = vector.load %arg29[%c0_6, %c0_7] : memref<70x1xf32, #tpu.memory_space<vmem>>, vector<64x1xf32>
    %c0_8 = arith.constant 0 : index
    %c0_9 = arith.constant 0 : index
    %7 = vector.load %arg2[%c0_8, %c0_9] : memref<7x32xf32, #tpu.memory_space<vmem>>, vector<1x32xf32>
    %8 = vector.broadcast %6 : vector<64x1xf32> to vector<64x32xf32>
    %9 = vector.broadcast %7 : vector<1x32xf32> to vector<64x32xf32>
    %10 = arith.mulf %8, %9 : vector<64x32xf32>
    %11 = arith.addf %5, %10 : vector<64x32xf32>
    %c1 = arith.constant 1 : index
    %c0_10 = arith.constant 0 : index
    %12 = vector.load %arg29[%c1, %c0_10] : memref<70x1xf32, #tpu.memory_space<vmem>>, vector<64x1xf32>
    %c1_11 = arith.constant 1 : index
    %c0_12 = arith.constant 0 : index
    %13 = vector.load %arg2[%c1_11, %c0_12] : memref<7x32xf32, #tpu.memory_space<vmem>>, vector<1x32xf32>
    %14 = vector.broadcast %12 : vector<64x1xf32> to vector<64x32xf32>
    %15 = vector.broadcast %13 : vector<1x32xf32> to vector<64x32xf32>
    %16 = arith.mulf %14, %15 : vector<64x32xf32>
    %17 = arith.addf %11, %16 : vector<64x32xf32>
    %c2 = arith.constant 2 : index
    %c0_13 = arith.constant 0 : index
    %18 = vector.load %arg29[%c2, %c0_13] : memref<70x1xf32, #tpu.memory_space<vmem>>, vector<64x1xf32>
    %c2_14 = arith.constant 2 : index
    %c0_15 = arith.constant 0 : index
    %19 = vector.load %arg2[%c2_14, %c0_15] : memref<7x32xf32, #tpu.memory_space<vmem>>, vector<1x32xf32>
    %20 = vector.broadcast %18 : vector<64x1xf32> to vector<64x32xf32>
    %21 = vector.broadcast %19 : vector<1x32xf32> to vector<64x32xf32>
    %22 = arith.mulf %20, %21 : vector<64x32xf32>
    %23 = arith.addf %17, %22 : vector<64x32xf32>
    %c3_16 = arith.constant 3 : index
    %c0_17 = arith.constant 0 : index
    %24 = vector.load %arg29[%c3_16, %c0_17] : memref<70x1xf32, #tpu.memory_space<vmem>>, vector<64x1xf32>
    %c3_18 = arith.constant 3 : index
    %c0_19 = arith.constant 0 : index
    %25 = vector.load %arg2[%c3_18, %c0_19] : memref<7x32xf32, #tpu.memory_space<vmem>>, vector<1x32xf32>
    %26 = vector.broadcast %24 : vector<64x1xf32> to vector<64x32xf32>
    %27 = vector.broadcast %25 : vector<1x32xf32> to vector<64x32xf32>
    %28 = arith.mulf %26, %27 : vector<64x32xf32>
    %29 = arith.addf %23, %28 : vector<64x32xf32>
    %c4 = arith.constant 4 : index
    %c0_20 = arith.constant 0 : index
    %30 = vector.load %arg29[%c4, %c0_20] : memref<70x1xf32, #tpu.memory_space<vmem>>, vector<64x1xf32>
    %c4_21 = arith.constant 4 : index
    %c0_22 = arith.constant 0 : index
    %31 = vector.load %arg2[%c4_21, %c0_22] : memref<7x32xf32, #tpu.memory_space<vmem>>, vector<1x32xf32>
    %32 = vector.broadcast %30 : vector<64x1xf32> to vector<64x32xf32>
    %33 = vector.broadcast %31 : vector<1x32xf32> to vector<64x32xf32>
    %34 = arith.mulf %32, %33 : vector<64x32xf32>
    %35 = arith.addf %29, %34 : vector<64x32xf32>
    %c5 = arith.constant 5 : index
    %c0_23 = arith.constant 0 : index
    %36 = vector.load %arg29[%c5, %c0_23] : memref<70x1xf32, #tpu.memory_space<vmem>>, vector<64x1xf32>
    %c5_24 = arith.constant 5 : index
    %c0_25 = arith.constant 0 : index
    %37 = vector.load %arg2[%c5_24, %c0_25] : memref<7x32xf32, #tpu.memory_space<vmem>>, vector<1x32xf32>
    %38 = vector.broadcast %36 : vector<64x1xf32> to vector<64x32xf32>
    %39 = vector.broadcast %37 : vector<1x32xf32> to vector<64x32xf32>
    %40 = arith.mulf %38, %39 : vector<64x32xf32>
    %41 = arith.addf %35, %40 : vector<64x32xf32>
    %c6 = arith.constant 6 : index
    %c0_26 = arith.constant 0 : index
    %42 = vector.load %arg29[%c6, %c0_26] : memref<70x1xf32, #tpu.memory_space<vmem>>, vector<64x1xf32>
    %c6_27 = arith.constant 6 : index
    %c0_28 = arith.constant 0 : index
    %43 = vector.load %arg2[%c6_27, %c0_28] : memref<7x32xf32, #tpu.memory_space<vmem>>, vector<1x32xf32>
    %44 = vector.broadcast %42 : vector<64x1xf32> to vector<64x32xf32>
    %45 = vector.broadcast %43 : vector<1x32xf32> to vector<64x32xf32>
    %46 = arith.mulf %44, %45 : vector<64x32xf32>
    %47 = arith.addf %41, %46 : vector<64x32xf32>
    %c0_29 = arith.constant 0 : index
    %c0_30 = arith.constant 0 : index
    %48 = vector.load %arg3[%c0_29, %c0_30] : memref<1x32xf32, #tpu.memory_space<vmem>>, vector<1x32xf32>
    %49 = vector.broadcast %48 : vector<1x32xf32> to vector<64x32xf32>
    %50 = arith.addf %47, %49 : vector<64x32xf32>
    %cst_31 = arith.constant 0.000000e+00 : f32
    %51 = vector.broadcast %cst_31 : f32 to vector<64x32xf32>
    %52 = arith.maximumf %50, %51 : vector<64x32xf32>
    %53 = tpu.iota {dimensions = array<i32: 1>} : vector<32x64xi32>
    %54 = tpu.iota {dimensions = array<i32: 0>} : vector<32x64xi32>
    %c2_i32 = arith.constant 2 : i32
    %55 = vector.broadcast %c2_i32 : i32 to vector<32x64xi32>
    %56 = arith.muli %54, %55 : vector<32x64xi32>
    %57 = arith.cmpi eq, %53, %56 : vector<32x64xi32>
    %58 = arith.extui %57 : vector<32x64xi1> to vector<32x64xi32>
    %59 = arith.sitofp %58 : vector<32x64xi32> to vector<32x64xf32>
    %cst_32 = arith.constant dense<0.000000e+00> : vector<32x32xf32>
    %60 = tpu.matmul %59, %52, %cst_32 {dimension_numbers = #tpu.dot_dimension_numbers<[1], [0], [0], [1], [0, 0, 1, 1], [], []>} : vector<32x64xf32>, vector<64x32xf32>, vector<32x32xf32> -> vector<32x32xf32>
    %cst_33 = arith.constant 0.000000e+00 : f32
    %61 = vector.broadcast %cst_33 : f32 to vector<34x32xf32>
    %c0_34 = arith.constant 0 : index
    %c0_35 = arith.constant 0 : index
    %62 = vector.load %arg30[%c0_34, %c0_35] : memref<34x32xf32, #tpu.memory_space<vmem>>, vector<34x32xf32>
    tpu.vector_store %arg30[%c0_34, %c0_35], %61 {strides = array<i32>} : memref<34x32xf32, #tpu.memory_space<vmem>>, vector<34x32xf32>,
    %c1_36 = arith.constant 1 : index
    %c0_37 = arith.constant 0 : index
    %63 = vector.load %arg30[%c1_36, %c0_37] : memref<34x32xf32, #tpu.memory_space<vmem>>, vector<32x32xf32>
    tpu.vector_store %arg30[%c1_36, %c0_37], %60 {strides = array<i32>} : memref<34x32xf32, #tpu.memory_space<vmem>>, vector<32x32xf32>,
    %c0_38 = arith.constant 0 : index
    %c0_39 = arith.constant 0 : index
    %64 = vector.load %arg30[%c0_38, %c0_39] : memref<34x32xf32, #tpu.memory_space<vmem>>, vector<32x32xf32>
    %c1_40 = arith.constant 1 : index
    %c0_41 = arith.constant 0 : index
    %65 = vector.load %arg30[%c1_40, %c0_41] : memref<34x32xf32, #tpu.memory_space<vmem>>, vector<32x32xf32>
    %66 = arith.maximumf %64, %65 : vector<32x32xf32>
    %c2_42 = arith.constant 2 : index
    %c0_43 = arith.constant 0 : index
    %67 = vector.load %arg30[%c2_42, %c0_43] : memref<34x32xf32, #tpu.memory_space<vmem>>, vector<32x32xf32>
    %68 = arith.maximumf %66, %67 : vector<32x32xf32>
    %69 = tpu.iota {dimensions = array<i32: 1>} : vector<16x32xi32>
    %70 = tpu.iota {dimensions = array<i32: 0>} : vector<16x32xi32>
    %c2_i32_44 = arith.constant 2 : i32
    %71 = vector.broadcast %c2_i32_44 : i32 to vector<16x32xi32>
    %72 = arith.muli %70, %71 : vector<16x32xi32>
    %73 = arith.cmpi eq, %69, %72 : vector<16x32xi32>
    %74 = arith.extui %73 : vector<16x32xi1> to vector<16x32xi32>
    %75 = arith.sitofp %74 : vector<16x32xi32> to vector<16x32xf32>
    %cst_45 = arith.constant dense<0.000000e+00> : vector<16x32xf32>
    %76 = tpu.matmul %75, %68, %cst_45 {dimension_numbers = #tpu.dot_dimension_numbers<[1], [0], [0], [1], [0, 0, 1, 1], [], []>} : vector<16x32xf32>, vector<32x32xf32>, vector<16x32xf32> -> vector<16x32xf32>
    %cst_46 = arith.constant 0.000000e+00 : bf16
    %77 = vector.broadcast %cst_46 : bf16 to vector<18x32xbf16>
    %c0_47 = arith.constant 0 : index
    %c0_48 = arith.constant 0 : index
    %78 = vector.load %arg31[%c0_47, %c0_48] : memref<18x32xbf16, #tpu.memory_space<vmem>>, vector<18x32xbf16>
    tpu.vector_store %arg31[%c0_47, %c0_48], %77 {strides = array<i32>} : memref<18x32xbf16, #tpu.memory_space<vmem>>, vector<18x32xbf16>,
    %79 = arith.truncf %76 : vector<16x32xf32> to vector<16x32xbf16>
    %c1_49 = arith.constant 1 : index
    %c0_50 = arith.constant 0 : index
    %80 = vector.load %arg31[%c1_49, %c0_50] : memref<18x32xbf16, #tpu.memory_space<vmem>>, vector<16x32xbf16>
    tpu.vector_store %arg31[%c1_49, %c0_50], %79 {strides = array<i32>} : memref<18x32xbf16, #tpu.memory_space<vmem>>, vector<16x32xbf16>,
    %c0_51 = arith.constant 0 : index
    %c0_52 = arith.constant 0 : index
    %81 = vector.load %arg31[%c0_51, %c0_52] : memref<18x32xbf16, #tpu.memory_space<vmem>>, vector<16x32xbf16>
    %c0_53 = arith.constant 0 : index
    %c0_54 = arith.constant 0 : index
    %82 = vector.load %arg4[%c0_53, %c0_54] : memref<96x32xbf16, #tpu.memory_space<vmem>>, vector<32x32xbf16>
    %cst_55 = arith.constant dense<0.000000e+00> : vector<16x32xf32>
    %83 = tpu.matmul %81, %82, %cst_55 {dimension_numbers = #tpu.dot_dimension_numbers<[1], [0], [0], [1], [0, 0, 1, 1], [], []>} : vector<16x32xbf16>, vector<32x32xbf16>, vector<16x32xf32> -> vector<16x32xf32>
    %c1_56 = arith.constant 1 : index
    %c0_57 = arith.constant 0 : index
    %84 = vector.load %arg31[%c1_56, %c0_57] : memref<18x32xbf16, #tpu.memory_space<vmem>>, vector<16x32xbf16>
    %c32 = arith.constant 32 : index
    %c0_58 = arith.constant 0 : index
    %85 = vector.load %arg4[%c32, %c0_58] : memref<96x32xbf16, #tpu.memory_space<vmem>>, vector<32x32xbf16>
    %cst_59 = arith.constant dense<0.000000e+00> : vector<16x32xf32>
    %86 = tpu.matmul %84, %85, %cst_59 {dimension_numbers = #tpu.dot_dimension_numbers<[1], [0], [0], [1], [0, 0, 1, 1], [], []>} : vector<16x32xbf16>, vector<32x32xbf16>, vector<16x32xf32> -> vector<16x32xf32>
    %87 = arith.addf %83, %86 : vector<16x32xf32>
    %c2_60 = arith.constant 2 : index
    %c0_61 = arith.constant 0 : index
    %88 = vector.load %arg31[%c2_60, %c0_61] : memref<18x32xbf16, #tpu.memory_space<vmem>>, vector<16x32xbf16>
    %c64 = arith.constant 64 : index
    %c0_62 = arith.constant 0 : index
    %89 = vector.load %arg4[%c64, %c0_62] : memref<96x32xbf16, #tpu.memory_space<vmem>>, vector<32x32xbf16>
    %cst_63 = arith.constant dense<0.000000e+00> : vector<16x32xf32>
    %90 = tpu.matmul %88, %89, %cst_63 {dimension_numbers = #tpu.dot_dimension_numbers<[1], [0], [0], [1], [0, 0, 1, 1], [], []>} : vector<16x32xbf16>, vector<32x32xbf16>, vector<16x32xf32> -> vector<16x32xf32>
    %91 = arith.addf %87, %90 : vector<16x32xf32>
    %c0_64 = arith.constant 0 : index
    %c0_65 = arith.constant 0 : index
    %92 = vector.load %arg5[%c0_64, %c0_65] : memref<1x32xf32, #tpu.memory_space<vmem>>, vector<1x32xf32>
    %93 = vector.broadcast %92 : vector<1x32xf32> to vector<16x32xf32>
    %94 = arith.addf %91, %93 : vector<16x32xf32>
    %cst_66 = arith.constant 0.000000e+00 : f32
    %95 = vector.broadcast %cst_66 : f32 to vector<16x32xf32>
    %96 = arith.maximumf %94, %95 : vector<16x32xf32>
    %cst_67 = arith.constant 0.000000e+00 : bf16
    %97 = vector.broadcast %cst_67 : bf16 to vector<18x32xbf16>
    %c0_68 = arith.constant 0 : index
    %c0_69 = arith.constant 0 : index
    %98 = vector.load %arg31[%c0_68, %c0_69] : memref<18x32xbf16, #tpu.memory_space<vmem>>, vector<18x32xbf16>
    tpu.vector_store %arg31[%c0_68, %c0_69], %97 {strides = array<i32>} : memref<18x32xbf16, #tpu.memory_space<vmem>>, vector<18x32xbf16>,
    %99 = arith.truncf %96 : vector<16x32xf32> to vector<16x32xbf16>
    %c1_70 = arith.constant 1 : index
    %c0_71 = arith.constant 0 : index
    %100 = vector.load %arg31[%c1_70, %c0_71] : memref<18x32xbf16, #tpu.memory_space<vmem>>, vector<16x32xbf16>
    tpu.vector_store %arg31[%c1_70, %c0_71], %99 {strides = array<i32>} : memref<18x32xbf16, #tpu.memory_space<vmem>>, vector<16x32xbf16>,
    %c0_72 = arith.constant 0 : index
    %c0_73 = arith.constant 0 : index
    %101 = vector.load %arg31[%c0_72, %c0_73] : memref<18x32xbf16, #tpu.memory_space<vmem>>, vector<16x32xbf16>
    %c0_74 = arith.constant 0 : index
    %c0_75 = arith.constant 0 : index
    %102 = vector.load %arg6[%c0_74, %c0_75] : memref<96x32xbf16, #tpu.memory_space<vmem>>, vector<32x32xbf16>
    %cst_76 = arith.constant dense<0.000000e+00> : vector<16x32xf32>
    %103 = tpu.matmul %101, %102, %cst_76 {dimension_numbers = #tpu.dot_dimension_numbers<[1], [0], [0], [1], [0, 0, 1, 1], [], []>} : vector<16x32xbf16>, vector<32x32xbf16>, vector<16x32xf32> -> vector<16x32xf32>
    %c1_77 = arith.constant 1 : index
    %c0_78 = arith.constant 0 : index
    %104 = vector.load %arg31[%c1_77, %c0_78] : memref<18x32xbf16, #tpu.memory_space<vmem>>, vector<16x32xbf16>
    %c32_79 = arith.constant 32 : index
    %c0_80 = arith.constant 0 : index
    %105 = vector.load %arg6[%c32_79, %c0_80] : memref<96x32xbf16, #tpu.memory_space<vmem>>, vector<32x32xbf16>
    %cst_81 = arith.constant dense<0.000000e+00> : vector<16x32xf32>
    %106 = tpu.matmul %104, %105, %cst_81 {dimension_numbers = #tpu.dot_dimension_numbers<[1], [0], [0], [1], [0, 0, 1, 1], [], []>} : vector<16x32xbf16>, vector<32x32xbf16>, vector<16x32xf32> -> vector<16x32xf32>
    %107 = arith.addf %103, %106 : vector<16x32xf32>
    %c2_82 = arith.constant 2 : index
    %c0_83 = arith.constant 0 : index
    %108 = vector.load %arg31[%c2_82, %c0_83] : memref<18x32xbf16, #tpu.memory_space<vmem>>, vector<16x32xbf16>
    %c64_84 = arith.constant 64 : index
    %c0_85 = arith.constant 0 : index
    %109 = vector.load %arg6[%c64_84, %c0_85] : memref<96x32xbf16, #tpu.memory_space<vmem>>, vector<32x32xbf16>
    %cst_86 = arith.constant dense<0.000000e+00> : vector<16x32xf32>
    %110 = tpu.matmul %108, %109, %cst_86 {dimension_numbers = #tpu.dot_dimension_numbers<[1], [0], [0], [1], [0, 0, 1, 1], [], []>} : vector<16x32xbf16>, vector<32x32xbf16>, vector<16x32xf32> -> vector<16x32xf32>
    %111 = arith.addf %107, %110 : vector<16x32xf32>
    %c0_87 = arith.constant 0 : index
    %c0_88 = arith.constant 0 : index
    %112 = vector.load %arg7[%c0_87, %c0_88] : memref<1x32xf32, #tpu.memory_space<vmem>>, vector<1x32xf32>
    %113 = vector.broadcast %112 : vector<1x32xf32> to vector<16x32xf32>
    %114 = arith.addf %111, %113 : vector<16x32xf32>
    %115 = arith.addf %114, %76 : vector<16x32xf32>
    %cst_89 = arith.constant 0.000000e+00 : f32
    %116 = vector.broadcast %cst_89 : f32 to vector<16x32xf32>
    %117 = arith.maximumf %115, %116 : vector<16x32xf32>
    %cst_90 = arith.constant 0.000000e+00 : bf16
    %118 = vector.broadcast %cst_90 : bf16 to vector<18x32xbf16>
    %c0_91 = arith.constant 0 : index
    %c0_92 = arith.constant 0 : index
    %119 = vector.load %arg31[%c0_91, %c0_92] : memref<18x32xbf16, #tpu.memory_space<vmem>>, vector<18x32xbf16>
    tpu.vector_store %arg31[%c0_91, %c0_92], %118 {strides = array<i32>} : memref<18x32xbf16, #tpu.memory_space<vmem>>, vector<18x32xbf16>,
    %120 = arith.truncf %117 : vector<16x32xf32> to vector<16x32xbf16>
    %c1_93 = arith.constant 1 : index
    %c0_94 = arith.constant 0 : index
    %121 = vector.load %arg31[%c1_93, %c0_94] : memref<18x32xbf16, #tpu.memory_space<vmem>>, vector<16x32xbf16>
    tpu.vector_store %arg31[%c1_93, %c0_94], %120 {strides = array<i32>} : memref<18x32xbf16, #tpu.memory_space<vmem>>, vector<16x32xbf16>,
    %c0_95 = arith.constant 0 : index
    %c0_96 = arith.constant 0 : index
    %122 = vector.load %arg31[%c0_95, %c0_96] : memref<18x32xbf16, #tpu.memory_space<vmem>>, vector<16x32xbf16>
    %c0_97 = arith.constant 0 : index
    %c0_98 = arith.constant 0 : index
    %123 = vector.load %arg8[%c0_97, %c0_98] : memref<96x64xbf16, #tpu.memory_space<vmem>>, vector<32x64xbf16>
    %cst_99 = arith.constant dense<0.000000e+00> : vector<16x64xf32>
    %124 = tpu.matmul %122, %123, %cst_99 {dimension_numbers = #tpu.dot_dimension_numbers<[1], [0], [0], [1], [0, 0, 1, 1], [], []>} : vector<16x32xbf16>, vector<32x64xbf16>, vector<16x64xf32> -> vector<16x64xf32>
    %c1_100 = arith.constant 1 : index
    %c0_101 = arith.constant 0 : index
    %125 = vector.load %arg31[%c1_100, %c0_101] : memref<18x32xbf16, #tpu.memory_space<vmem>>, vector<16x32xbf16>
    %c32_102 = arith.constant 32 : index
    %c0_103 = arith.constant 0 : index
    %126 = vector.load %arg8[%c32_102, %c0_103] : memref<96x64xbf16, #tpu.memory_space<vmem>>, vector<32x64xbf16>
    %cst_104 = arith.constant dense<0.000000e+00> : vector<16x64xf32>
    %127 = tpu.matmul %125, %126, %cst_104 {dimension_numbers = #tpu.dot_dimension_numbers<[1], [0], [0], [1], [0, 0, 1, 1], [], []>} : vector<16x32xbf16>, vector<32x64xbf16>, vector<16x64xf32> -> vector<16x64xf32>
    %128 = arith.addf %124, %127 : vector<16x64xf32>
    %c2_105 = arith.constant 2 : index
    %c0_106 = arith.constant 0 : index
    %129 = vector.load %arg31[%c2_105, %c0_106] : memref<18x32xbf16, #tpu.memory_space<vmem>>, vector<16x32xbf16>
    %c64_107 = arith.constant 64 : index
    %c0_108 = arith.constant 0 : index
    %130 = vector.load %arg8[%c64_107, %c0_108] : memref<96x64xbf16, #tpu.memory_space<vmem>>, vector<32x64xbf16>
    %cst_109 = arith.constant dense<0.000000e+00> : vector<16x64xf32>
    %131 = tpu.matmul %129, %130, %cst_109 {dimension_numbers = #tpu.dot_dimension_numbers<[1], [0], [0], [1], [0, 0, 1, 1], [], []>} : vector<16x32xbf16>, vector<32x64xbf16>, vector<16x64xf32> -> vector<16x64xf32>
    %132 = arith.addf %128, %131 : vector<16x64xf32>
    %133 = tpu.iota {dimensions = array<i32: 1>} : vector<8x16xi32>
    %134 = tpu.iota {dimensions = array<i32: 0>} : vector<8x16xi32>
    %c2_i32_110 = arith.constant 2 : i32
    %135 = vector.broadcast %c2_i32_110 : i32 to vector<8x16xi32>
    %136 = arith.muli %134, %135 : vector<8x16xi32>
    %137 = arith.cmpi eq, %133, %136 : vector<8x16xi32>
    %138 = arith.extui %137 : vector<8x16xi1> to vector<8x16xi32>
    %139 = arith.sitofp %138 : vector<8x16xi32> to vector<8x16xf32>
    %cst_111 = arith.constant dense<0.000000e+00> : vector<8x64xf32>
    %140 = tpu.matmul %139, %132, %cst_111 {dimension_numbers = #tpu.dot_dimension_numbers<[1], [0], [0], [1], [0, 0, 1, 1], [], []>} : vector<8x16xf32>, vector<16x64xf32>, vector<8x64xf32> -> vector<8x64xf32>
    %c0_112 = arith.constant 0 : index
    %c0_113 = arith.constant 0 : index
    %141 = vector.load %arg9[%c0_112, %c0_113] : memref<1x64xf32, #tpu.memory_space<vmem>>, vector<1x64xf32>
    %142 = vector.broadcast %141 : vector<1x64xf32> to vector<8x64xf32>
    %143 = arith.addf %140, %142 : vector<8x64xf32>
    %cst_114 = arith.constant 0.000000e+00 : f32
    %144 = vector.broadcast %cst_114 : f32 to vector<8x64xf32>
    %145 = arith.maximumf %143, %144 : vector<8x64xf32>
    %146 = tpu.iota {dimensions = array<i32: 1>} : vector<8x16xi32>
    %147 = tpu.iota {dimensions = array<i32: 0>} : vector<8x16xi32>
    %c2_i32_115 = arith.constant 2 : i32
    %148 = vector.broadcast %c2_i32_115 : i32 to vector<8x16xi32>
    %149 = arith.muli %147, %148 : vector<8x16xi32>
    %150 = arith.cmpi eq, %146, %149 : vector<8x16xi32>
    %151 = arith.extui %150 : vector<8x16xi1> to vector<8x16xi32>
    %152 = arith.sitofp %151 : vector<8x16xi32> to vector<8x16xf32>
    %cst_116 = arith.constant dense<0.000000e+00> : vector<8x32xf32>
    %153 = tpu.matmul %152, %117, %cst_116 {dimension_numbers = #tpu.dot_dimension_numbers<[1], [0], [0], [1], [0, 0, 1, 1], [], []>} : vector<8x16xf32>, vector<16x32xf32>, vector<8x32xf32> -> vector<8x32xf32>
    %154 = arith.truncf %153 : vector<8x32xf32> to vector<8x32xbf16>
    %c0_117 = arith.constant 0 : index
    %c0_118 = arith.constant 0 : index
    %155 = vector.load %arg10[%c0_117, %c0_118] : memref<32x64xbf16, #tpu.memory_space<vmem>>, vector<32x64xbf16>
    %cst_119 = arith.constant dense<0.000000e+00> : vector<8x64xf32>
    %156 = tpu.matmul %154, %155, %cst_119 {dimension_numbers = #tpu.dot_dimension_numbers<[1], [0], [0], [1], [0, 0, 1, 1], [], []>} : vector<8x32xbf16>, vector<32x64xbf16>, vector<8x64xf32> -> vector<8x64xf32>
    %c0_120 = arith.constant 0 : index
    %c0_121 = arith.constant 0 : index
    %157 = vector.load %arg11[%c0_120, %c0_121] : memref<1x64xf32, #tpu.memory_space<vmem>>, vector<1x64xf32>
    %158 = vector.broadcast %157 : vector<1x64xf32> to vector<8x64xf32>
    %159 = arith.addf %156, %158 : vector<8x64xf32>
    %cst_122 = arith.constant 0.000000e+00 : bf16
    %160 = vector.broadcast %cst_122 : bf16 to vector<10x64xbf16>
    %c0_123 = arith.constant 0 : index
    %c0_124 = arith.constant 0 : index
    %161 = vector.load %arg32[%c0_123, %c0_124] : memref<10x64xbf16, #tpu.memory_space<vmem>>, vector<10x64xbf16>
    tpu.vector_store %arg32[%c0_123, %c0_124], %160 {strides = array<i32>} : memref<10x64xbf16, #tpu.memory_space<vmem>>, vector<10x64xbf16>,
    %162 = arith.truncf %145 : vector<8x64xf32> to vector<8x64xbf16>
    %c1_125 = arith.constant 1 : index
    %c0_126 = arith.constant 0 : index
    %163 = vector.load %arg32[%c1_125, %c0_126] : memref<10x64xbf16, #tpu.memory_space<vmem>>, vector<8x64xbf16>
    tpu.vector_store %arg32[%c1_125, %c0_126], %162 {strides = array<i32>} : memref<10x64xbf16, #tpu.memory_space<vmem>>, vector<8x64xbf16>,
    %c0_127 = arith.constant 0 : index
    %c0_128 = arith.constant 0 : index
    %164 = vector.load %arg32[%c0_127, %c0_128] : memref<10x64xbf16, #tpu.memory_space<vmem>>, vector<8x64xbf16>
    %c0_129 = arith.constant 0 : index
    %c0_130 = arith.constant 0 : index
    %165 = vector.load %arg12[%c0_129, %c0_130] : memref<192x64xbf16, #tpu.memory_space<vmem>>, vector<64x64xbf16>
    %cst_131 = arith.constant dense<0.000000e+00> : vector<8x64xf32>
    %166 = tpu.matmul %164, %165, %cst_131 {dimension_numbers = #tpu.dot_dimension_numbers<[1], [0], [0], [1], [0, 0, 1, 1], [], []>} : vector<8x64xbf16>, vector<64x64xbf16>, vector<8x64xf32> -> vector<8x64xf32>
    %c1_132 = arith.constant 1 : index
    %c0_133 = arith.constant 0 : index
    %167 = vector.load %arg32[%c1_132, %c0_133] : memref<10x64xbf16, #tpu.memory_space<vmem>>, vector<8x64xbf16>
    %c64_134 = arith.constant 64 : index
    %c0_135 = arith.constant 0 : index
    %168 = vector.load %arg12[%c64_134, %c0_135] : memref<192x64xbf16, #tpu.memory_space<vmem>>, vector<64x64xbf16>
    %cst_136 = arith.constant dense<0.000000e+00> : vector<8x64xf32>
    %169 = tpu.matmul %167, %168, %cst_136 {dimension_numbers = #tpu.dot_dimension_numbers<[1], [0], [0], [1], [0, 0, 1, 1], [], []>} : vector<8x64xbf16>, vector<64x64xbf16>, vector<8x64xf32> -> vector<8x64xf32>
    %170 = arith.addf %166, %169 : vector<8x64xf32>
    %c2_137 = arith.constant 2 : index
    %c0_138 = arith.constant 0 : index
    %171 = vector.load %arg32[%c2_137, %c0_138] : memref<10x64xbf16, #tpu.memory_space<vmem>>, vector<8x64xbf16>
    %c128 = arith.constant 128 : index
    %c0_139 = arith.constant 0 : index
    %172 = vector.load %arg12[%c128, %c0_139] : memref<192x64xbf16, #tpu.memory_space<vmem>>, vector<64x64xbf16>
    %cst_140 = arith.constant dense<0.000000e+00> : vector<8x64xf32>
    %173 = tpu.matmul %171, %172, %cst_140 {dimension_numbers = #tpu.dot_dimension_numbers<[1], [0], [0], [1], [0, 0, 1, 1], [], []>} : vector<8x64xbf16>, vector<64x64xbf16>, vector<8x64xf32> -> vector<8x64xf32>
    %174 = arith.addf %170, %173 : vector<8x64xf32>
    %c0_141 = arith.constant 0 : index
    %c0_142 = arith.constant 0 : index
    %175 = vector.load %arg13[%c0_141, %c0_142] : memref<1x64xf32, #tpu.memory_space<vmem>>, vector<1x64xf32>
    %176 = vector.broadcast %175 : vector<1x64xf32> to vector<8x64xf32>
    %177 = arith.addf %174, %176 : vector<8x64xf32>
    %178 = arith.addf %177, %159 : vector<8x64xf32>
    %cst_143 = arith.constant 0.000000e+00 : f32
    %179 = vector.broadcast %cst_143 : f32 to vector<8x64xf32>
    %180 = arith.maximumf %178, %179 : vector<8x64xf32>
    %cst_144 = arith.constant 0.000000e+00 : bf16
    %181 = vector.broadcast %cst_144 : bf16 to vector<10x64xbf16>
    %c0_145 = arith.constant 0 : index
    %c0_146 = arith.constant 0 : index
    %182 = vector.load %arg32[%c0_145, %c0_146] : memref<10x64xbf16, #tpu.memory_space<vmem>>, vector<10x64xbf16>
    tpu.vector_store %arg32[%c0_145, %c0_146], %181 {strides = array<i32>} : memref<10x64xbf16, #tpu.memory_space<vmem>>, vector<10x64xbf16>,
    %183 = arith.truncf %180 : vector<8x64xf32> to vector<8x64xbf16>
    %c1_147 = arith.constant 1 : index
    %c0_148 = arith.constant 0 : index
    %184 = vector.load %arg32[%c1_147, %c0_148] : memref<10x64xbf16, #tpu.memory_space<vmem>>, vector<8x64xbf16>
    tpu.vector_store %arg32[%c1_147, %c0_148], %183 {strides = array<i32>} : memref<10x64xbf16, #tpu.memory_space<vmem>>, vector<8x64xbf16>,
    %c0_149 = arith.constant 0 : index
    %c0_150 = arith.constant 0 : index
    %185 = vector.load %arg32[%c0_149, %c0_150] : memref<10x64xbf16, #tpu.memory_space<vmem>>, vector<8x64xbf16>
    %c0_151 = arith.constant 0 : index
    %c0_152 = arith.constant 0 : index
    %186 = vector.load %arg14[%c0_151, %c0_152] : memref<192x128xbf16, #tpu.memory_space<vmem>>, vector<64x128xbf16>
    %cst_153 = arith.constant dense<0.000000e+00> : vector<8x128xf32>
    %187 = tpu.matmul %185, %186, %cst_153 {dimension_numbers = #tpu.dot_dimension_numbers<[1], [0], [0], [1], [0, 0, 1, 1], [], []>} : vector<8x64xbf16>, vector<64x128xbf16>, vector<8x128xf32> -> vector<8x128xf32>
    %c1_154 = arith.constant 1 : index
    %c0_155 = arith.constant 0 : index
    %188 = vector.load %arg32[%c1_154, %c0_155] : memref<10x64xbf16, #tpu.memory_space<vmem>>, vector<8x64xbf16>
    %c64_156 = arith.constant 64 : index
    %c0_157 = arith.constant 0 : index
    %189 = vector.load %arg14[%c64_156, %c0_157] : memref<192x128xbf16, #tpu.memory_space<vmem>>, vector<64x128xbf16>
    %cst_158 = arith.constant dense<0.000000e+00> : vector<8x128xf32>
    %190 = tpu.matmul %188, %189, %cst_158 {dimension_numbers = #tpu.dot_dimension_numbers<[1], [0], [0], [1], [0, 0, 1, 1], [], []>} : vector<8x64xbf16>, vector<64x128xbf16>, vector<8x128xf32> -> vector<8x128xf32>
    %191 = arith.addf %187, %190 : vector<8x128xf32>
    %c2_159 = arith.constant 2 : index
    %c0_160 = arith.constant 0 : index
    %192 = vector.load %arg32[%c2_159, %c0_160] : memref<10x64xbf16, #tpu.memory_space<vmem>>, vector<8x64xbf16>
    %c128_161 = arith.constant 128 : index
    %c0_162 = arith.constant 0 : index
    %193 = vector.load %arg14[%c128_161, %c0_162] : memref<192x128xbf16, #tpu.memory_space<vmem>>, vector<64x128xbf16>
    %cst_163 = arith.constant dense<0.000000e+00> : vector<8x128xf32>
    %194 = tpu.matmul %192, %193, %cst_163 {dimension_numbers = #tpu.dot_dimension_numbers<[1], [0], [0], [1], [0, 0, 1, 1], [], []>} : vector<8x64xbf16>, vector<64x128xbf16>, vector<8x128xf32> -> vector<8x128xf32>
    %195 = arith.addf %191, %194 : vector<8x128xf32>
    %196 = tpu.iota {dimensions = array<i32: 1>} : vector<4x8xi32>
    %197 = tpu.iota {dimensions = array<i32: 0>} : vector<4x8xi32>
    %c2_i32_164 = arith.constant 2 : i32
    %198 = vector.broadcast %c2_i32_164 : i32 to vector<4x8xi32>
    %199 = arith.muli %197, %198 : vector<4x8xi32>
    %200 = arith.cmpi eq, %196, %199 : vector<4x8xi32>
    %201 = arith.extui %200 : vector<4x8xi1> to vector<4x8xi32>
    %202 = arith.sitofp %201 : vector<4x8xi32> to vector<4x8xf32>
    %cst_165 = arith.constant dense<0.000000e+00> : vector<4x128xf32>
    %203 = tpu.matmul %202, %195, %cst_165 {dimension_numbers = #tpu.dot_dimension_numbers<[1], [0], [0], [1], [0, 0, 1, 1], [], []>} : vector<4x8xf32>, vector<8x128xf32>, vector<4x128xf32> -> vector<4x128xf32>
    %c0_166 = arith.constant 0 : index
    %c0_167 = arith.constant 0 : index
    %204 = vector.load %arg15[%c0_166, %c0_167] : memref<1x128xf32, #tpu.memory_space<vmem>>, vector<1x128xf32>
    %205 = vector.broadcast %204 : vector<1x128xf32> to vector<4x128xf32>
    %206 = arith.addf %203, %205 : vector<4x128xf32>
    %cst_168 = arith.constant 0.000000e+00 : f32
    %207 = vector.broadcast %cst_168 : f32 to vector<4x128xf32>
    %208 = arith.maximumf %206, %207 : vector<4x128xf32>
    %209 = tpu.iota {dimensions = array<i32: 1>} : vector<4x8xi32>
    %210 = tpu.iota {dimensions = array<i32: 0>} : vector<4x8xi32>
    %c2_i32_169 = arith.constant 2 : i32
    %211 = vector.broadcast %c2_i32_169 : i32 to vector<4x8xi32>
    %212 = arith.muli %210, %211 : vector<4x8xi32>
    %213 = arith.cmpi eq, %209, %212 : vector<4x8xi32>
    %214 = arith.extui %213 : vector<4x8xi1> to vector<4x8xi32>
    %215 = arith.sitofp %214 : vector<4x8xi32> to vector<4x8xf32>
    %cst_170 = arith.constant dense<0.000000e+00> : vector<4x64xf32>
    %216 = tpu.matmul %215, %180, %cst_170 {dimension_numbers = #tpu.dot_dimension_numbers<[1], [0], [0], [1], [0, 0, 1, 1], [], []>} : vector<4x8xf32>, vector<8x64xf32>, vector<4x64xf32> -> vector<4x64xf32>
    %217 = arith.truncf %216 : vector<4x64xf32> to vector<4x64xbf16>
    %c0_171 = arith.constant 0 : index
    %c0_172 = arith.constant 0 : index
    %218 = vector.load %arg16[%c0_171, %c0_172] : memref<64x128xbf16, #tpu.memory_space<vmem>>, vector<64x128xbf16>
    %cst_173 = arith.constant dense<0.000000e+00> : vector<4x128xf32>
    %219 = tpu.matmul %217, %218, %cst_173 {dimension_numbers = #tpu.dot_dimension_numbers<[1], [0], [0], [1], [0, 0, 1, 1], [], []>} : vector<4x64xbf16>, vector<64x128xbf16>, vector<4x128xf32> -> vector<4x128xf32>
    %c0_174 = arith.constant 0 : index
    %c0_175 = arith.constant 0 : index
    %220 = vector.load %arg17[%c0_174, %c0_175] : memref<1x128xf32, #tpu.memory_space<vmem>>, vector<1x128xf32>
    %221 = vector.broadcast %220 : vector<1x128xf32> to vector<4x128xf32>
    %222 = arith.addf %219, %221 : vector<4x128xf32>
    %cst_176 = arith.constant 0.000000e+00 : bf16
    %223 = vector.broadcast %cst_176 : bf16 to vector<6x128xbf16>
    %c0_177 = arith.constant 0 : index
    %c0_178 = arith.constant 0 : index
    %224 = vector.load %arg33[%c0_177, %c0_178] : memref<6x128xbf16, #tpu.memory_space<vmem>>, vector<6x128xbf16>
    tpu.vector_store %arg33[%c0_177, %c0_178], %223 {strides = array<i32>} : memref<6x128xbf16, #tpu.memory_space<vmem>>, vector<6x128xbf16>,
    %225 = arith.truncf %208 : vector<4x128xf32> to vector<4x128xbf16>
    %c1_179 = arith.constant 1 : index
    %c0_180 = arith.constant 0 : index
    %226 = vector.load %arg33[%c1_179, %c0_180] : memref<6x128xbf16, #tpu.memory_space<vmem>>, vector<4x128xbf16>
    tpu.vector_store %arg33[%c1_179, %c0_180], %225 {strides = array<i32>} : memref<6x128xbf16, #tpu.memory_space<vmem>>, vector<4x128xbf16>,
    %c0_181 = arith.constant 0 : index
    %c0_182 = arith.constant 0 : index
    %227 = vector.load %arg33[%c0_181, %c0_182] : memref<6x128xbf16, #tpu.memory_space<vmem>>, vector<4x128xbf16>
    %c0_183 = arith.constant 0 : index
    %c0_184 = arith.constant 0 : index
    %228 = vector.load %arg18[%c0_183, %c0_184] : memref<384x128xbf16, #tpu.memory_space<vmem>>, vector<128x128xbf16>
    %cst_185 = arith.constant dense<0.000000e+00> : vector<4x128xf32>
    %229 = tpu.matmul %227, %228, %cst_185 {dimension_numbers = #tpu.dot_dimension_numbers<[1], [0], [0], [1], [0, 0, 1, 1], [], []>} : vector<4x128xbf16>, vector<128x128xbf16>, vector<4x128xf32> -> vector<4x128xf32>
    %c1_186 = arith.constant 1 : index
    %c0_187 = arith.constant 0 : index
    %230 = vector.load %arg33[%c1_186, %c0_187] : memref<6x128xbf16, #tpu.memory_space<vmem>>, vector<4x128xbf16>
    %c128_188 = arith.constant 128 : index
    %c0_189 = arith.constant 0 : index
    %231 = vector.load %arg18[%c128_188, %c0_189] : memref<384x128xbf16, #tpu.memory_space<vmem>>, vector<128x128xbf16>
    %cst_190 = arith.constant dense<0.000000e+00> : vector<4x128xf32>
    %232 = tpu.matmul %230, %231, %cst_190 {dimension_numbers = #tpu.dot_dimension_numbers<[1], [0], [0], [1], [0, 0, 1, 1], [], []>} : vector<4x128xbf16>, vector<128x128xbf16>, vector<4x128xf32> -> vector<4x128xf32>
    %233 = arith.addf %229, %232 : vector<4x128xf32>
    %c2_191 = arith.constant 2 : index
    %c0_192 = arith.constant 0 : index
    %234 = vector.load %arg33[%c2_191, %c0_192] : memref<6x128xbf16, #tpu.memory_space<vmem>>, vector<4x128xbf16>
    %c256 = arith.constant 256 : index
    %c0_193 = arith.constant 0 : index
    %235 = vector.load %arg18[%c256, %c0_193] : memref<384x128xbf16, #tpu.memory_space<vmem>>, vector<128x128xbf16>
    %cst_194 = arith.constant dense<0.000000e+00> : vector<4x128xf32>
    %236 = tpu.matmul %234, %235, %cst_194 {dimension_numbers = #tpu.dot_dimension_numbers<[1], [0], [0], [1], [0, 0, 1, 1], [], []>} : vector<4x128xbf16>, vector<128x128xbf16>, vector<4x128xf32> -> vector<4x128xf32>
    %237 = arith.addf %233, %236 : vector<4x128xf32>
    %c0_195 = arith.constant 0 : index
    %c0_196 = arith.constant 0 : index
    %238 = vector.load %arg19[%c0_195, %c0_196] : memref<1x128xf32, #tpu.memory_space<vmem>>, vector<1x128xf32>
    %239 = vector.broadcast %238 : vector<1x128xf32> to vector<4x128xf32>
    %240 = arith.addf %237, %239 : vector<4x128xf32>
    %241 = arith.addf %240, %222 : vector<4x128xf32>
    %cst_197 = arith.constant 0.000000e+00 : f32
    %242 = vector.broadcast %cst_197 : f32 to vector<4x128xf32>
    %243 = arith.maximumf %241, %242 : vector<4x128xf32>
    %cst_198 = arith.constant 0.000000e+00 : bf16
    %244 = vector.broadcast %cst_198 : bf16 to vector<6x128xbf16>
    %c0_199 = arith.constant 0 : index
    %c0_200 = arith.constant 0 : index
    %245 = vector.load %arg33[%c0_199, %c0_200] : memref<6x128xbf16, #tpu.memory_space<vmem>>, vector<6x128xbf16>
    tpu.vector_store %arg33[%c0_199, %c0_200], %244 {strides = array<i32>} : memref<6x128xbf16, #tpu.memory_space<vmem>>, vector<6x128xbf16>,
    %246 = arith.truncf %243 : vector<4x128xf32> to vector<4x128xbf16>
    %c1_201 = arith.constant 1 : index
    %c0_202 = arith.constant 0 : index
    %247 = vector.load %arg33[%c1_201, %c0_202] : memref<6x128xbf16, #tpu.memory_space<vmem>>, vector<4x128xbf16>
    tpu.vector_store %arg33[%c1_201, %c0_202], %246 {strides = array<i32>} : memref<6x128xbf16, #tpu.memory_space<vmem>>, vector<4x128xbf16>,
    %c0_203 = arith.constant 0 : index
    %c0_204 = arith.constant 0 : index
    %248 = vector.load %arg33[%c0_203, %c0_204] : memref<6x128xbf16, #tpu.memory_space<vmem>>, vector<4x128xbf16>
    %c0_205 = arith.constant 0 : index
    %c0_206 = arith.constant 0 : index
    %249 = vector.load %arg20[%c0_205, %c0_206] : memref<384x256xbf16, #tpu.memory_space<vmem>>, vector<128x256xbf16>
    %cst_207 = arith.constant dense<0.000000e+00> : vector<4x256xf32>
    %250 = tpu.matmul %248, %249, %cst_207 {dimension_numbers = #tpu.dot_dimension_numbers<[1], [0], [0], [1], [0, 0, 1, 1], [], []>} : vector<4x128xbf16>, vector<128x256xbf16>, vector<4x256xf32> -> vector<4x256xf32>
    %c1_208 = arith.constant 1 : index
    %c0_209 = arith.constant 0 : index
    %251 = vector.load %arg33[%c1_208, %c0_209] : memref<6x128xbf16, #tpu.memory_space<vmem>>, vector<4x128xbf16>
    %c128_210 = arith.constant 128 : index
    %c0_211 = arith.constant 0 : index
    %252 = vector.load %arg20[%c128_210, %c0_211] : memref<384x256xbf16, #tpu.memory_space<vmem>>, vector<128x256xbf16>
    %cst_212 = arith.constant dense<0.000000e+00> : vector<4x256xf32>
    %253 = tpu.matmul %251, %252, %cst_212 {dimension_numbers = #tpu.dot_dimension_numbers<[1], [0], [0], [1], [0, 0, 1, 1], [], []>} : vector<4x128xbf16>, vector<128x256xbf16>, vector<4x256xf32> -> vector<4x256xf32>
    %254 = arith.addf %250, %253 : vector<4x256xf32>
    %c2_213 = arith.constant 2 : index
    %c0_214 = arith.constant 0 : index
    %255 = vector.load %arg33[%c2_213, %c0_214] : memref<6x128xbf16, #tpu.memory_space<vmem>>, vector<4x128xbf16>
    %c256_215 = arith.constant 256 : index
    %c0_216 = arith.constant 0 : index
    %256 = vector.load %arg20[%c256_215, %c0_216] : memref<384x256xbf16, #tpu.memory_space<vmem>>, vector<128x256xbf16>
    %cst_217 = arith.constant dense<0.000000e+00> : vector<4x256xf32>
    %257 = tpu.matmul %255, %256, %cst_217 {dimension_numbers = #tpu.dot_dimension_numbers<[1], [0], [0], [1], [0, 0, 1, 1], [], []>} : vector<4x128xbf16>, vector<128x256xbf16>, vector<4x256xf32> -> vector<4x256xf32>
    %258 = arith.addf %254, %257 : vector<4x256xf32>
    %259 = tpu.iota {dimensions = array<i32: 1>} : vector<2x4xi32>
    %260 = tpu.iota {dimensions = array<i32: 0>} : vector<2x4xi32>
    %c2_i32_218 = arith.constant 2 : i32
    %261 = vector.broadcast %c2_i32_218 : i32 to vector<2x4xi32>
    %262 = arith.muli %260, %261 : vector<2x4xi32>
    %263 = arith.cmpi eq, %259, %262 : vector<2x4xi32>
    %264 = arith.extui %263 : vector<2x4xi1> to vector<2x4xi32>
    %265 = arith.sitofp %264 : vector<2x4xi32> to vector<2x4xf32>
    %cst_219 = arith.constant dense<0.000000e+00> : vector<2x256xf32>
    %266 = tpu.matmul %265, %258, %cst_219 {dimension_numbers = #tpu.dot_dimension_numbers<[1], [0], [0], [1], [0, 0, 1, 1], [], []>} : vector<2x4xf32>, vector<4x256xf32>, vector<2x256xf32> -> vector<2x256xf32>
    %c0_220 = arith.constant 0 : index
    %c0_221 = arith.constant 0 : index
    %267 = vector.load %arg21[%c0_220, %c0_221] : memref<1x256xf32, #tpu.memory_space<vmem>>, vector<1x256xf32>
    %268 = vector.broadcast %267 : vector<1x256xf32> to vector<2x256xf32>
    %269 = arith.addf %266, %268 : vector<2x256xf32>
    %cst_222 = arith.constant 0.000000e+00 : f32
    %270 = vector.broadcast %cst_222 : f32 to vector<2x256xf32>
    %271 = arith.maximumf %269, %270 : vector<2x256xf32>
    %272 = tpu.iota {dimensions = array<i32: 1>} : vector<2x4xi32>
    %273 = tpu.iota {dimensions = array<i32: 0>} : vector<2x4xi32>
    %c2_i32_223 = arith.constant 2 : i32
    %274 = vector.broadcast %c2_i32_223 : i32 to vector<2x4xi32>
    %275 = arith.muli %273, %274 : vector<2x4xi32>
    %276 = arith.cmpi eq, %272, %275 : vector<2x4xi32>
    %277 = arith.extui %276 : vector<2x4xi1> to vector<2x4xi32>
    %278 = arith.sitofp %277 : vector<2x4xi32> to vector<2x4xf32>
    %cst_224 = arith.constant dense<0.000000e+00> : vector<2x128xf32>
    %279 = tpu.matmul %278, %243, %cst_224 {dimension_numbers = #tpu.dot_dimension_numbers<[1], [0], [0], [1], [0, 0, 1, 1], [], []>} : vector<2x4xf32>, vector<4x128xf32>, vector<2x128xf32> -> vector<2x128xf32>
    %280 = arith.truncf %279 : vector<2x128xf32> to vector<2x128xbf16>
    %c0_225 = arith.constant 0 : index
    %c0_226 = arith.constant 0 : index
    %281 = vector.load %arg22[%c0_225, %c0_226] : memref<128x256xbf16, #tpu.memory_space<vmem>>, vector<128x256xbf16>
    %cst_227 = arith.constant dense<0.000000e+00> : vector<2x256xf32>
    %282 = tpu.matmul %280, %281, %cst_227 {dimension_numbers = #tpu.dot_dimension_numbers<[1], [0], [0], [1], [0, 0, 1, 1], [], []>} : vector<2x128xbf16>, vector<128x256xbf16>, vector<2x256xf32> -> vector<2x256xf32>
    %c0_228 = arith.constant 0 : index
    %c0_229 = arith.constant 0 : index
    %283 = vector.load %arg23[%c0_228, %c0_229] : memref<1x256xf32, #tpu.memory_space<vmem>>, vector<1x256xf32>
    %284 = vector.broadcast %283 : vector<1x256xf32> to vector<2x256xf32>
    %285 = arith.addf %282, %284 : vector<2x256xf32>
    %cst_230 = arith.constant 0.000000e+00 : bf16
    %286 = vector.broadcast %cst_230 : bf16 to vector<4x256xbf16>
    %c0_231 = arith.constant 0 : index
    %c0_232 = arith.constant 0 : index
    %287 = vector.load %arg34[%c0_231, %c0_232] : memref<4x256xbf16, #tpu.memory_space<vmem>>, vector<4x256xbf16>
    tpu.vector_store %arg34[%c0_231, %c0_232], %286 {strides = array<i32>} : memref<4x256xbf16, #tpu.memory_space<vmem>>, vector<4x256xbf16>,
    %288 = arith.truncf %271 : vector<2x256xf32> to vector<2x256xbf16>
    %c1_233 = arith.constant 1 : index
    %c0_234 = arith.constant 0 : index
    %289 = vector.load %arg34[%c1_233, %c0_234] : memref<4x256xbf16, #tpu.memory_space<vmem>>, vector<2x256xbf16>
    tpu.vector_store %arg34[%c1_233, %c0_234], %288 {strides = array<i32>} : memref<4x256xbf16, #tpu.memory_space<vmem>>, vector<2x256xbf16>,
    %c0_235 = arith.constant 0 : index
    %c0_236 = arith.constant 0 : index
    %290 = vector.load %arg34[%c0_235, %c0_236] : memref<4x256xbf16, #tpu.memory_space<vmem>>, vector<2x256xbf16>
    %c0_237 = arith.constant 0 : index
    %c0_238 = arith.constant 0 : index
    %291 = vector.load %arg24[%c0_237, %c0_238] : memref<768x256xbf16, #tpu.memory_space<vmem>>, vector<256x256xbf16>
    %cst_239 = arith.constant dense<0.000000e+00> : vector<2x256xf32>
    %292 = tpu.matmul %290, %291, %cst_239 {dimension_numbers = #tpu.dot_dimension_numbers<[1], [0], [0], [1], [0, 0, 1, 1], [], []>} : vector<2x256xbf16>, vector<256x256xbf16>, vector<2x256xf32> -> vector<2x256xf32>
    %c1_240 = arith.constant 1 : index
    %c0_241 = arith.constant 0 : index
    %293 = vector.load %arg34[%c1_240, %c0_241] : memref<4x256xbf16, #tpu.memory_space<vmem>>, vector<2x256xbf16>
    %c256_242 = arith.constant 256 : index
    %c0_243 = arith.constant 0 : index
    %294 = vector.load %arg24[%c256_242, %c0_243] : memref<768x256xbf16, #tpu.memory_space<vmem>>, vector<256x256xbf16>
    %cst_244 = arith.constant dense<0.000000e+00> : vector<2x256xf32>
    %295 = tpu.matmul %293, %294, %cst_244 {dimension_numbers = #tpu.dot_dimension_numbers<[1], [0], [0], [1], [0, 0, 1, 1], [], []>} : vector<2x256xbf16>, vector<256x256xbf16>, vector<2x256xf32> -> vector<2x256xf32>
    %296 = arith.addf %292, %295 : vector<2x256xf32>
    %c2_245 = arith.constant 2 : index
    %c0_246 = arith.constant 0 : index
    %297 = vector.load %arg34[%c2_245, %c0_246] : memref<4x256xbf16, #tpu.memory_space<vmem>>, vector<2x256xbf16>
    %c512 = arith.constant 512 : index
    %c0_247 = arith.constant 0 : index
    %298 = vector.load %arg24[%c512, %c0_247] : memref<768x256xbf16, #tpu.memory_space<vmem>>, vector<256x256xbf16>
    %cst_248 = arith.constant dense<0.000000e+00> : vector<2x256xf32>
    %299 = tpu.matmul %297, %298, %cst_248 {dimension_numbers = #tpu.dot_dimension_numbers<[1], [0], [0], [1], [0, 0, 1, 1], [], []>} : vector<2x256xbf16>, vector<256x256xbf16>, vector<2x256xf32> -> vector<2x256xf32>
    %300 = arith.addf %296, %299 : vector<2x256xf32>
    %c0_249 = arith.constant 0 : index
    %c0_250 = arith.constant 0 : index
    %301 = vector.load %arg25[%c0_249, %c0_250] : memref<1x256xf32, #tpu.memory_space<vmem>>, vector<1x256xf32>
    %302 = vector.broadcast %301 : vector<1x256xf32> to vector<2x256xf32>
    %303 = arith.addf %300, %302 : vector<2x256xf32>
    %304 = arith.addf %303, %285 : vector<2x256xf32>
    %cst_251 = arith.constant 0.000000e+00 : f32
    %305 = vector.broadcast %cst_251 : f32 to vector<2x256xf32>
    %306 = arith.maximumf %304, %305 : vector<2x256xf32>
    %cst_252 = arith.constant dense<0.000000e+00> : vector<256xf32>
    %307 = vector.multi_reduction <add>, %306, %cst_252 [0] : vector<2x256xf32> to vector<256xf32>
    %308 = vector.shape_cast %307 : vector<256xf32> to vector<1x256xf32>
    %cst_253 = arith.constant 2.000000e+00 : f32
    %309 = vector.broadcast %cst_253 : f32 to vector<1x256xf32>
    %310 = arith.divf %308, %309 : vector<1x256xf32>
    %311 = arith.truncf %310 : vector<1x256xf32> to vector<1x256xbf16>
    %c0_254 = arith.constant 0 : index
    %c0_255 = arith.constant 0 : index
    %312 = vector.load %arg26[%c0_254, %c0_255] : memref<256x4xbf16, #tpu.memory_space<vmem>>, vector<256x4xbf16>
    %cst_256 = arith.constant dense<0.000000e+00> : vector<1x4xf32>
    %313 = tpu.matmul %311, %312, %cst_256 {dimension_numbers = #tpu.dot_dimension_numbers<[1], [0], [0], [1], [0, 0, 1, 1], [], []>} : vector<1x256xbf16>, vector<256x4xbf16>, vector<1x4xf32> -> vector<1x4xf32>
    %c0_257 = arith.constant 0 : index
    %c0_258 = arith.constant 0 : index
    %314 = vector.load %arg27[%c0_257, %c0_258] : memref<1x4xf32, #tpu.memory_space<vmem>>, vector<1x4xf32>
    %315 = arith.addf %313, %314 : vector<1x4xf32>
    %c0_259 = arith.constant 0 : index
    %c0_260 = arith.constant 0 : index
    %c0_261 = arith.constant 0 : index
    %316 = vector.load %arg28[%c0_259, %c0_260, %c0_261] : memref<1x1x4xf32, #tpu.memory_space<vmem>>, vector<1x1x4xf32>
    %317 = vector.shape_cast %316 : vector<1x1x4xf32> to vector<1x4xf32>
    %318 = vector.shape_cast %315 : vector<1x4xf32> to vector<1x1x4xf32>
    tpu.vector_store %arg28[%c0_259, %c0_260, %c0_261], %318 {strides = array<i32>} : memref<1x1x4xf32, #tpu.memory_space<vmem>>, vector<1x1x4xf32>,
    return
  }
  func.func @transform_0(%arg0: i32) -> (i32, i32, i32) {
    %c0_i32 = arith.constant 0 : i32
    %c0_i32_0 = arith.constant 0 : i32
    %c0_i32_1 = arith.constant 0 : i32
    return %arg0, %c0_i32, %c0_i32_0 : i32, i32, i32
  }
  func.func @transform_1(%arg0: i32) -> (i32, i32) {
    %c0_i32 = arith.constant 0 : i32
    %c0_i32_0 = arith.constant 0 : i32
    %c0_i32_1 = arith.constant 0 : i32
    return %c0_i32, %c0_i32_0 : i32, i32
  }
  func.func @transform_2(%arg0: i32) -> (i32, i32) {
    %c0_i32 = arith.constant 0 : i32
    %c0_i32_0 = arith.constant 0 : i32
    %c0_i32_1 = arith.constant 0 : i32
    return %c0_i32, %c0_i32_0 : i32, i32
  }
  func.func @transform_3(%arg0: i32) -> (i32, i32) {
    %c0_i32 = arith.constant 0 : i32
    %c0_i32_0 = arith.constant 0 : i32
    %c0_i32_1 = arith.constant 0 : i32
    return %c0_i32, %c0_i32_0 : i32, i32
  }
  func.func @transform_4(%arg0: i32) -> (i32, i32) {
    %c0_i32 = arith.constant 0 : i32
    %c0_i32_0 = arith.constant 0 : i32
    %c0_i32_1 = arith.constant 0 : i32
    return %c0_i32, %c0_i32_0 : i32, i32
  }
  func.func @transform_5(%arg0: i32) -> (i32, i32) {
    %c0_i32 = arith.constant 0 : i32
    %c0_i32_0 = arith.constant 0 : i32
    %c0_i32_1 = arith.constant 0 : i32
    return %c0_i32, %c0_i32_0 : i32, i32
  }
  func.func @transform_6(%arg0: i32) -> (i32, i32) {
    %c0_i32 = arith.constant 0 : i32
    %c0_i32_0 = arith.constant 0 : i32
    %c0_i32_1 = arith.constant 0 : i32
    return %c0_i32, %c0_i32_0 : i32, i32
  }
  func.func @transform_7(%arg0: i32) -> (i32, i32) {
    %c0_i32 = arith.constant 0 : i32
    %c0_i32_0 = arith.constant 0 : i32
    %c0_i32_1 = arith.constant 0 : i32
    return %c0_i32, %c0_i32_0 : i32, i32
  }
  func.func @transform_8(%arg0: i32) -> (i32, i32) {
    %c0_i32 = arith.constant 0 : i32
    %c0_i32_0 = arith.constant 0 : i32
    %c0_i32_1 = arith.constant 0 : i32
    return %c0_i32, %c0_i32_0 : i32, i32
  }
  func.func @transform_9(%arg0: i32) -> (i32, i32) {
    %c0_i32 = arith.constant 0 : i32
    %c0_i32_0 = arith.constant 0 : i32
    %c0_i32_1 = arith.constant 0 : i32
    return %c0_i32, %c0_i32_0 : i32, i32
  }
  func.func @transform_10(%arg0: i32) -> (i32, i32) {
    %c0_i32 = arith.constant 0 : i32
    %c0_i32_0 = arith.constant 0 : i32
    %c0_i32_1 = arith.constant 0 : i32
    return %c0_i32, %c0_i32_0 : i32, i32
  }
  func.func @transform_11(%arg0: i32) -> (i32, i32) {
    %c0_i32 = arith.constant 0 : i32
    %c0_i32_0 = arith.constant 0 : i32
    %c0_i32_1 = arith.constant 0 : i32
    return %c0_i32, %c0_i32_0 : i32, i32
  }
  func.func @transform_12(%arg0: i32) -> (i32, i32) {
    %c0_i32 = arith.constant 0 : i32
    %c0_i32_0 = arith.constant 0 : i32
    %c0_i32_1 = arith.constant 0 : i32
    return %c0_i32, %c0_i32_0 : i32, i32
  }
  func.func @transform_13(%arg0: i32) -> (i32, i32) {
    %c0_i32 = arith.constant 0 : i32
    %c0_i32_0 = arith.constant 0 : i32
    %c0_i32_1 = arith.constant 0 : i32
    return %c0_i32, %c0_i32_0 : i32, i32
  }
  func.func @transform_14(%arg0: i32) -> (i32, i32) {
    %c0_i32 = arith.constant 0 : i32
    %c0_i32_0 = arith.constant 0 : i32
    %c0_i32_1 = arith.constant 0 : i32
    return %c0_i32, %c0_i32_0 : i32, i32
  }
  func.func @transform_15(%arg0: i32) -> (i32, i32) {
    %c0_i32 = arith.constant 0 : i32
    %c0_i32_0 = arith.constant 0 : i32
    %c0_i32_1 = arith.constant 0 : i32
    return %c0_i32, %c0_i32_0 : i32, i32
  }
  func.func @transform_16(%arg0: i32) -> (i32, i32) {
    %c0_i32 = arith.constant 0 : i32
    %c0_i32_0 = arith.constant 0 : i32
    %c0_i32_1 = arith.constant 0 : i32
    return %c0_i32, %c0_i32_0 : i32, i32
  }
  func.func @transform_17(%arg0: i32) -> (i32, i32) {
    %c0_i32 = arith.constant 0 : i32
    %c0_i32_0 = arith.constant 0 : i32
    %c0_i32_1 = arith.constant 0 : i32
    return %c0_i32, %c0_i32_0 : i32, i32
  }
  func.func @transform_18(%arg0: i32) -> (i32, i32) {
    %c0_i32 = arith.constant 0 : i32
    %c0_i32_0 = arith.constant 0 : i32
    %c0_i32_1 = arith.constant 0 : i32
    return %c0_i32, %c0_i32_0 : i32, i32
  }
  func.func @transform_19(%arg0: i32) -> (i32, i32) {
    %c0_i32 = arith.constant 0 : i32
    %c0_i32_0 = arith.constant 0 : i32
    %c0_i32_1 = arith.constant 0 : i32
    return %c0_i32, %c0_i32_0 : i32, i32
  }
  func.func @transform_20(%arg0: i32) -> (i32, i32) {
    %c0_i32 = arith.constant 0 : i32
    %c0_i32_0 = arith.constant 0 : i32
    %c0_i32_1 = arith.constant 0 : i32
    return %c0_i32, %c0_i32_0 : i32, i32
  }
  func.func @transform_21(%arg0: i32) -> (i32, i32) {
    %c0_i32 = arith.constant 0 : i32
    %c0_i32_0 = arith.constant 0 : i32
    %c0_i32_1 = arith.constant 0 : i32
    return %c0_i32, %c0_i32_0 : i32, i32
  }
  func.func @transform_22(%arg0: i32) -> (i32, i32) {
    %c0_i32 = arith.constant 0 : i32
    %c0_i32_0 = arith.constant 0 : i32
    %c0_i32_1 = arith.constant 0 : i32
    return %c0_i32, %c0_i32_0 : i32, i32
  }
  func.func @transform_23(%arg0: i32) -> (i32, i32) {
    %c0_i32 = arith.constant 0 : i32
    %c0_i32_0 = arith.constant 0 : i32
    %c0_i32_1 = arith.constant 0 : i32
    return %c0_i32, %c0_i32_0 : i32, i32
  }
  func.func @transform_24(%arg0: i32) -> (i32, i32) {
    %c0_i32 = arith.constant 0 : i32
    %c0_i32_0 = arith.constant 0 : i32
    %c0_i32_1 = arith.constant 0 : i32
    return %c0_i32, %c0_i32_0 : i32, i32
  }
  func.func @transform_25(%arg0: i32) -> (i32, i32) {
    %c0_i32 = arith.constant 0 : i32
    %c0_i32_0 = arith.constant 0 : i32
    %c0_i32_1 = arith.constant 0 : i32
    return %c0_i32, %c0_i32_0 : i32, i32
  }
  func.func @transform_26(%arg0: i32) -> (i32, i32) {
    %c0_i32 = arith.constant 0 : i32
    %c0_i32_0 = arith.constant 0 : i32
    %c0_i32_1 = arith.constant 0 : i32
    return %c0_i32, %c0_i32_0 : i32, i32
  }
  func.func @transform_27(%arg0: i32) -> (i32, i32, i32) {
    %c0_i32 = arith.constant 0 : i32
    %c0_i32_0 = arith.constant 0 : i32
    %c0_i32_1 = arith.constant 0 : i32
    return %arg0, %c0_i32, %c0_i32_0 : i32, i32, i32
  }
}

</mosaic_0001>

<llo_original>
// kernel: resnet1d_forward.1
$region0: #{resnet1d_forward.1}
  #allocation0 [shape = 'u32[]', space=smem, size = 0x4, offset = 0x4, fixed_abs, tag = 'smem constant byte address 0x4 - core index']
  #allocation1 [shape = 'u32[144,128]{1,0:T(1,128)}', space=vmem, size = 0x12000, scoped, tag = 'internal scratch']
  #allocation2 [shape = 'f32[70,1]{1,0:T(8,128)}', space=vmem, size = 0x9000, scoped, tag = 'scratch operand']
  #allocation3 [shape = 'f32[34,32]{1,0:T(8,128)}', space=vmem, size = 0x5000, scoped, tag = 'scratch operand']
  #allocation4 [shape = 'bf16[18,32]{1,0:T(8,128)(2,1)}', space=vmem, size = 0x1800, scoped, tag = 'scratch operand']
  #allocation5 [shape = 'bf16[10,64]{1,0:T(8,128)(2,1)}', space=vmem, size = 0x1000, scoped, tag = 'scratch operand']
  #allocation6 [shape = 'bf16[6,128]{1,0:T(8,128)(2,1)}', space=vmem, size = 0x800, scoped, tag = 'scratch operand']
  #allocation7 [shape = 'bf16[4,256]{1,0:T(4,128)(2,1)}', space=vmem, size = 0x800, scoped, tag = 'scratch operand']
  %s0 = inlined_call_operand.vmem [shape: f32[2,64,1], index: 0, kind: input, shape index: {}]
  %s1 = inlined_call_operand.vmem [shape: f32[7,32], index: 1, kind: input, shape index: {}]
  %s2 = inlined_call_operand.vmem [shape: f32[1,32], index: 2, kind: input, shape index: {}]
  %s3 = inlined_call_operand.vmem [shape: bf16[96,32], index: 3, kind: input, shape index: {}]
  %s4 = inlined_call_operand.hbm [shape: f32[1,32], index: 4, kind: input, shape index: {}]
  %s5 = inlined_call_operand.vmem [shape: bf16[96,32], index: 5, kind: input, shape index: {}]
  %s6 = inlined_call_operand.hbm [shape: f32[1,32], index: 6, kind: input, shape index: {}]
  %s7 = inlined_call_operand.vmem [shape: bf16[96,64], index: 7, kind: input, shape index: {}]
  %s8 = inlined_call_operand.hbm [shape: f32[1,64], index: 8, kind: input, shape index: {}]
  %s9 = inlined_call_operand.hbm [shape: bf16[32,64], index: 9, kind: input, shape index: {}]
  %s10 = inlined_call_operand.hbm [shape: f32[1,64], index: 10, kind: input, shape index: {}]
  %s11 = inlined_call_operand.vmem [shape: bf16[192,64], index: 11, kind: input, shape index: {}]
  %s12 = inlined_call_operand.hbm [shape: f32[1,64], index: 12, kind: input, shape index: {}]
  %s13 = inlined_call_operand.hbm [shape: bf16[192,128], index: 13, kind: input, shape index: {}]
  %s14 = inlined_call_operand.hbm [shape: f32[1,128], index: 14, kind: input, shape index: {}]
  %s15 = inlined_call_operand.hbm [shape: bf16[64,128], index: 15, kind: input, shape index: {}]
  %s16 = inlined_call_operand.hbm [shape: f32[1,128], index: 16, kind: input, shape index: {}]
  %s17 = inlined_call_operand.vmem [shape: bf16[384,128], index: 17, kind: input, shape index: {}]
  %s18 = inlined_call_operand.hbm [shape: f32[1,128], index: 18, kind: input, shape index: {}]
  %s19 = inlined_call_operand.vmem [shape: bf16[384,256], index: 19, kind: input, shape index: {}]
  %s20 = inlined_call_operand.hbm [shape: f32[1,256], index: 20, kind: input, shape index: {}]
  %s21 = inlined_call_operand.vmem [shape: bf16[128,256], index: 21, kind: input, shape index: {}]
  %s22 = inlined_call_operand.hbm [shape: f32[1,256], index: 22, kind: input, shape index: {}]
  %s23 = inlined_call_operand.hbm [shape: bf16[768,256], index: 23, kind: input, shape index: {}]
  %s24 = inlined_call_operand.hbm [shape: f32[1,256], index: 24, kind: input, shape index: {}]
  %s25 = inlined_call_operand.vmem [shape: bf16[256,4], index: 25, kind: input, shape index: {}]
  %s26 = inlined_call_operand.hbm [shape: f32[1,4], index: 26, kind: input, shape index: {}]
  %s27 = inlined_call_operand.hbm [shape: f32[2,1,4], index: 27, kind: output, shape index: {}]
  %s28 = sld [smem:[#allocation0]]
  $region205: #{resnet1d_forward.1} parent=0
    _
  %s30 = ssub.s32 1, %s28
  %s31 = scalar_select 0, %s30, %s28
  $region1: #{resnet1d_forward.1} parent=0
    #allocation8 [shape = 'u8[512]{0}', space=vmem, size = 0x400, scoped, tag = 'input window, operand 4, single buffered']
    #allocation9 [shape = 's32[2]{0}', space=sflag, size = 0x8, scoped, tag = 'scoped memory for resnet1d_forward.1']
    #allocation10 [shape = 's32[2]{0}', space=sflag, size = 0x8, scoped, tag = 'scoped memory for resnet1d_forward.1']
    #allocation11 [shape = 'u8[512]{0}', space=vmem, size = 0x400, scoped, tag = 'input window, operand 6, single buffered']
    #allocation12 [shape = 's32[1]{0}', space=sflag, size = 0x4, scoped, tag = 'scoped memory for resnet1d_forward.1']
    #allocation13 [shape = 'u8[512]{0}', space=vmem, size = 0x400, scoped, tag = 'input window, operand 8, single buffered']
    #allocation14 [shape = 'u8[8192]{0}', space=vmem, size = 0x2000, scoped, tag = 'input window, operand 9, single buffered']
    #allocation15 [shape = 's32[1]{0}', space=sflag, size = 0x4, scoped, tag = 'scoped memory for resnet1d_forward.1']
    #allocation16 [shape = 'u8[512]{0}', space=vmem, size = 0x400, scoped, tag = 'input window, operand 10, single buffered']
    #allocation17 [shape = 'u8[512]{0}', space=vmem, size = 0x400, scoped, tag = 'input window, operand 12, single buffered']
    #allocation18 [shape = 's32[1]{0}', space=sflag, size = 0x4, scoped, tag = 'scoped memory for resnet1d_forward.1']
    #allocation19 [shape = 'u8[49152]{0}', space=vmem, size = 0xc000, scoped, tag = 'input window, operand 13, single buffered']
    #allocation20 [shape = 'u8[512]{0}', space=vmem, size = 0x400, scoped, tag = 'input window, operand 14, single buffered']
    #allocation21 [shape = 's32[1]{0}', space=sflag, size = 0x4, scoped, tag = 'scoped memory for resnet1d_forward.1']
    #allocation22 [shape = 'u8[16384]{0}', space=vmem, size = 0x4000, scoped, tag = 'input window, operand 15, single buffered']
    #allocation23 [shape = 'u8[512]{0}', space=vmem, size = 0x400, scoped, tag = 'input window, operand 16, single buffered']
    #allocation24 [shape = 's32[1]{0}', space=sflag, size = 0x4, scoped, tag = 'scoped memory for resnet1d_forward.1']
    #allocation25 [shape = 'u8[512]{0}', space=vmem, size = 0x400, scoped, tag = 'input window, operand 18, single buffered']
    #allocation26 [shape = 'u8[1024]{0}', space=vmem, size = 0x400, scoped, tag = 'input window, operand 20, single buffered']
    #allocation27 [shape = 's32[1]{0}', space=sflag, size = 0x4, scoped, tag = 'scoped memory for resnet1d_forward.1']
    #allocation28 [shape = 'u8[1024]{0}', space=vmem, size = 0x400, scoped, tag = 'input window, operand 22, single buffered']
    #allocation29 [shape = 'u8[393216]{0}', space=vmem, size = 0x60000, scoped, tag = 'input window, operand 23, single buffered']
    #allocation30 [shape = 's32[1]{0}', space=sflag, size = 0x4, scoped, tag = 'scoped memory for resnet1d_forward.1']
    #allocation31 [shape = 'u8[1024]{0}', space=vmem, size = 0x400, scoped, tag = 'input window, operand 24, single buffered']
    #allocation32 [shape = 'u8[512]{0}', space=vmem, size = 0x400, scoped, tag = 'input window, operand 26, single buffered']
    #allocation33 [shape = 's32[1]{0}', space=sflag, size = 0x4, scoped, tag = 'scoped memory for resnet1d_forward.1']
    #allocation34 [shape = 'u8[1024]{0}', space=vmem, size = 0x400, scoped, tag = 'output window, operand 0']
    %32 = vsyncpa [#allocation9], 0
    %33 = vsyncpa [#allocation12], 0
    %34 = vsyncpa [#allocation15], 0
    %35 = vsyncpa [#allocation18], 0
    %36 = vsyncpa [#allocation21], 0
    %37 = vsyncpa [#allocation24], 0
    %38 = vsyncpa [#allocation27], 0
    %39 = vsyncpa [#allocation30], 0
    %40 = vsyncpa [#allocation33], 0
    %41 = vsyncpa [#allocation10], 0
    %s42 = scalar_lea.sflag [#allocation10], 1
    %43 = vsyncpa %s42, 0
    loop: start=0, step=1, limit=4
    $region2: #{resnet1d_forward.1} parent=1 // loop_pre_header
      _
    $region3: #{resnet1d_forward.1} parent=1 // loop_header
      %s45 = sphi 0, %s49
      %p46 = scmp.ge.s32.totalorder %s45, 4
      %s55 = sphi 0, %s57
      %s58 = sphi 0, %s55
      %s59 = sphi 0, %s58
      %s75 = sphi 0, %s59
      %s79 = sphi 0, %s79
      %s81 = sphi 0, %s79
      %s82 = sphi 0, %s81
      %s96 = sphi 0, %s82
      %s100 = sphi 0, %s100
      %s102 = sphi 0, %s100
      %s103 = sphi 0, %s102
      %s117 = sphi 0, %s103
      %s121 = sphi 0, %s121
      %s123 = sphi 0, %s121
      %s124 = sphi 0, %s123
      %s138 = sphi 0, %s124
      %s142 = sphi 0, %s142
      %s144 = sphi 0, %s142
      %s145 = sphi 0, %s144
      %s159 = sphi 0, %s145
      %s163 = sphi 0, %s163
      %s165 = sphi 0, %s163
      %s166 = sphi 0, %s165
      %s180 = sphi 0, %s166
      %s184 = sphi 0, %s184
      %s186 = sphi 0, %s184
      %s187 = sphi 0, %s186
      %s201 = sphi 0, %s187
      %s205 = sphi 0, %s205
      %s207 = sphi 0, %s205
      %s208 = sphi 0, %s207
      %s222 = sphi 0, %s208
      %s226 = sphi 0, %s226
      %s228 = sphi 0, %s226
      %s229 = sphi 0, %s228
      %s243 = sphi 0, %s229
      %s247 = sphi 0, %s247
      %s249 = sphi 0, %s247
      %s250 = sphi 0, %s249
      %s264 = sphi 0, %s250
      %s268 = sphi 0, %s268
      %s270 = sphi 0, %s268
      %s271 = sphi 0, %s270
      %s285 = sphi 0, %s271
      %s289 = sphi 0, %s289
      %s291 = sphi 0, %s289
      %s292 = sphi 0, %s291
      %s306 = sphi 0, %s292
      %s310 = sphi 0, %s310
      %s312 = sphi 0, %s310
      %s313 = sphi 0, %s312
      %s327 = sphi 0, %s313
      %s331 = sphi 0, %s331
      %s333 = sphi 0, %s331
      %s334 = sphi 0, %s333
      %s348 = sphi 0, %s334
      %s352 = sphi 0, %s352
      %s354 = sphi 0, %s352
      %s355 = sphi 0, %s354
      %s369 = sphi 0, %s355
      %s373 = sphi 0, %s373
      %s375 = sphi 0, %s373
      %s376 = sphi 0, %s375
      %s390 = sphi 0, %s376
      %s394 = sphi 0, %s394
      %s396 = sphi 0, %s394
      %s397 = sphi 0, %s396
      %s411 = sphi 0, %s397
      %s415 = sphi 0, %s415
      %s417 = sphi 0, %s415
      %s418 = sphi 0, %s417
      %s432 = sphi 0, %s418
      %s436 = sphi 0, %s436
      %s438 = sphi 0, %s436
      %s439 = sphi 0, %s438
      %s453 = sphi 0, %s439
      %s457 = sphi 0, %s457
      %s459 = sphi 0, %s457
      %s460 = sphi 0, %s459
      %s474 = sphi 0, %s460
      %s478 = sphi 0, %s478
      %s480 = sphi 0, %s478
      %s481 = sphi 0, %s480
      %s495 = sphi 0, %s481
      %s499 = sphi 0, %s499
      %s501 = sphi 0, %s499
      %s502 = sphi 0, %s501
      %s516 = sphi 0, %s502
      %s520 = sphi 0, %s520
      %s522 = sphi 0, %s520
      %s523 = sphi 0, %s522
      %s537 = sphi 0, %s523
      %s541 = sphi 0, %s541
      %s543 = sphi 0, %s541
      %s544 = sphi 0, %s543
      %s558 = sphi 0, %s544
      %s562 = sphi 0, %s562
      %s564 = sphi 0, %s562
      %s565 = sphi 0, %s564
      %s579 = sphi 0, %s565
      %s583 = sphi 0, %s583
      %s585 = sphi 0, %s583
      %s586 = sphi 0, %s585
      %s600 = sphi 0, %s586
      %s604 = sphi 0, %s604
      %s606 = sphi 0, %s604
      %s607 = sphi 0, %s606
      %s621 = sphi 0, %s607
      %s627 = sphi 0, %s629
      %s630 = sphi 0, %s627
      %s631 = sphi 0, %s630
      %s647 = sphi 0, %s631
    $region4: #{resnet1d_forward.1} parent=1 // loop_header_branch
      %48 = sbr.rel (%p46) target = $region8
    $region5: #{resnet1d_forward.1} parent=1 // loop_body
      %s50 = ssub.s32 %s45, 1
      %s51 = ssub.s32 %s45, 2
      %s52 = sadd.s32 %s45, 1
      %s53 = ssub.s32 %s45, %s52
      %p54 = scmp.eq.s32.totalorder %s53, 0
      %s56 = sadd.s32 %s55, 1
      %s57 = scalar_select %p54, %s55, %s56
      %p60 = pneg %p54
      %p61 = scmp.eq.s32.totalorder %s45, 1
      %p62 = por %p60, %p61
      %p63 = scmp.ne.s32.totalorder %s55, %s58
      %p64 = scmp.eq.s32.totalorder %s45, 0
      %p65 = por %p63, %p64
      %p66 = scmp.ne.s32.totalorder %s55, %s58
      %p67 = scmp.eq.s32.totalorder %s50, 1
      %p68 = por %p66, %p67
      %p69 = scmp.ne.s32.totalorder %s58, %s59
      %p70 = scmp.eq.s32.totalorder %s50, 0
      %p71 = por %p69, %p70
      %p72 = scmp.ne.s32.totalorder %s58, %s59
      %p73 = scmp.eq.s32.totalorder %s51, 1
      %p74 = por %p72, %p73
      %p76 = scmp.ne.s32.totalorder %s59, %s75
      %p77 = scmp.eq.s32.totalorder %s51, 0
      %p78 = por %p76, %p77
      %s80 = sadd.s32 %s79, 1
      %p83 = scmp.eq.s32.totalorder %s45, 1
      %p84 = scmp.ne.s32.totalorder %s79, %s81
      %p85 = scmp.eq.s32.totalorder %s45, 0
      %p86 = por %p84, %p85
      %p87 = scmp.ne.s32.totalorder %s79, %s81
      %p88 = scmp.eq.s32.totalorder %s50, 1
      %p89 = por %p87, %p88
      %p90 = scmp.ne.s32.totalorder %s81, %s82
      %p91 = scmp.eq.s32.totalorder %s50, 0
      %p92 = por %p90, %p91
      %p93 = scmp.ne.s32.totalorder %s81, %s82
      %p94 = scmp.eq.s32.totalorder %s51, 1
      %p95 = por %p93, %p94
      %p97 = scmp.ne.s32.totalorder %s82, %s96
      %p98 = scmp.eq.s32.totalorder %s51, 0
      %p99 = por %p97, %p98
      %s101 = sadd.s32 %s100, 1
      %p104 = scmp.eq.s32.totalorder %s45, 1
      %p105 = scmp.ne.s32.totalorder %s100, %s102
      %p106 = scmp.eq.s32.totalorder %s45, 0
      %p107 = por %p105, %p106
      %p108 = scmp.ne.s32.totalorder %s100, %s102
      %p109 = scmp.eq.s32.totalorder %s50, 1
      %p110 = por %p108, %p109
      %p111 = scmp.ne.s32.totalorder %s102, %s103
      %p112 = scmp.eq.s32.totalorder %s50, 0
      %p113 = por %p111, %p112
      %p114 = scmp.ne.s32.totalorder %s102, %s103
      %p115 = scmp.eq.s32.totalorder %s51, 1
      %p116 = por %p114, %p115
      %p118 = scmp.ne.s32.totalorder %s103, %s117
      %p119 = scmp.eq.s32.totalorder %s51, 0
      %p120 = por %p118, %p119
      %s122 = sadd.s32 %s121, 1
      %p125 = scmp.eq.s32.totalorder %s45, 1
      %p126 = scmp.ne.s32.totalorder %s121, %s123
      %p127 = scmp.eq.s32.totalorder %s45, 0
      %p128 = por %p126, %p127
      %p129 = scmp.ne.s32.totalorder %s121, %s123
      %p130 = scmp.eq.s32.totalorder %s50, 1
      %p131 = por %p129, %p130
      %p132 = scmp.ne.s32.totalorder %s123, %s124
      %p133 = scmp.eq.s32.totalorder %s50, 0
      %p134 = por %p132, %p133
      %p135 = scmp.ne.s32.totalorder %s123, %s124
      %p136 = scmp.eq.s32.totalorder %s51, 1
      %p137 = por %p135, %p136
      %p139 = scmp.ne.s32.totalorder %s124, %s138
      %p140 = scmp.eq.s32.totalorder %s51, 0
      %p141 = por %p139, %p140
      %s143 = sadd.s32 %s142, 1
      %p146 = scmp.eq.s32.totalorder %s45, 1
      %p147 = scmp.ne.s32.totalorder %s142, %s144
      %p148 = scmp.eq.s32.totalorder %s45, 0
      %p149 = por %p147, %p148
      %p150 = scmp.ne.s32.totalorder %s142, %s144
      %p151 = scmp.eq.s32.totalorder %s50, 1
      %p152 = por %p150, %p151
      %p153 = scmp.ne.s32.totalorder %s144, %s145
      %p154 = scmp.eq.s32.totalorder %s50, 0
      %p155 = por %p153, %p154
      %p156 = scmp.ne.s32.totalorder %s144, %s145
      %p157 = scmp.eq.s32.totalorder %s51, 1
      %p158 = por %p156, %p157
      %p160 = scmp.ne.s32.totalorder %s145, %s159
      %p161 = scmp.eq.s32.totalorder %s51, 0
      %p162 = por %p160, %p161
      %s164 = sadd.s32 %s163, 1
      %p167 = scmp.eq.s32.totalorder %s45, 1
      %p168 = scmp.ne.s32.totalorder %s163, %s165
      %p169 = scmp.eq.s32.totalorder %s45, 0
      %p170 = por %p168, %p169
      %p171 = scmp.ne.s32.totalorder %s163, %s165
      %p172 = scmp.eq.s32.totalorder %s50, 1
      %p173 = por %p171, %p172
      %p174 = scmp.ne.s32.totalorder %s165, %s166
      %p175 = scmp.eq.s32.totalorder %s50, 0
      %p176 = por %p174, %p175
      %p177 = scmp.ne.s32.totalorder %s165, %s166
      %p178 = scmp.eq.s32.totalorder %s51, 1
      %p179 = por %p177, %p178
      %p181 = scmp.ne.s32.totalorder %s166, %s180
      %p182 = scmp.eq.s32.totalorder %s51, 0
      %p183 = por %p181, %p182
      %s185 = sadd.s32 %s184, 1
      %p188 = scmp.eq.s32.totalorder %s45, 1
      %p189 = scmp.ne.s32.totalorder %s184, %s186
      %p190 = scmp.eq.s32.totalorder %s45, 0
      %p191 = por %p189, %p190
      %p192 = scmp.ne.s32.totalorder %s184, %s186
      %p193 = scmp.eq.s32.totalorder %s50, 1
      %p194 = por %p192, %p193
      %p195 = scmp.ne.s32.totalorder %s186, %s187
      %p196 = scmp.eq.s32.totalorder %s50, 0
      %p197 = por %p195, %p196
      %p198 = scmp.ne.s32.totalorder %s186, %s187
      %p199 = scmp.eq.s32.totalorder %s51, 1
      %p200 = por %p198, %p199
      %p202 = scmp.ne.s32.totalorder %s187, %s201
      %p203 = scmp.eq.s32.totalorder %s51, 0
      %p204 = por %p202, %p203
      %s206 = sadd.s32 %s205, 1
      %p209 = scmp.eq.s32.totalorder %s45, 1
      %p210 = scmp.ne.s32.totalorder %s205, %s207
      %p211 = scmp.eq.s32.totalorder %s45, 0
      %p212 = por %p210, %p211
      %p213 = scmp.ne.s32.totalorder %s205, %s207
      %p214 = scmp.eq.s32.totalorder %s50, 1
      %p215 = por %p213, %p214
      %p216 = scmp.ne.s32.totalorder %s207, %s208
      %p217 = scmp.eq.s32.totalorder %s50, 0
      %p218 = por %p216, %p217
      %p219 = scmp.ne.s32.totalorder %s207, %s208
      %p220 = scmp.eq.s32.totalorder %s51, 1
      %p221 = por %p219, %p220
      %p223 = scmp.ne.s32.totalorder %s208, %s222
      %p224 = scmp.eq.s32.totalorder %s51, 0
      %p225 = por %p223, %p224
      %s227 = sadd.s32 %s226, 1
      %p230 = scmp.eq.s32.totalorder %s45, 1
      %p231 = scmp.ne.s32.totalorder %s226, %s228
      %p232 = scmp.eq.s32.totalorder %s45, 0
      %p233 = por %p231, %p232
      %p234 = scmp.ne.s32.totalorder %s226, %s228
      %p235 = scmp.eq.s32.totalorder %s50, 1
      %p236 = por %p234, %p235
      %p237 = scmp.ne.s32.totalorder %s228, %s229
      %p238 = scmp.eq.s32.totalorder %s50, 0
      %p239 = por %p237, %p238
      %p240 = scmp.ne.s32.totalorder %s228, %s229
      %p241 = scmp.eq.s32.totalorder %s51, 1
      %p242 = por %p240, %p241
      %p244 = scmp.ne.s32.totalorder %s229, %s243
      %p245 = scmp.eq.s32.totalorder %s51, 0
      %p246 = por %p244, %p245
      %s248 = sadd.s32 %s247, 1
      %p251 = scmp.eq.s32.totalorder %s45, 1
      %p252 = scmp.ne.s32.totalorder %s247, %s249
      %p253 = scmp.eq.s32.totalorder %s45, 0
      %p254 = por %p252, %p253
      %p255 = scmp.ne.s32.totalorder %s247, %s249
      %p256 = scmp.eq.s32.totalorder %s50, 1
      %p257 = por %p255, %p256
      %p258 = scmp.ne.s32.totalorder %s249, %s250
      %p259 = scmp.eq.s32.totalorder %s50, 0
      %p260 = por %p258, %p259
      %p261 = scmp.ne.s32.totalorder %s249, %s250
      %p262 = scmp.eq.s32.totalorder %s51, 1
      %p263 = por %p261, %p262
      %p265 = scmp.ne.s32.totalorder %s250, %s264
      %p266 = scmp.eq.s32.totalorder %s51, 0
      %p267 = por %p265, %p266
      %s269 = sadd.s32 %s268, 1
      %p272 = scmp.eq.s32.totalorder %s45, 1
      %p273 = scmp.ne.s32.totalorder %s268, %s270
      %p274 = scmp.eq.s32.totalorder %s45, 0
      %p275 = por %p273, %p274
      %p276 = scmp.ne.s32.totalorder %s268, %s270
      %p277 = scmp.eq.s32.totalorder %s50, 1
      %p278 = por %p276, %p277
      %p279 = scmp.ne.s32.totalorder %s270, %s271
      %p280 = scmp.eq.s32.totalorder %s50, 0
      %p281 = por %p279, %p280
      %p282 = scmp.ne.s32.totalorder %s270, %s271
      %p283 = scmp.eq.s32.totalorder %s51, 1
      %p284 = por %p282, %p283
      %p286 = scmp.ne.s32.totalorder %s271, %s285
      %p287 = scmp.eq.s32.totalorder %s51, 0
      %p288 = por %p286, %p287
      %s290 = sadd.s32 %s289, 1
      %p293 = scmp.eq.s32.totalorder %s45, 1
      %p294 = scmp.ne.s32.totalorder %s289, %s291
      %p295 = scmp.eq.s32.totalorder %s45, 0
      %p296 = por %p294, %p295
      %p297 = scmp.ne.s32.totalorder %s289, %s291
      %p298 = scmp.eq.s32.totalorder %s50, 1
      %p299 = por %p297, %p298
      %p300 = scmp.ne.s32.totalorder %s291, %s292
      %p301 = scmp.eq.s32.totalorder %s50, 0
      %p302 = por %p300, %p301
      %p303 = scmp.ne.s32.totalorder %s291, %s292
      %p304 = scmp.eq.s32.totalorder %s51, 1
      %p305 = por %p303, %p304
      %p307 = scmp.ne.s32.totalorder %s292, %s306
      %p308 = scmp.eq.s32.totalorder %s51, 0
      %p309 = por %p307, %p308
      %s311 = sadd.s32 %s310, 1
      %p314 = scmp.eq.s32.totalorder %s45, 1
      %p315 = scmp.ne.s32.totalorder %s310, %s312
      %p316 = scmp.eq.s32.totalorder %s45, 0
      %p317 = por %p315, %p316
      %p318 = scmp.ne.s32.totalorder %s310, %s312
      %p319 = scmp.eq.s32.totalorder %s50, 1
      %p320 = por %p318, %p319
      %p321 = scmp.ne.s32.totalorder %s312, %s313
      %p322 = scmp.eq.s32.totalorder %s50, 0
      %p323 = por %p321, %p322
      %p324 = scmp.ne.s32.totalorder %s312, %s313
      %p325 = scmp.eq.s32.totalorder %s51, 1
      %p326 = por %p324, %p325
      %p328 = scmp.ne.s32.totalorder %s313, %s327
      %p329 = scmp.eq.s32.totalorder %s51, 0
      %p330 = por %p328, %p329
      %s332 = sadd.s32 %s331, 1
      %p335 = scmp.eq.s32.totalorder %s45, 1
      %p336 = scmp.ne.s32.totalorder %s331, %s333
      %p337 = scmp.eq.s32.totalorder %s45, 0
      %p338 = por %p336, %p337
      %p339 = scmp.ne.s32.totalorder %s331, %s333
      %p340 = scmp.eq.s32.totalorder %s50, 1
      %p341 = por %p339, %p340
      %p342 = scmp.ne.s32.totalorder %s333, %s334
      %p343 = scmp.eq.s32.totalorder %s50, 0
      %p344 = por %p342, %p343
      %p345 = scmp.ne.s32.totalorder %s333, %s334
      %p346 = scmp.eq.s32.totalorder %s51, 1
      %p347 = por %p345, %p346
      %p349 = scmp.ne.s32.totalorder %s334, %s348
      %p350 = scmp.eq.s32.totalorder %s51, 0
      %p351 = por %p349, %p350
      %s353 = sadd.s32 %s352, 1
      %p356 = scmp.eq.s32.totalorder %s45, 1
      %p357 = scmp.ne.s32.totalorder %s352, %s354
      %p358 = scmp.eq.s32.totalorder %s45, 0
      %p359 = por %p357, %p358
      %p360 = scmp.ne.s32.totalorder %s352, %s354
      %p361 = scmp.eq.s32.totalorder %s50, 1
      %p362 = por %p360, %p361
      %p363 = scmp.ne.s32.totalorder %s354, %s355
      %p364 = scmp.eq.s32.totalorder %s50, 0
      %p365 = por %p363, %p364
      %p366 = scmp.ne.s32.totalorder %s354, %s355
      %p367 = scmp.eq.s32.totalorder %s51, 1
      %p368 = por %p366, %p367
      %p370 = scmp.ne.s32.totalorder %s355, %s369
      %p371 = scmp.eq.s32.totalorder %s51, 0
      %p372 = por %p370, %p371
      %s374 = sadd.s32 %s373, 1
      %p377 = scmp.eq.s32.totalorder %s45, 1
      %p378 = scmp.ne.s32.totalorder %s373, %s375
      %p379 = scmp.eq.s32.totalorder %s45, 0
      %p380 = por %p378, %p379
      %p381 = scmp.ne.s32.totalorder %s373, %s375
      %p382 = scmp.eq.s32.totalorder %s50, 1
      %p383 = por %p381, %p382
      %p384 = scmp.ne.s32.totalorder %s375, %s376
      %p385 = scmp.eq.s32.totalorder %s50, 0
      %p386 = por %p384, %p385
      %p387 = scmp.ne.s32.totalorder %s375, %s376
      %p388 = scmp.eq.s32.totalorder %s51, 1
      %p389 = por %p387, %p388
      %p391 = scmp.ne.s32.totalorder %s376, %s390
      %p392 = scmp.eq.s32.totalorder %s51, 0
      %p393 = por %p391, %p392
      %s395 = sadd.s32 %s394, 1
      %p398 = scmp.eq.s32.totalorder %s45, 1
      %p399 = scmp.ne.s32.totalorder %s394, %s396
      %p400 = scmp.eq.s32.totalorder %s45, 0
      %p401 = por %p399, %p400
      %p402 = scmp.ne.s32.totalorder %s394, %s396
      %p403 = scmp.eq.s32.totalorder %s50, 1
      %p404 = por %p402, %p403
      %p405 = scmp.ne.s32.totalorder %s396, %s397
      %p406 = scmp.eq.s32.totalorder %s50, 0
      %p407 = por %p405, %p406
      %p408 = scmp.ne.s32.totalorder %s396, %s397
      %p409 = scmp.eq.s32.totalorder %s51, 1
      %p410 = por %p408, %p409
      %p412 = scmp.ne.s32.totalorder %s397, %s411
      %p413 = scmp.eq.s32.totalorder %s51, 0
      %p414 = por %p412, %p413
      %s416 = sadd.s32 %s415, 1
      %p419 = scmp.eq.s32.totalorder %s45, 1
      %p420 = scmp.ne.s32.totalorder %s415, %s417
      %p421 = scmp.eq.s32.totalorder %s45, 0
      %p422 = por %p420, %p421
      %p423 = scmp.ne.s32.totalorder %s415, %s417
      %p424 = scmp.eq.s32.totalorder %s50, 1
      %p425 = por %p423, %p424
      %p426 = scmp.ne.s32.totalorder %s417, %s418
      %p427 = scmp.eq.s32.totalorder %s50, 0
      %p428 = por %p426, %p427
      %p429 = scmp.ne.s32.totalorder %s417, %s418
      %p430 = scmp.eq.s32.totalorder %s51, 1
      %p431 = por %p429, %p430
      %p433 = scmp.ne.s32.totalorder %s418, %s432
      %p434 = scmp.eq.s32.totalorder %s51, 0
      %p435 = por %p433, %p434
      %s437 = sadd.s32 %s436, 1
      %p440 = scmp.eq.s32.totalorder %s45, 1
      %p441 = scmp.ne.s32.totalorder %s436, %s438
      %p442 = scmp.eq.s32.totalorder %s45, 0
      %p443 = por %p441, %p442
      %p444 = scmp.ne.s32.totalorder %s436, %s438
      %p445 = scmp.eq.s32.totalorder %s50, 1
      %p446 = por %p444, %p445
      %p447 = scmp.ne.s32.totalorder %s438, %s439
      %p448 = scmp.eq.s32.totalorder %s50, 0
      %p449 = por %p447, %p448
      %p450 = scmp.ne.s32.totalorder %s438, %s439
      %p451 = scmp.eq.s32.totalorder %s51, 1
      %p452 = por %p450, %p451
      %p454 = scmp.ne.s32.totalorder %s439, %s453
      %p455 = scmp.eq.s32.totalorder %s51, 0
      %p456 = por %p454, %p455
      %s458 = sadd.s32 %s457, 1
      %p461 = scmp.eq.s32.totalorder %s45, 1
      %p462 = scmp.ne.s32.totalorder %s457, %s459
      %p463 = scmp.eq.s32.totalorder %s45, 0
      %p464 = por %p462, %p463
      %p465 = scmp.ne.s32.totalorder %s457, %s459
      %p466 = scmp.eq.s32.totalorder %s50, 1
      %p467 = por %p465, %p466
      %p468 = scmp.ne.s32.totalorder %s459, %s460
      %p469 = scmp.eq.s32.totalorder %s50, 0
      %p470 = por %p468, %p469
      %p471 = scmp.ne.s32.totalorder %s459, %s460
      %p472 = scmp.eq.s32.totalorder %s51, 1
      %p473 = por %p471, %p472
      %p475 = scmp.ne.s32.totalorder %s460, %s474
      %p476 = scmp.eq.s32.totalorder %s51, 0
      %p477 = por %p475, %p476
      %s479 = sadd.s32 %s478, 1
      %p482 = scmp.eq.s32.totalorder %s45, 1
      %p483 = scmp.ne.s32.totalorder %s478, %s480
      %p484 = scmp.eq.s32.totalorder %s45, 0
      %p485 = por %p483, %p484
      %p486 = scmp.ne.s32.totalorder %s478, %s480
      %p487 = scmp.eq.s32.totalorder %s50, 1
      %p488 = por %p486, %p487
      %p489 = scmp.ne.s32.totalorder %s480, %s481
      %p490 = scmp.eq.s32.totalorder %s50, 0
      %p491 = por %p489, %p490
      %p492 = scmp.ne.s32.totalorder %s480, %s481
      %p493 = scmp.eq.s32.totalorder %s51, 1
      %p494 = por %p492, %p493
      %p496 = scmp.ne.s32.totalorder %s481, %s495
      %p497 = scmp.eq.s32.totalorder %s51, 0
      %p498 = por %p496, %p497
      %s500 = sadd.s32 %s499, 1
      %p503 = scmp.eq.s32.totalorder %s45, 1
      %p504 = scmp.ne.s32.totalorder %s499, %s501
      %p505 = scmp.eq.s32.totalorder %s45, 0
      %p506 = por %p504, %p505
      %p507 = scmp.ne.s32.totalorder %s499, %s501
      %p508 = scmp.eq.s32.totalorder %s50, 1
      %p509 = por %p507, %p508
      %p510 = scmp.ne.s32.totalorder %s501, %s502
      %p511 = scmp.eq.s32.totalorder %s50, 0
      %p512 = por %p510, %p511
      %p513 = scmp.ne.s32.totalorder %s501, %s502
      %p514 = scmp.eq.s32.totalorder %s51, 1
      %p515 = por %p513, %p514
      %p517 = scmp.ne.s32.totalorder %s502, %s516
      %p518 = scmp.eq.s32.totalorder %s51, 0
      %p519 = por %p517, %p518
      %s521 = sadd.s32 %s520, 1
      %p524 = scmp.eq.s32.totalorder %s45, 1
      %p525 = scmp.ne.s32.totalorder %s520, %s522
      %p526 = scmp.eq.s32.totalorder %s45, 0
      %p527 = por %p525, %p526
      %p528 = scmp.ne.s32.totalorder %s520, %s522
      %p529 = scmp.eq.s32.totalorder %s50, 1
      %p530 = por %p528, %p529
      %p531 = scmp.ne.s32.totalorder %s522, %s523
      %p532 = scmp.eq.s32.totalorder %s50, 0
      %p533 = por %p531, %p532
      %p534 = scmp.ne.s32.totalorder %s522, %s523
      %p535 = scmp.eq.s32.totalorder %s51, 1
      %p536 = por %p534, %p535
      %p538 = scmp.ne.s32.totalorder %s523, %s537
      %p539 = scmp.eq.s32.totalorder %s51, 0
      %p540 = por %p538, %p539
      %s542 = sadd.s32 %s541, 1
      %p545 = scmp.eq.s32.totalorder %s45, 1
      %p546 = scmp.ne.s32.totalorder %s541, %s543
      %p547 = scmp.eq.s32.totalorder %s45, 0
      %p548 = por %p546, %p547
      %p549 = scmp.ne.s32.totalorder %s541, %s543
      %p550 = scmp.eq.s32.totalorder %s50, 1
      %p551 = por %p549, %p550
      %p552 = scmp.ne.s32.totalorder %s543, %s544
      %p553 = scmp.eq.s32.totalorder %s50, 0
      %p554 = por %p552, %p553
      %p555 = scmp.ne.s32.totalorder %s543, %s544
      %p556 = scmp.eq.s32.totalorder %s51, 1
      %p557 = por %p555, %p556
      %p559 = scmp.ne.s32.totalorder %s544, %s558
      %p560 = scmp.eq.s32.totalorder %s51, 0
      %p561 = por %p559, %p560
      %s563 = sadd.s32 %s562, 1
      %p566 = scmp.eq.s32.totalorder %s45, 1
      %p567 = scmp.ne.s32.totalorder %s562, %s564
      %p568 = scmp.eq.s32.totalorder %s45, 0
      %p569 = por %p567, %p568
      %p570 = scmp.ne.s32.totalorder %s562, %s564
      %p571 = scmp.eq.s32.totalorder %s50, 1
      %p572 = por %p570, %p571
      %p573 = scmp.ne.s32.totalorder %s564, %s565
      %p574 = scmp.eq.s32.totalorder %s50, 0
      %p575 = por %p573, %p574
      %p576 = scmp.ne.s32.totalorder %s564, %s565
      %p577 = scmp.eq.s32.totalorder %s51, 1
      %p578 = por %p576, %p577
      %p580 = scmp.ne.s32.totalorder %s565, %s579
      %p581 = scmp.eq.s32.totalorder %s51, 0
      %p582 = por %p580, %p581
      %s584 = sadd.s32 %s583, 1
      %p587 = scmp.eq.s32.totalorder %s45, 1
      %p588 = scmp.ne.s32.totalorder %s583, %s585
      %p589 = scmp.eq.s32.totalorder %s45, 0
      %p590 = por %p588, %p589
      %p591 = scmp.ne.s32.totalorder %s583, %s585
      %p592 = scmp.eq.s32.totalorder %s50, 1
      %p593 = por %p591, %p592
      %p594 = scmp.ne.s32.totalorder %s585, %s586
      %p595 = scmp.eq.s32.totalorder %s50, 0
      %p596 = por %p594, %p595
      %p597 = scmp.ne.s32.totalorder %s585, %s586
      %p598 = scmp.eq.s32.totalorder %s51, 1
      %p599 = por %p597, %p598
      %p601 = scmp.ne.s32.totalorder %s586, %s600
      %p602 = scmp.eq.s32.totalorder %s51, 0
      %p603 = por %p601, %p602
      %s605 = sadd.s32 %s604, 1
      %p608 = scmp.eq.s32.totalorder %s45, 1
      %p609 = scmp.ne.s32.totalorder %s604, %s606
      %p610 = scmp.eq.s32.totalorder %s45, 0
      %p611 = por %p609, %p610
      %p612 = scmp.ne.s32.totalorder %s604, %s606
      %p613 = scmp.eq.s32.totalorder %s50, 1
      %p614 = por %p612, %p613
      %p615 = scmp.ne.s32.totalorder %s606, %s607
      %p616 = scmp.eq.s32.totalorder %s50, 0
      %p617 = por %p615, %p616
      %p618 = scmp.ne.s32.totalorder %s606, %s607
      %p619 = scmp.eq.s32.totalorder %s51, 1
      %p620 = por %p618, %p619
      %p622 = scmp.ne.s32.totalorder %s607, %s621
      %p623 = scmp.eq.s32.totalorder %s51, 0
      %p624 = por %p622, %p623
      %s625 = ssub.s32 %s45, %s52
      %p626 = scmp.eq.s32.totalorder %s625, 0
      %s628 = sadd.s32 %s627, 1
      %s629 = scalar_select %p626, %s627, %s628
      %p632 = pneg %p626
      %p633 = scmp.eq.s32.totalorder %s45, 1
      %p634 = por %p632, %p633
      %p635 = scmp.ne.s32.totalorder %s627, %s630
      %p636 = scmp.eq.s32.totalorder %s45, 0
      %p637 = por %p635, %p636
      %p638 = scmp.ne.s32.totalorder %s627, %s630
      %p639 = scmp.eq.s32.totalorder %s50, 1
      %p640 = por %p638, %p639
      %p641 = scmp.ne.s32.totalorder %s630, %s631
      %p642 = scmp.eq.s32.totalorder %s50, 0
      %p643 = por %p641, %p642
      %p644 = scmp.ne.s32.totalorder %s630, %s631
      %p645 = scmp.eq.s32.totalorder %s51, 1
      %p646 = por %p644, %p645
      %p648 = scmp.ne.s32.totalorder %s631, %s647
      %p649 = scmp.eq.s32.totalorder %s51, 0
      %p650 = por %p648, %p649
      %p651 = scmp.le.s32.totalorder 1, %s45
      %p652 = scmp.lt.s32.totalorder %s45, 3
      %p653 = pnand %p651, %p652
      %p654 = pneg %p653
      // Predicated region
      $region9: #{resnet1d_forward.1} parent=5 // pred_check
        _
      $region10: #{resnet1d_forward.1} parent=5 // pred_check_branch
        %656 = sbr.rel (%p653) target = $region12
      $region11: #{resnet1d_forward.1} parent=5 // pred_region
        %s657 = ssub.s32 %s45, 1
        // Predicated region
        $region13: #{resnet1d_forward.1} parent=11 // pred_check
          %p658 = pneg %p92
        $region14: #{resnet1d_forward.1} parent=11 // pred_check_branch
          %660 = sbr.rel (%p658) target = $region16
        $region15: #{resnet1d_forward.1} parent=11 // pred_region
          _
        $region16: #{resnet1d_forward.1} parent=11 // pred_fallthru
          _
        // Predicated region
        $region17: #{resnet1d_forward.1} parent=11 // pred_check
          %p661 = pneg %p113
        $region18: #{resnet1d_forward.1} parent=11 // pred_check_branch
          %663 = sbr.rel (%p661) target = $region20
        $region19: #{resnet1d_forward.1} parent=11 // pred_region
          _
        $region20: #{resnet1d_forward.1} parent=11 // pred_fallthru
          _
        // Predicated region
        $region21: #{resnet1d_forward.1} parent=11 // pred_check
          %p664 = pneg %p134
        $region22: #{resnet1d_forward.1} parent=11 // pred_check_branch
          %666 = sbr.rel (%p664) target = $region24
        $region23: #{resnet1d_forward.1} parent=11 // pred_region
          _
        $region24: #{resnet1d_forward.1} parent=11 // pred_fallthru
          _
        // Predicated region
        $region25: #{resnet1d_forward.1} parent=11 // pred_check
          %p667 = pneg %p155
        $region26: #{resnet1d_forward.1} parent=11 // pred_check_branch
          %669 = sbr.rel (%p667) target = $region28
        $region27: #{resnet1d_forward.1} parent=11 // pred_region
          %s671 = ssub.s32 16, 16
          %672 = vsyncadd [#allocation9], %s671
          %s674 = sshll.u32 [#allocation8], 4
          %s675 = int_to_ptr.vmem [resolvable:$true] %s674
          %677 = dma.hbm_to_vmem [thread:$0]  %s4, 16, %s675, [#allocation9]
        $region28: #{resnet1d_forward.1} parent=11 // pred_fallthru
          _
        // Predicated region
        $region29: #{resnet1d_forward.1} parent=11 // pred_check
          %p678 = pneg %p176
        $region30: #{resnet1d_forward.1} parent=11 // pred_check_branch
          %680 = sbr.rel (%p678) target = $region32
        $region31: #{resnet1d_forward.1} parent=11 // pred_region
          _
        $region32: #{resnet1d_forward.1} parent=11 // pred_fallthru
          _
        // Predicated region
        $region33: #{resnet1d_forward.1} parent=11 // pred_check
          %p681 = pneg %p197
        $region34: #{resnet1d_forward.1} parent=11 // pred_check_branch
          %683 = sbr.rel (%p681) target = $region36
        $region35: #{resnet1d_forward.1} parent=11 // pred_region
          %s685 = ssub.s32 16, 16
          %686 = vsyncadd [#allocation12], %s685
          %s688 = sshll.u32 [#allocation11], 4
          %s689 = int_to_ptr.vmem [resolvable:$true] %s688
          %691 = dma.hbm_to_vmem [thread:$0]  %s6, 16, %s689, [#allocation12]
        $region36: #{resnet1d_forward.1} parent=11 // pred_fallthru
          _
        // Predicated region
        $region37: #{resnet1d_forward.1} parent=11 // pred_check
          %p692 = pneg %p218
        $region38: #{resnet1d_forward.1} parent=11 // pred_check_branch
          %694 = sbr.rel (%p692) target = $region40
        $region39: #{resnet1d_forward.1} parent=11 // pred_region
          _
        $region40: #{resnet1d_forward.1} parent=11 // pred_fallthru
          _
        // Predicated region
        $region41: #{resnet1d_forward.1} parent=11 // pred_check
          %p695 = pneg %p239
        $region42: #{resnet1d_forward.1} parent=11 // pred_check_branch
          %697 = sbr.rel (%p695) target = $region44
        $region43: #{resnet1d_forward.1} parent=11 // pred_region
          %s699 = ssub.s32 16, 16
          %700 = vsyncadd [#allocation12], %s699
          %s702 = sshll.u32 [#allocation13], 4
          %s703 = int_to_ptr.vmem [resolvable:$true] %s702
          %705 = dma.hbm_to_vmem [thread:$0]  %s8, 16, %s703, [#allocation12]
        $region44: #{resnet1d_forward.1} parent=11 // pred_fallthru
          _
        // Predicated region
        $region45: #{resnet1d_forward.1} parent=11 // pred_check
          %p706 = pneg %p260
        $region46: #{resnet1d_forward.1} parent=11 // pred_check_branch
          %708 = sbr.rel (%p706) target = $region48
        $region47: #{resnet1d_forward.1} parent=11 // pred_region
          %s710 = ssub.s32 256, 256
          %711 = vsyncadd [#allocation15], %s710
          %s712 = sshll.u32 [#allocation14], 4
          %s713 = int_to_ptr.vmem [resolvable:$true] %s712
          %718 = dma.hbm_to_vmem [thread:$0]  %s9, 256, %s713, [#allocation15], 64, 64, 4
        $region48: #{resnet1d_forward.1} parent=11 // pred_fallthru
          _
        // Predicated region
        $region49: #{resnet1d_forward.1} parent=11 // pred_check
          %p719 = pneg %p281
        $region50: #{resnet1d_forward.1} parent=11 // pred_check_branch
          %721 = sbr.rel (%p719) target = $region52
        $region51: #{resnet1d_forward.1} parent=11 // pred_region
          %s723 = ssub.s32 16, 16
          %724 = vsyncadd [#allocation15], %s723
          %s726 = sshll.u32 [#allocation16], 4
          %s727 = int_to_ptr.vmem [resolvable:$true] %s726
          %729 = dma.hbm_to_vmem [thread:$0]  %s10, 16, %s727, [#allocation15]
        $region52: #{resnet1d_forward.1} parent=11 // pred_fallthru
          _
        // Predicated region
        $region53: #{resnet1d_forward.1} parent=11 // pred_check
          %p730 = pneg %p302
        $region54: #{resnet1d_forward.1} parent=11 // pred_check_branch
          %732 = sbr.rel (%p730) target = $region56
        $region55: #{resnet1d_forward.1} parent=11 // pred_region
          _
        $region56: #{resnet1d_forward.1} parent=11 // pred_fallthru
          _
        // Predicated region
        $region57: #{resnet1d_forward.1} parent=11 // pred_check
          %p733 = pneg %p323
        $region58: #{resnet1d_forward.1} parent=11 // pred_check_branch
          %735 = sbr.rel (%p733) target = $region60
        $region59: #{resnet1d_forward.1} parent=11 // pred_region
          %s737 = ssub.s32 16, 16
          %738 = vsyncadd [#allocation18], %s737
          %s740 = sshll.u32 [#allocation17], 4
          %s741 = int_to_ptr.vmem [resolvable:$true] %s740
          %743 = dma.hbm_to_vmem [thread:$0]  %s12, 16, %s741, [#allocation18]
        $region60: #{resnet1d_forward.1} parent=11 // pred_fallthru
          _
        // Predicated region
        $region61: #{resnet1d_forward.1} parent=11 // pred_check
          %p744 = pneg %p344
        $region62: #{resnet1d_forward.1} parent=11 // pred_check_branch
          %746 = sbr.rel (%p744) target = $region64
        $region63: #{resnet1d_forward.1} parent=11 // pred_region
          %s748 = ssub.s32 1536, 1536
          %749 = vsyncadd [#allocation18], %s748
          %s750 = sshll.u32 [#allocation19], 4
          %s751 = int_to_ptr.vmem [resolvable:$true] %s750
          %756 = dma.hbm_to_vmem [thread:$0]  %s13, 1536, %s751, [#allocation18], 64, 64, 4
        $region64: #{resnet1d_forward.1} parent=11 // pred_fallthru
          _
        // Predicated region
        $region65: #{resnet1d_forward.1} parent=11 // pred_check
          %p757 = pneg %p365
        $region66: #{resnet1d_forward.1} parent=11 // pred_check_branch
          %759 = sbr.rel (%p757) target = $region68
        $region67: #{resnet1d_forward.1} parent=11 // pred_region
          %s761 = ssub.s32 16, 16
          %762 = vsyncadd [#allocation21], %s761
          %s764 = sshll.u32 [#allocation20], 4
          %s765 = int_to_ptr.vmem [resolvable:$true] %s764
          %767 = dma.hbm_to_vmem [thread:$0]  %s14, 16, %s765, [#allocation21]
        $region68: #{resnet1d_forward.1} parent=11 // pred_fallthru
          _
        // Predicated region
        $region69: #{resnet1d_forward.1} parent=11 // pred_check
          %p768 = pneg %p386
        $region70: #{resnet1d_forward.1} parent=11 // pred_check_branch
          %770 = sbr.rel (%p768) target = $region72
        $region71: #{resnet1d_forward.1} parent=11 // pred_region
          %s772 = ssub.s32 512, 512
          %773 = vsyncadd [#allocation21], %s772
          %s774 = sshll.u32 [#allocation22], 4
          %s775 = int_to_ptr.vmem [resolvable:$true] %s774
          %780 = dma.hbm_to_vmem [thread:$0]  %s15, 512, %s775, [#allocation21], 64, 64, 4
        $region72: #{resnet1d_forward.1} parent=11 // pred_fallthru
          _
        // Predicated region
        $region73: #{resnet1d_forward.1} parent=11 // pred_check
          %p781 = pneg %p407
        $region74: #{resnet1d_forward.1} parent=11 // pred_check_branch
          %783 = sbr.rel (%p781) target = $region76
        $region75: #{resnet1d_forward.1} parent=11 // pred_region
          %s785 = ssub.s32 16, 16
          %786 = vsyncadd [#allocation24], %s785
          %s788 = sshll.u32 [#allocation23], 4
          %s789 = int_to_ptr.vmem [resolvable:$true] %s788
          %791 = dma.hbm_to_vmem [thread:$0]  %s16, 16, %s789, [#allocation24]
        $region76: #{resnet1d_forward.1} parent=11 // pred_fallthru
          _
        // Predicated region
        $region77: #{resnet1d_forward.1} parent=11 // pred_check
          %p792 = pneg %p428
        $region78: #{resnet1d_forward.1} parent=11 // pred_check_branch
          %794 = sbr.rel (%p792) target = $region80
        $region79: #{resnet1d_forward.1} parent=11 // pred_region
          _
        $region80: #{resnet1d_forward.1} parent=11 // pred_fallthru
          _
        // Predicated region
        $region81: #{resnet1d_forward.1} parent=11 // pred_check
          %p795 = pneg %p449
        $region82: #{resnet1d_forward.1} parent=11 // pred_check_branch
          %797 = sbr.rel (%p795) target = $region84
        $region83: #{resnet1d_forward.1} parent=11 // pred_region
          %s799 = ssub.s32 16, 16
          %800 = vsyncadd [#allocation24], %s799
          %s802 = sshll.u32 [#allocation25], 4
          %s803 = int_to_ptr.vmem [resolvable:$true] %s802
          %805 = dma.hbm_to_vmem [thread:$0]  %s18, 16, %s803, [#allocation24]
        $region84: #{resnet1d_forward.1} parent=11 // pred_fallthru
          _
        // Predicated region
        $region85: #{resnet1d_forward.1} parent=11 // pred_check
          %p806 = pneg %p470
        $region86: #{resnet1d_forward.1} parent=11 // pred_check_branch
          %808 = sbr.rel (%p806) target = $region88
        $region87: #{resnet1d_forward.1} parent=11 // pred_region
          _
        $region88: #{resnet1d_forward.1} parent=11 // pred_fallthru
          _
        // Predicated region
        $region89: #{resnet1d_forward.1} parent=11 // pred_check
          %p809 = pneg %p491
        $region90: #{resnet1d_forward.1} parent=11 // pred_check_branch
          %811 = sbr.rel (%p809) target = $region92
        $region91: #{resnet1d_forward.1} parent=11 // pred_region
          %s813 = ssub.s32 32, 32
          %814 = vsyncadd [#allocation27], %s813
          %s816 = sshll.u32 [#allocation26], 4
          %s817 = int_to_ptr.vmem [resolvable:$true] %s816
          %819 = dma.hbm_to_vmem [thread:$0]  %s20, 32, %s817, [#allocation27]
        $region92: #{resnet1d_forward.1} parent=11 // pred_fallthru
          _
        // Predicated region
        $region93: #{resnet1d_forward.1} parent=11 // pred_check
          %p820 = pneg %p512
        $region94: #{resnet1d_forward.1} parent=11 // pred_check_branch
          %822 = sbr.rel (%p820) target = $region96
        $region95: #{resnet1d_forward.1} parent=11 // pred_region
          _
        $region96: #{resnet1d_forward.1} parent=11 // pred_fallthru
          _
        // Predicated region
        $region97: #{resnet1d_forward.1} parent=11 // pred_check
          %p823 = pneg %p533
        $region98: #{resnet1d_forward.1} parent=11 // pred_check_branch
          %825 = sbr.rel (%p823) target = $region100
        $region99: #{resnet1d_forward.1} parent=11 // pred_region
          %s827 = ssub.s32 32, 32
          %828 = vsyncadd [#allocation27], %s827
          %s830 = sshll.u32 [#allocation28], 4
          %s831 = int_to_ptr.vmem [resolvable:$true] %s830
          %833 = dma.hbm_to_vmem [thread:$0]  %s22, 32, %s831, [#allocation27]
        $region100: #{resnet1d_forward.1} parent=11 // pred_fallthru
          _
        // Predicated region
        $region101: #{resnet1d_forward.1} parent=11 // pred_check
          %p834 = pneg %p554
        $region102: #{resnet1d_forward.1} parent=11 // pred_check_branch
          %836 = sbr.rel (%p834) target = $region104
        $region103: #{resnet1d_forward.1} parent=11 // pred_region
          %s838 = ssub.s32 12288, 12288
          %839 = vsyncadd [#allocation30], %s838
          %s840 = sshll.u32 [#allocation29], 4
          %s841 = int_to_ptr.vmem [resolvable:$true] %s840
          %846 = dma.hbm_to_vmem [thread:$0]  %s23, 12288, %s841, [#allocation30], 128, 128, 8
        $region104: #{resnet1d_forward.1} parent=11 // pred_fallthru
          _
        // Predicated region
        $region105: #{resnet1d_forward.1} parent=11 // pred_check
          %p847 = pneg %p575
        $region106: #{resnet1d_forward.1} parent=11 // pred_check_branch
          %849 = sbr.rel (%p847) target = $region108
        $region107: #{resnet1d_forward.1} parent=11 // pred_region
          %s851 = ssub.s32 32, 32
          %852 = vsyncadd [#allocation30], %s851
          %s854 = sshll.u32 [#allocation31], 4
          %s855 = int_to_ptr.vmem [resolvable:$true] %s854
          %857 = dma.hbm_to_vmem [thread:$0]  %s24, 32, %s855, [#allocation30]
        $region108: #{resnet1d_forward.1} parent=11 // pred_fallthru
          _
        // Predicated region
        $region109: #{resnet1d_forward.1} parent=11 // pred_check
          %p858 = pneg %p596
        $region110: #{resnet1d_forward.1} parent=11 // pred_check_branch
          %860 = sbr.rel (%p858) target = $region112
        $region111: #{resnet1d_forward.1} parent=11 // pred_region
          _
        $region112: #{resnet1d_forward.1} parent=11 // pred_fallthru
          _
        // Predicated region
        $region113: #{resnet1d_forward.1} parent=11 // pred_check
          %p861 = pneg %p617
        $region114: #{resnet1d_forward.1} parent=11 // pred_check_branch
          %863 = sbr.rel (%p861) target = $region116
        $region115: #{resnet1d_forward.1} parent=11 // pred_region
          %s865 = ssub.s32 16, 16
          %866 = vsyncadd [#allocation33], %s865
          %s868 = sshll.u32 [#allocation32], 4
          %s869 = int_to_ptr.vmem [resolvable:$true] %s868
          %871 = dma.hbm_to_vmem [thread:$0]  %s26, 16, %s869, [#allocation33]
        $region116: #{resnet1d_forward.1} parent=11 // pred_fallthru
          _
      $region12: #{resnet1d_forward.1} parent=5 // pred_fallthru
        _
      %p872 = scmp.lt.s32.totalorder %s45, 2
      // Predicated region
      $region117: #{resnet1d_forward.1} parent=5 // pred_check
        %p873 = pneg %p872
      $region118: #{resnet1d_forward.1} parent=5 // pred_check_branch
        %875 = sbr.rel (%p873) target = $region120
      $region119: #{resnet1d_forward.1} parent=5 // pred_region
        // Predicated region
        $region121: #{resnet1d_forward.1} parent=119 // pred_check
          %p876 = pneg %p65
        $region122: #{resnet1d_forward.1} parent=119 // pred_check_branch
          %878 = sbr.rel (%p876) target = $region124
        $region123: #{resnet1d_forward.1} parent=119 // pred_region
          %p879 = scmp.lt.s32.totalorder %s45, 1
          %s880 = scalar_select %p879, %s45, 1
          %s881 = smul.addr %s880, 8
          %s882 = smul.addr %s881, 8
          %s883 = scalar_lea.vmem %s0, %s882
        $region124: #{resnet1d_forward.1} parent=119 // pred_fallthru
          _
      $region120: #{resnet1d_forward.1} parent=5 // pred_fallthru
        _
      %p884 = scmp.le.s32.totalorder 1, %s45
      %p885 = scmp.lt.s32.totalorder %s45, 3
      %p886 = pnand %p884, %p885
      %p887 = pneg %p886
      // Predicated region
      $region125: #{resnet1d_forward.1} parent=5 // pred_check
        _
      $region126: #{resnet1d_forward.1} parent=5 // pred_check_branch
        %889 = sbr.rel (%p886) target = $region128
      $region127: #{resnet1d_forward.1} parent=5 // pred_region
        %s890 = ssub.s32 %s45, 1
        // Predicated region
        $region129: #{resnet1d_forward.1} parent=127 // pred_check
          %p891 = pneg %p155
        $region130: #{resnet1d_forward.1} parent=127 // pred_check_branch
          %893 = sbr.rel (%p891) target = $region132
        $region131: #{resnet1d_forward.1} parent=127 // pred_region
          %894 = dma.done [#allocation9], 16
        $region132: #{resnet1d_forward.1} parent=127 // pred_fallthru
          _
        // Predicated region
        $region133: #{resnet1d_forward.1} parent=127 // pred_check
          %p895 = pneg %p197
        $region134: #{resnet1d_forward.1} parent=127 // pred_check_branch
          %897 = sbr.rel (%p895) target = $region136
        $region135: #{resnet1d_forward.1} parent=127 // pred_region
          %898 = dma.done [#allocation12], 16
        $region136: #{resnet1d_forward.1} parent=127 // pred_fallthru
          _
        // Predicated region
        $region137: #{resnet1d_forward.1} parent=127 // pred_check
          %p899 = pneg %p239
        $region138: #{resnet1d_forward.1} parent=127 // pred_check_branch
          %901 = sbr.rel (%p899) target = $region140
        $region139: #{resnet1d_forward.1} parent=127 // pred_region
          %902 = dma.done [#allocation12], 16
        $region140: #{resnet1d_forward.1} parent=127 // pred_fallthru
          _
        // Predicated region
        $region141: #{resnet1d_forward.1} parent=127 // pred_check
          %p903 = pneg %p260
        $region142: #{resnet1d_forward.1} parent=127 // pred_check_branch
          %905 = sbr.rel (%p903) target = $region144
        $region143: #{resnet1d_forward.1} parent=127 // pred_region
          %906 = dma.done [#allocation15], 256
        $region144: #{resnet1d_forward.1} parent=127 // pred_fallthru
          _
        // Predicated region
        $region145: #{resnet1d_forward.1} parent=127 // pred_check
          %p907 = pneg %p281
        $region146: #{resnet1d_forward.1} parent=127 // pred_check_branch
          %909 = sbr.rel (%p907) target = $region148
        $region147: #{resnet1d_forward.1} parent=127 // pred_region
          %910 = dma.done [#allocation15], 16
        $region148: #{resnet1d_forward.1} parent=127 // pred_fallthru
          _
        // Predicated region
        $region149: #{resnet1d_forward.1} parent=127 // pred_check
          %p911 = pneg %p323
        $region150: #{resnet1d_forward.1} parent=127 // pred_check_branch
          %913 = sbr.rel (%p911) target = $region152
        $region151: #{resnet1d_forward.1} parent=127 // pred_region
          %914 = dma.done [#allocation18], 16
        $region152: #{resnet1d_forward.1} parent=127 // pred_fallthru
          _
        // Predicated region
        $region153: #{resnet1d_forward.1} parent=127 // pred_check
          %p915 = pneg %p344
        $region154: #{resnet1d_forward.1} parent=127 // pred_check_branch
          %917 = sbr.rel (%p915) target = $region156
        $region155: #{resnet1d_forward.1} parent=127 // pred_region
          %918 = dma.done [#allocation18], 1536
        $region156: #{resnet1d_forward.1} parent=127 // pred_fallthru
          _
        // Predicated region
        $region157: #{resnet1d_forward.1} parent=127 // pred_check
          %p919 = pneg %p365
        $region158: #{resnet1d_forward.1} parent=127 // pred_check_branch
          %921 = sbr.rel (%p919) target = $region160
        $region159: #{resnet1d_forward.1} parent=127 // pred_region
          %922 = dma.done [#allocation21], 16
        $region160: #{resnet1d_forward.1} parent=127 // pred_fallthru
          _
        // Predicated region
        $region161: #{resnet1d_forward.1} parent=127 // pred_check
          %p923 = pneg %p386
        $region162: #{resnet1d_forward.1} parent=127 // pred_check_branch
          %925 = sbr.rel (%p923) target = $region164
        $region163: #{resnet1d_forward.1} parent=127 // pred_region
          %926 = dma.done [#allocation21], 512
        $region164: #{resnet1d_forward.1} parent=127 // pred_fallthru
          _
        // Predicated region
        $region165: #{resnet1d_forward.1} parent=127 // pred_check
          %p927 = pneg %p407
        $region166: #{resnet1d_forward.1} parent=127 // pred_check_branch
          %929 = sbr.rel (%p927) target = $region168
        $region167: #{resnet1d_forward.1} parent=127 // pred_region
          %930 = dma.done [#allocation24], 16
        $region168: #{resnet1d_forward.1} parent=127 // pred_fallthru
          _
        // Predicated region
        $region169: #{resnet1d_forward.1} parent=127 // pred_check
          %p931 = pneg %p449
        $region170: #{resnet1d_forward.1} parent=127 // pred_check_branch
          %933 = sbr.rel (%p931) target = $region172
        $region171: #{resnet1d_forward.1} parent=127 // pred_region
          %934 = dma.done [#allocation24], 16
        $region172: #{resnet1d_forward.1} parent=127 // pred_fallthru
          _
        // Predicated region
        $region173: #{resnet1d_forward.1} parent=127 // pred_check
          %p935 = pneg %p491
        $region174: #{resnet1d_forward.1} parent=127 // pred_check_branch
          %937 = sbr.rel (%p935) target = $region176
        $region175: #{resnet1d_forward.1} parent=127 // pred_region
          %938 = dma.done [#allocation27], 32
        $region176: #{resnet1d_forward.1} parent=127 // pred_fallthru
          _
        // Predicated region
        $region177: #{resnet1d_forward.1} parent=127 // pred_check
          %p939 = pneg %p533
        $region178: #{resnet1d_forward.1} parent=127 // pred_check_branch
          %941 = sbr.rel (%p939) target = $region180
        $region179: #{resnet1d_forward.1} parent=127 // pred_region
          %942 = dma.done [#allocation27], 32
        $region180: #{resnet1d_forward.1} parent=127 // pred_fallthru
          _
        // Predicated region
        $region181: #{resnet1d_forward.1} parent=127 // pred_check
          %p943 = pneg %p554
        $region182: #{resnet1d_forward.1} parent=127 // pred_check_branch
          %945 = sbr.rel (%p943) target = $region184
        $region183: #{resnet1d_forward.1} parent=127 // pred_region
          %946 = dma.done [#allocation30], 12288
        $region184: #{resnet1d_forward.1} parent=127 // pred_fallthru
          _
        // Predicated region
        $region185: #{resnet1d_forward.1} parent=127 // pred_check
          %p947 = pneg %p575
        $region186: #{resnet1d_forward.1} parent=127 // pred_check_branch
          %949 = sbr.rel (%p947) target = $region188
        $region187: #{resnet1d_forward.1} parent=127 // pred_region
          %950 = dma.done [#allocation30], 32
        $region188: #{resnet1d_forward.1} parent=127 // pred_fallthru
          _
        // Predicated region
        $region189: #{resnet1d_forward.1} parent=127 // pred_check
          %p951 = pneg %p617
        $region190: #{resnet1d_forward.1} parent=127 // pred_check_branch
          %953 = sbr.rel (%p951) target = $region192
        $region191: #{resnet1d_forward.1} parent=127 // pred_region
          %954 = dma.done [#allocation33], 16
        $region192: #{resnet1d_forward.1} parent=127 // pred_fallthru
          _
        %p955 = scmp.lt.s32.totalorder %s50, 1
        %s956 = scalar_select %p955, %s50, 1
        %s957 = smul.addr %s956, 8
        %s958 = smul.addr %s957, 8
        %s959 = scalar_lea.vmem %s0, %s958
        %p960 = pneg %p71
        %p961 = pneg %p68
        %p962 = pneg %p92
        %p963 = pneg %p89
        %p964 = pneg %p113
        %p965 = pneg %p110
        %p966 = pneg %p134
        %p967 = pneg %p131
        %p968 = pneg %p155
        %p969 = pneg %p152
        %p970 = pneg %p176
        %p971 = pneg %p173
        %p972 = pneg %p197
        %p973 = pneg %p194
        %p974 = pneg %p218
        %p975 = pneg %p215
        %p976 = pneg %p239
        %p977 = pneg %p236
        %p978 = pneg %p260
        %p979 = pneg %p257
        %p980 = pneg %p281
        %p981 = pneg %p278
        %p982 = pneg %p302
        %p983 = pneg %p299
        %p984 = pneg %p323
        %p985 = pneg %p320
        %p986 = pneg %p344
        %p987 = pneg %p341
        %p988 = pneg %p365
        %p989 = pneg %p362
        %p990 = pneg %p386
        %p991 = pneg %p383
        %p992 = pneg %p407
        %p993 = pneg %p404
        %p994 = pneg %p428
        %p995 = pneg %p425
        %p996 = pneg %p449
        %p997 = pneg %p446
        %p998 = pneg %p470
        %p999 = pneg %p467
        %p1000 = pneg %p491
        %p1001 = pneg %p488
        %p1002 = pneg %p512
        %p1003 = pneg %p509
        %p1004 = pneg %p533
        %p1005 = pneg %p530
        %p1006 = pneg %p554
        %p1007 = pneg %p551
        %p1008 = pneg %p575
        %p1009 = pneg %p572
        %p1010 = pneg %p596
        %p1011 = pneg %p593
        %p1012 = pneg %p617
        %p1013 = pneg %p614
        %p1014 = pneg %p643
        %p1015 = pneg %p640
        %s1016 = sand.u32 %s630, 1
        %s1017 = scalar_lea.sflag [#allocation10], %s1016
        %s1018 = sand.u32 %s630, 1
        %s1019 = scalar_lea.vmem [#allocation34], %s1018
        %p1020 = scmp.lt.s32.totalorder %s50, 1
        %s1021 = scalar_select %p1020, %s50, 1
        %s1022 = smul.addr %s1021, 8
        %s1023 = smul.addr %s1022, 8
        %s1024 = scalar_lea.vmem %s0, %s1023
        %vm1026 = vcmask 7168
        %1027 = vst.msk [vmem:[#allocation2] sm:$0xff] %vm1026, 0.0
        %1028 = vst.msk [vmem:[#allocation2 + $0x8] sm:$0xff] %vm1026, 0.0
        %1029 = vst.msk [vmem:[#allocation2 + $0x10] sm:$0xff] %vm1026, 0.0
        %1030 = vst.msk [vmem:[#allocation2 + $0x18] sm:$0xff] %vm1026, 0.0
        %1031 = vst.msk [vmem:[#allocation2 + $0x20] sm:$0xff] %vm1026, 0.0
        %1032 = vst.msk [vmem:[#allocation2 + $0x28] sm:$0xff] %vm1026, 0.0
        %1033 = vst.msk [vmem:[#allocation2 + $0x30] sm:$0xff] %vm1026, 0.0
        %1034 = vst.msk [vmem:[#allocation2 + $0x38] sm:$0xff] %vm1026, 0.0
        %vm1035 = vcmask 5120
        %1036 = vst.msk [vmem:[#allocation2 + $0x40] sm:$0x3f] %vm1035, 0.0
        %v1037 = vld [vmem:[%s1024] sm:$0xff]
        %v1038 = vld [vmem:[%s1024 + $0x8] sm:$0xff]
        %v1039 = vld [vmem:[%s1024 + $0x10] sm:$0xff]
        %v1040 = vld [vmem:[%s1024 + $0x18] sm:$0xff]
        %v1041 = vld [vmem:[%s1024 + $0x20] sm:$0xff]
        %v1042 = vld [vmem:[%s1024 + $0x28] sm:$0xff]
        %v1043 = vld [vmem:[%s1024 + $0x30] sm:$0xff]
        %v1044 = vld [vmem:[%s1024 + $0x38] sm:$0xff]
        %1045 = vst.msk [vmem:[#allocation2 + $0x3] sm:$0xff] %vm1026, %v1037
        %1046 = vst.msk [vmem:[#allocation2 + $0xb] sm:$0xff] %vm1026, %v1038
        %1047 = vst.msk [vmem:[#allocation2 + $0x13] sm:$0xff] %vm1026, %v1039
        %1048 = vst.msk [vmem:[#allocation2 + $0x1b] sm:$0xff] %vm1026, %v1040
        %1049 = vst.msk [vmem:[#allocation2 + $0x23] sm:$0xff] %vm1026, %v1041
        %1050 = vst.msk [vmem:[#allocation2 + $0x2b] sm:$0xff] %vm1026, %v1042
        %1051 = vst.msk [vmem:[#allocation2 + $0x33] sm:$0xff] %vm1026, %v1043
        %1052 = vst.msk [vmem:[#allocation2 + $0x3b] sm:$0xff] %vm1026, %v1044
        %v1053 = vld [vmem:[#allocation2] sm:$0xff]
        %v1054 = vld [vmem:[#allocation2 + $0x8] sm:$0xff]
        %v1055 = vld [vmem:[#allocation2 + $0x10] sm:$0xff]
        %v1056 = vld [vmem:[#allocation2 + $0x18] sm:$0xff]
        %v1057 = vld [vmem:[#allocation2 + $0x20] sm:$0xff]
        %v1058 = vld [vmem:[#allocation2 + $0x28] sm:$0xff]
        %v1059 = vld [vmem:[#allocation2 + $0x30] sm:$0xff]
        %v1060 = vld [vmem:[#allocation2 + $0x38] sm:$0xff]
        %v1061 = vld [vmem:[%s1] sm:$0x1]
        %1063 = vset.pattern.permute.xlu0 0
        %1064 = vperm.xlu0 %1063, %v1053
        %v1065 = vpop.permute.xlu0 %1064
        %1068 = vset.pattern.permute.xlu0 0
        %1069 = vperm.xlu0 %1068, %v1054
        %v1070 = vpop.permute.xlu0 %1069
        %1073 = vset.pattern.permute.xlu0 0
        %1074 = vperm.xlu0 %1073, %v1055
        %v1075 = vpop.permute.xlu0 %1074
        %1078 = vset.pattern.permute.xlu0 0
        %1079 = vperm.xlu0 %1078, %v1056
        %v1080 = vpop.permute.xlu0 %1079
        %1083 = vset.pattern.permute.xlu0 0
        %1084 = vperm.xlu0 %1083, %v1057
        %v1085 = vpop.permute.xlu0 %1084
        %1088 = vset.pattern.permute.xlu0 0
        %1089 = vperm.xlu0 %1088, %v1058
        %v1090 = vpop.permute.xlu0 %1089
        %1093 = vset.pattern.permute.xlu0 0
        %1094 = vperm.xlu0 %1093, %v1059
        %v1095 = vpop.permute.xlu0 %1094
        %1098 = vset.pattern.permute.xlu0 0
        %1099 = vperm.xlu0 %1098, %v1060
        %v1100 = vpop.permute.xlu0 %1099
        %v1102 = vlaneseq
        %v1103 = vshrl.u32 %v1102, 7
        %v1104 = vsub.s32 0, %v1103
        %v1105 = vrot.slane %v1061, %v1104
        %v1106 = vmul.f32 %v1065, %v1105
        %v1107 = vmul.f32 %v1070, %v1105
        %v1108 = vmul.f32 %v1075, %v1105
        %v1109 = vmul.f32 %v1080, %v1105
        %v1110 = vmul.f32 %v1085, %v1105
        %v1111 = vmul.f32 %v1090, %v1105
        %v1112 = vmul.f32 %v1095, %v1105
        %v1113 = vmul.f32 %v1100, %v1105
        %v1114 = vadd.f32 %v1106, 0.0
        %v1115 = vadd.f32 %v1107, 0.0
        %v1116 = vadd.f32 %v1108, 0.0
        %v1117 = vadd.f32 %v1109, 0.0
        %v1118 = vadd.f32 %v1110, 0.0
        %v1119 = vadd.f32 %v1111, 0.0
        %v1120 = vadd.f32 %v1112, 0.0
        %v1121 = vadd.f32 %v1113, 0.0
        %v1122 = vld [vmem:[#allocation2 + $0x1] sm:$0xff]
        %v1123 = vld [vmem:[#allocation2 + $0x9] sm:$0xff]
        %v1124 = vld [vmem:[#allocation2 + $0x11] sm:$0xff]
        %v1125 = vld [vmem:[#allocation2 + $0x19] sm:$0xff]
        %v1126 = vld [vmem:[#allocation2 + $0x21] sm:$0xff]
        %v1127 = vld [vmem:[#allocation2 + $0x29] sm:$0xff]
        %v1128 = vld [vmem:[#allocation2 + $0x31] sm:$0xff]
        %v1129 = vld [vmem:[#allocation2 + $0x39] sm:$0xff]
        %v1130 = vld [vmem:[%s1 + $0x1] sm:$0x1]
        %1132 = vset.pattern.permute.xlu0 0
        %1133 = vperm.xlu0 %1132, %v1122
        %v1134 = vpop.permute.xlu0 %1133
        %1137 = vset.pattern.permute.xlu0 0
        %1138 = vperm.xlu0 %1137, %v1123
        %v1139 = vpop.permute.xlu0 %1138
        %1142 = vset.pattern.permute.xlu0 0
        %1143 = vperm.xlu0 %1142, %v1124
        %v1144 = vpop.permute.xlu0 %1143
        %1147 = vset.pattern.permute.xlu0 0
        %1148 = vperm.xlu0 %1147, %v1125
        %v1149 = vpop.permute.xlu0 %1148
        %1152 = vset.pattern.permute.xlu0 0
        %1153 = vperm.xlu0 %1152, %v1126
        %v1154 = vpop.permute.xlu0 %1153
        %1157 = vset.pattern.permute.xlu0 0
        %1158 = vperm.xlu0 %1157, %v1127
        %v1159 = vpop.permute.xlu0 %1158
        %1162 = vset.pattern.permute.xlu0 0
        %1163 = vperm.xlu0 %1162, %v1128
        %v1164 = vpop.permute.xlu0 %1163
        %1167 = vset.pattern.permute.xlu0 0
        %1168 = vperm.xlu0 %1167, %v1129
        %v1169 = vpop.permute.xlu0 %1168
        %v1171 = vlaneseq
        %v1172 = vshrl.u32 %v1171, 7
        %v1173 = vsub.s32 0, %v1172
        %v1174 = vrot.slane %v1130, %v1173
        %v1175 = vmul.f32 %v1134, %v1174
        %v1176 = vmul.f32 %v1139, %v1174
        %v1177 = vmul.f32 %v1144, %v1174
        %v1178 = vmul.f32 %v1149, %v1174
        %v1179 = vmul.f32 %v1154, %v1174
        %v1180 = vmul.f32 %v1159, %v1174
        %v1181 = vmul.f32 %v1164, %v1174
        %v1182 = vmul.f32 %v1169, %v1174
        %v1183 = vadd.f32 %v1114, %v1175
        %v1184 = vadd.f32 %v1115, %v1176
        %v1185 = vadd.f32 %v1116, %v1177
        %v1186 = vadd.f32 %v1117, %v1178
        %v1187 = vadd.f32 %v1118, %v1179
        %v1188 = vadd.f32 %v1119, %v1180
        %v1189 = vadd.f32 %v1120, %v1181
        %v1190 = vadd.f32 %v1121, %v1182
        %v1191 = vld [vmem:[#allocation2 + $0x2] sm:$0xff]
        %v1192 = vld [vmem:[#allocation2 + $0xa] sm:$0xff]
        %v1193 = vld [vmem:[#allocation2 + $0x12] sm:$0xff]
        %v1194 = vld [vmem:[#allocation2 + $0x1a] sm:$0xff]
        %v1195 = vld [vmem:[#allocation2 + $0x22] sm:$0xff]
        %v1196 = vld [vmem:[#allocation2 + $0x2a] sm:$0xff]
        %v1197 = vld [vmem:[#allocation2 + $0x32] sm:$0xff]
        %v1198 = vld [vmem:[#allocation2 + $0x3a] sm:$0xff]
        %v1199 = vld [vmem:[%s1 + $0x2] sm:$0x1]
        %1201 = vset.pattern.permute.xlu0 0
        %1202 = vperm.xlu0 %1201, %v1191
        %v1203 = vpop.permute.xlu0 %1202
        %1206 = vset.pattern.permute.xlu0 0
        %1207 = vperm.xlu0 %1206, %v1192
        %v1208 = vpop.permute.xlu0 %1207
        %1211 = vset.pattern.permute.xlu0 0
        %1212 = vperm.xlu0 %1211, %v1193
        %v1213 = vpop.permute.xlu0 %1212
        %1216 = vset.pattern.permute.xlu0 0
        %1217 = vperm.xlu0 %1216, %v1194
        %v1218 = vpop.permute.xlu0 %1217
        %1221 = vset.pattern.permute.xlu0 0
        %1222 = vperm.xlu0 %1221, %v1195
        %v1223 = vpop.permute.xlu0 %1222
        %1226 = vset.pattern.permute.xlu0 0
        %1227 = vperm.xlu0 %1226, %v1196
        %v1228 = vpop.permute.xlu0 %1227
        %1231 = vset.pattern.permute.xlu0 0
        %1232 = vperm.xlu0 %1231, %v1197
        %v1233 = vpop.permute.xlu0 %1232
        %1236 = vset.pattern.permute.xlu0 0
        %1237 = vperm.xlu0 %1236, %v1198
        %v1238 = vpop.permute.xlu0 %1237
        %v1240 = vlaneseq
        %v1241 = vshrl.u32 %v1240, 7
        %v1242 = vsub.s32 0, %v1241
        %v1243 = vrot.slane %v1199, %v1242
        %v1244 = vmul.f32 %v1203, %v1243
        %v1245 = vmul.f32 %v1208, %v1243
        %v1246 = vmul.f32 %v1213, %v1243
        %v1247 = vmul.f32 %v1218, %v1243
        %v1248 = vmul.f32 %v1223, %v1243
        %v1249 = vmul.f32 %v1228, %v1243
        %v1250 = vmul.f32 %v1233, %v1243
        %v1251 = vmul.f32 %v1238, %v1243
        %v1252 = vadd.f32 %v1183, %v1244
        %v1253 = vadd.f32 %v1184, %v1245
        %v1254 = vadd.f32 %v1185, %v1246
        %v1255 = vadd.f32 %v1186, %v1247
        %v1256 = vadd.f32 %v1187, %v1248
        %v1257 = vadd.f32 %v1188, %v1249
        %v1258 = vadd.f32 %v1189, %v1250
        %v1259 = vadd.f32 %v1190, %v1251
        %v1260 = vld [vmem:[#allocation2 + $0x3] sm:$0xff]
        %v1261 = vld [vmem:[#allocation2 + $0xb] sm:$0xff]
        %v1262 = vld [vmem:[#allocation2 + $0x13] sm:$0xff]
        %v1263 = vld [vmem:[#allocation2 + $0x1b] sm:$0xff]
        %v1264 = vld [vmem:[#allocation2 + $0x23] sm:$0xff]
        %v1265 = vld [vmem:[#allocation2 + $0x2b] sm:$0xff]
        %v1266 = vld [vmem:[#allocation2 + $0x33] sm:$0xff]
        %v1267 = vld [vmem:[#allocation2 + $0x3b] sm:$0xff]
        %v1268 = vld [vmem:[%s1 + $0x3] sm:$0x1]
        %1270 = vset.pattern.permute.xlu0 0
        %1271 = vperm.xlu0 %1270, %v1260
        %v1272 = vpop.permute.xlu0 %1271
        %1275 = vset.pattern.permute.xlu0 0
        %1276 = vperm.xlu0 %1275, %v1261
        %v1277 = vpop.permute.xlu0 %1276
        %1280 = vset.pattern.permute.xlu0 0
        %1281 = vperm.xlu0 %1280, %v1262
        %v1282 = vpop.permute.xlu0 %1281
        %1285 = vset.pattern.permute.xlu0 0
        %1286 = vperm.xlu0 %1285, %v1263
        %v1287 = vpop.permute.xlu0 %1286
        %1290 = vset.pattern.permute.xlu0 0
        %1291 = vperm.xlu0 %1290, %v1264
        %v1292 = vpop.permute.xlu0 %1291
        %1295 = vset.pattern.permute.xlu0 0
        %1296 = vperm.xlu0 %1295, %v1265
        %v1297 = vpop.permute.xlu0 %1296
        %1300 = vset.pattern.permute.xlu0 0
        %1301 = vperm.xlu0 %1300, %v1266
        %v1302 = vpop.permute.xlu0 %1301
        %1305 = vset.pattern.permute.xlu0 0
        %1306 = vperm.xlu0 %1305, %v1267
        %v1307 = vpop.permute.xlu0 %1306
        %v1309 = vlaneseq
        %v1310 = vshrl.u32 %v1309, 7
        %v1311 = vsub.s32 0, %v1310
        %v1312 = vrot.slane %v1268, %v1311
        %v1313 = vmul.f32 %v1272, %v1312
        %v1314 = vmul.f32 %v1277, %v1312
        %v1315 = vmul.f32 %v1282, %v1312
        %v1316 = vmul.f32 %v1287, %v1312
        %v1317 = vmul.f32 %v1292, %v1312
        %v1318 = vmul.f32 %v1297, %v1312
        %v1319 = vmul.f32 %v1302, %v1312
        %v1320 = vmul.f32 %v1307, %v1312
        %v1321 = vadd.f32 %v1252, %v1313
        %v1322 = vadd.f32 %v1253, %v1314
        %v1323 = vadd.f32 %v1254, %v1315
        %v1324 = vadd.f32 %v1255, %v1316
        %v1325 = vadd.f32 %v1256, %v1317
        %v1326 = vadd.f32 %v1257, %v1318
        %v1327 = vadd.f32 %v1258, %v1319
        %v1328 = vadd.f32 %v1259, %v1320
        %v1329 = vld [vmem:[#allocation2 + $0x4] sm:$0xff]
        %v1330 = vld [vmem:[#allocation2 + $0xc] sm:$0xff]
        %v1331 = vld [vmem:[#allocation2 + $0x14] sm:$0xff]
        %v1332 = vld [vmem:[#allocation2 + $0x1c] sm:$0xff]
        %v1333 = vld [vmem:[#allocation2 + $0x24] sm:$0xff]
        %v1334 = vld [vmem:[#allocation2 + $0x2c] sm:$0xff]
        %v1335 = vld [vmem:[#allocation2 + $0x34] sm:$0xff]
        %v1336 = vld [vmem:[#allocation2 + $0x3c] sm:$0xff]
        %v1337 = vld [vmem:[%s1 + $0x4] sm:$0x1]
        %1339 = vset.pattern.permute.xlu0 0
        %1340 = vperm.xlu0 %1339, %v1329
        %v1341 = vpop.permute.xlu0 %1340
        %1344 = vset.pattern.permute.xlu0 0
        %1345 = vperm.xlu0 %1344, %v1330
        %v1346 = vpop.permute.xlu0 %1345
        %1349 = vset.pattern.permute.xlu0 0
        %1350 = vperm.xlu0 %1349, %v1331
        %v1351 = vpop.permute.xlu0 %1350
        %1354 = vset.pattern.permute.xlu0 0
        %1355 = vperm.xlu0 %1354, %v1332
        %v1356 = vpop.permute.xlu0 %1355
        %1359 = vset.pattern.permute.xlu0 0
        %1360 = vperm.xlu0 %1359, %v1333
        %v1361 = vpop.permute.xlu0 %1360
        %1364 = vset.pattern.permute.xlu0 0
        %1365 = vperm.xlu0 %1364, %v1334
        %v1366 = vpop.permute.xlu0 %1365
        %1369 = vset.pattern.permute.xlu0 0
        %1370 = vperm.xlu0 %1369, %v1335
        %v1371 = vpop.permute.xlu0 %1370
        %1374 = vset.pattern.permute.xlu0 0
        %1375 = vperm.xlu0 %1374, %v1336
        %v1376 = vpop.permute.xlu0 %1375
        %v1378 = vlaneseq
        %v1379 = vshrl.u32 %v1378, 7
        %v1380 = vsub.s32 0, %v1379
        %v1381 = vrot.slane %v1337, %v1380
        %v1382 = vmul.f32 %v1341, %v1381
        %v1383 = vmul.f32 %v1346, %v1381
        %v1384 = vmul.f32 %v1351, %v1381
        %v1385 = vmul.f32 %v1356, %v1381
        %v1386 = vmul.f32 %v1361, %v1381
        %v1387 = vmul.f32 %v1366, %v1381
        %v1388 = vmul.f32 %v1371, %v1381
        %v1389 = vmul.f32 %v1376, %v1381
        %v1390 = vadd.f32 %v1321, %v1382
        %v1391 = vadd.f32 %v1322, %v1383
        %v1392 = vadd.f32 %v1323, %v1384
        %v1393 = vadd.f32 %v1324, %v1385
        %v1394 = vadd.f32 %v1325, %v1386
        %v1395 = vadd.f32 %v1326, %v1387
        %v1396 = vadd.f32 %v1327, %v1388
        %v1397 = vadd.f32 %v1328, %v1389
        %v1398 = vld [vmem:[#allocation2 + $0x5] sm:$0xff]
        %v1399 = vld [vmem:[#allocation2 + $0xd] sm:$0xff]
        %v1400 = vld [vmem:[#allocation2 + $0x15] sm:$0xff]
        %v1401 = vld [vmem:[#allocation2 + $0x1d] sm:$0xff]
        %v1402 = vld [vmem:[#allocation2 + $0x25] sm:$0xff]
        %v1403 = vld [vmem:[#allocation2 + $0x2d] sm:$0xff]
        %v1404 = vld [vmem:[#allocation2 + $0x35] sm:$0xff]
        %v1405 = vld [vmem:[#allocation2 + $0x3d] sm:$0xff]
        %v1406 = vld [vmem:[%s1 + $0x5] sm:$0x1]
        %1408 = vset.pattern.permute.xlu0 0
        %1409 = vperm.xlu0 %1408, %v1398
        %v1410 = vpop.permute.xlu0 %1409
        %1413 = vset.pattern.permute.xlu0 0
        %1414 = vperm.xlu0 %1413, %v1399
        %v1415 = vpop.permute.xlu0 %1414
        %1418 = vset.pattern.permute.xlu0 0
        %1419 = vperm.xlu0 %1418, %v1400
        %v1420 = vpop.permute.xlu0 %1419
        %1423 = vset.pattern.permute.xlu0 0
        %1424 = vperm.xlu0 %1423, %v1401
        %v1425 = vpop.permute.xlu0 %1424
        %1428 = vset.pattern.permute.xlu0 0
        %1429 = vperm.xlu0 %1428, %v1402
        %v1430 = vpop.permute.xlu0 %1429
        %1433 = vset.pattern.permute.xlu0 0
        %1434 = vperm.xlu0 %1433, %v1403
        %v1435 = vpop.permute.xlu0 %1434
        %1438 = vset.pattern.permute.xlu0 0
        %1439 = vperm.xlu0 %1438, %v1404
        %v1440 = vpop.permute.xlu0 %1439
        %1443 = vset.pattern.permute.xlu0 0
        %1444 = vperm.xlu0 %1443, %v1405
        %v1445 = vpop.permute.xlu0 %1444
        %v1447 = vlaneseq
        %v1448 = vshrl.u32 %v1447, 7
        %v1449 = vsub.s32 0, %v1448
        %v1450 = vrot.slane %v1406, %v1449
        %v1451 = vmul.f32 %v1410, %v1450
        %v1452 = vmul.f32 %v1415, %v1450
        %v1453 = vmul.f32 %v1420, %v1450
        %v1454 = vmul.f32 %v1425, %v1450
        %v1455 = vmul.f32 %v1430, %v1450
        %v1456 = vmul.f32 %v1435, %v1450
        %v1457 = vmul.f32 %v1440, %v1450
        %v1458 = vmul.f32 %v1445, %v1450
        %v1459 = vadd.f32 %v1390, %v1451
        %v1460 = vadd.f32 %v1391, %v1452
        %v1461 = vadd.f32 %v1392, %v1453
        %v1462 = vadd.f32 %v1393, %v1454
        %v1463 = vadd.f32 %v1394, %v1455
        %v1464 = vadd.f32 %v1395, %v1456
        %v1465 = vadd.f32 %v1396, %v1457
        %v1466 = vadd.f32 %v1397, %v1458
        %v1467 = vld [vmem:[#allocation2 + $0x6] sm:$0xff]
        %v1468 = vld [vmem:[#allocation2 + $0xe] sm:$0xff]
        %v1469 = vld [vmem:[#allocation2 + $0x16] sm:$0xff]
        %v1470 = vld [vmem:[#allocation2 + $0x1e] sm:$0xff]
        %v1471 = vld [vmem:[#allocation2 + $0x26] sm:$0xff]
        %v1472 = vld [vmem:[#allocation2 + $0x2e] sm:$0xff]
        %v1473 = vld [vmem:[#allocation2 + $0x36] sm:$0xff]
        %v1474 = vld [vmem:[#allocation2 + $0x3e] sm:$0xff]
        %v1475 = vld [vmem:[%s1 + $0x6] sm:$0x1]
        %1477 = vset.pattern.permute.xlu0 0
        %1478 = vperm.xlu0 %1477, %v1467
        %v1479 = vpop.permute.xlu0 %1478
        %1482 = vset.pattern.permute.xlu0 0
        %1483 = vperm.xlu0 %1482, %v1468
        %v1484 = vpop.permute.xlu0 %1483
        %1487 = vset.pattern.permute.xlu0 0
        %1488 = vperm.xlu0 %1487, %v1469
        %v1489 = vpop.permute.xlu0 %1488
        %1492 = vset.pattern.permute.xlu0 0
        %1493 = vperm.xlu0 %1492, %v1470
        %v1494 = vpop.permute.xlu0 %1493
        %1497 = vset.pattern.permute.xlu0 0
        %1498 = vperm.xlu0 %1497, %v1471
        %v1499 = vpop.permute.xlu0 %1498
        %1502 = vset.pattern.permute.xlu0 0
        %1503 = vperm.xlu0 %1502, %v1472
        %v1504 = vpop.permute.xlu0 %1503
        %1507 = vset.pattern.permute.xlu0 0
        %1508 = vperm.xlu0 %1507, %v1473
        %v1509 = vpop.permute.xlu0 %1508
        %1512 = vset.pattern.permute.xlu0 0
        %1513 = vperm.xlu0 %1512, %v1474
        %v1514 = vpop.permute.xlu0 %1513
        %v1516 = vlaneseq
        %v1517 = vshrl.u32 %v1516, 7
        %v1518 = vsub.s32 0, %v1517
        %v1519 = vrot.slane %v1475, %v1518
        %v1520 = vmul.f32 %v1479, %v1519
        %v1521 = vmul.f32 %v1484, %v1519
        %v1522 = vmul.f32 %v1489, %v1519
        %v1523 = vmul.f32 %v1494, %v1519
        %v1524 = vmul.f32 %v1499, %v1519
        %v1525 = vmul.f32 %v1504, %v1519
        %v1526 = vmul.f32 %v1509, %v1519
        %v1527 = vmul.f32 %v1514, %v1519
        %v1528 = vadd.f32 %v1459, %v1520
        %v1529 = vadd.f32 %v1460, %v1521
        %v1530 = vadd.f32 %v1461, %v1522
        %v1531 = vadd.f32 %v1462, %v1523
        %v1532 = vadd.f32 %v1463, %v1524
        %v1533 = vadd.f32 %v1464, %v1525
        %v1534 = vadd.f32 %v1465, %v1526
        %v1535 = vadd.f32 %v1466, %v1527
        %v1536 = vld [vmem:[%s2] sm:$0x1]
        %v1538 = vlaneseq
        %v1539 = vshrl.u32 %v1538, 7
        %v1540 = vsub.s32 0, %v1539
        %v1541 = vrot.slane %v1536, %v1540
        %v1543 = vadd.f32 %v1528, %v1541
        %v1544 = vadd.f32 %v1529, %v1541
        %v1545 = vadd.f32 %v1530, %v1541
        %v1546 = vadd.f32 %v1531, %v1541
        %v1547 = vadd.f32 %v1532, %v1541
        %v1548 = vadd.f32 %v1533, %v1541
        %v1549 = vadd.f32 %v1534, %v1541
        %v1550 = vadd.f32 %v1535, %v1541
        %v1551 = vmax.f32 %v1543, 0.0
        %v1552 = vmax.f32 %v1544, 0.0
        %v1553 = vmax.f32 %v1545, 0.0
        %v1554 = vmax.f32 %v1546, 0.0
        %v1555 = vmax.f32 %v1547, 0.0
        %v1556 = vmax.f32 %v1548, 0.0
        %v1557 = vmax.f32 %v1549, 0.0
        %v1558 = vmax.f32 %v1550, 0.0
        %v1559 = vlaneseq
        %v1560 = vand.u32 %v1559, 127
        %v1561 = vlaneseq
        %v1562 = vshrl.u32 %v1561, 7
        %v1563 = vadd.s32 %v1562, 8
        %v1564 = vadd.s32 %v1562, 16
        %v1565 = vadd.s32 %v1562, 24
        %v1566 = vmul.u32 %v1562, 2
        %v1567 = vmul.u32 %v1563, 2
        %v1568 = vmul.u32 %v1564, 2
        %v1569 = vmul.u32 %v1565, 2
        %vm1570 = vcmp.eq.s32.totalorder %v1560, %v1566
        %vm1571 = vcmp.eq.s32.totalorder %v1560, %v1567
        %vm1572 = vcmp.eq.s32.totalorder %v1560, %v1568
        %vm1573 = vcmp.eq.s32.totalorder %v1560, %v1569
        %v1574 = vsel %vm1570, 1, 0
        %v1575 = vsel %vm1571, 1, 0
        %v1576 = vsel %vm1572, 1, 0
        %v1577 = vsel %vm1573, 1, 0
        %v1578 = vcvt.s32.f32 %v1574
        %v1579 = vcvt.s32.f32 %v1575
        %v1580 = vcvt.s32.f32 %v1576
        %v1581 = vcvt.s32.f32 %v1577
        %vm1582 = vcmask 523264
        %v1584 = vsel %vm1582, %v1578, 0
        %v1587 = vsel %vm1582, %v1579, 0
        %v1590 = vsel %vm1582, %v1580, 0
        %v1593 = vsel %vm1582, %v1581, 0
        %1595 = vmatprep.subr.mxu0 0.0
        %1596 = vmatpush1.msra.mxu0 %v1551
        %1597 = vmatprep.subr.mxu0 0.0
        %1598 = vmatpush1.msra.mxu0 %v1552
        %1599 = vmatprep.subr.mxu0 0.0
        %1600 = vmatpush1.msra.mxu0 %v1553
        %1601 = vmatprep.subr.mxu0 0.0
        %1602 = vmatpush1.msra.mxu0 %v1554
        %1603 = vmatprep.subr.mxu0 0.0
        %1604 = vmatpush1.msra.mxu0 %v1555
        %1605 = vmatprep.subr.mxu0 0.0
        %1606 = vmatpush1.msra.mxu0 %v1556
        %1607 = vmatprep.subr.mxu0 0.0
        %1608 = vmatpush1.msra.mxu0 %v1557
        %1609 = vmatprep.subr.mxu0 0.0
        %1610 = vmatpush1.msra.mxu0 %v1558
        %1611 = vmatprep.subr.mxu0 0.0
        %1612 = vmatpush1.msra.mxu0 0.0
        %1613 = vmatprep.subr.mxu0 0.0
        %1614 = vmatpush1.msra.mxu0 0.0
        %1615 = vmatprep.subr.mxu0 0.0
        %1616 = vmatpush1.msra.mxu0 0.0
        %1617 = vmatprep.subr.mxu0 0.0
        %1618 = vmatpush1.msra.mxu0 0.0
        %1619 = vmatprep.subr.mxu0 0.0
        %1620 = vmatpush1.msra.mxu0 0.0
        %1621 = vmatprep.subr.mxu0 0.0
        %1622 = vmatpush1.msra.mxu0 0.0
        %1623 = vmatprep.subr.mxu0 0.0
        %1624 = vmatpush1.msra.mxu0 0.0
        %1625 = vmatprep.subr.mxu0 0.0
        %1626 = vmatpush1.msra.mxu0 0.0
        %1627 = vmatprep.subr.mxu0 0.0
        %1628 = vmatpush1.msra.mxu0 0.0
        %1629 = vmatprep.subr.mxu0 0.0
        %1630 = vmatpush1.msra.mxu0 0.0
        %1631 = vmatprep.subr.mxu0 0.0
        %1632 = vmatpush1.msra.mxu0 0.0
        %1633 = vmatprep.subr.mxu0 0.0
        %1634 = vmatpush1.msra.mxu0 0.0
        %1635 = vmatprep.subr.mxu0 0.0
        %1636 = vmatpush1.msra.mxu0 0.0
        %1637 = vmatprep.subr.mxu0 0.0
        %1638 = vmatpush1.msra.mxu0 0.0
        %1639 = vmatprep.subr.mxu0 0.0
        %1640 = vmatpush1.msra.mxu0 0.0
        %1641 = vmatprep.subr.mxu0 0.0
        %1642 = vmatpush1.msra.mxu0 0.0
        %1643 = vmatprep.subr.mxu0 0.0
        %1644 = vmatpush1.msra.mxu0 0.0
        %1645 = vmatprep.subr.mxu0 0.0
        %1646 = vmatpush1.msra.mxu0 0.0
        %1647 = vmatprep.subr.mxu0 0.0
        %1648 = vmatpush1.msra.mxu0 0.0
        %1649 = vmatprep.subr.mxu0 0.0
        %1650 = vmatpush1.msra.mxu0 0.0
        %1651 = vmatprep.subr.mxu0 0.0
        %1652 = vmatpush1.msra.mxu0 0.0
        %1653 = vmatprep.subr.mxu0 0.0
        %1654 = vmatpush1.msra.mxu0 0.0
        %1655 = vmatprep.subr.mxu0 0.0
        %1656 = vmatpush1.msra.mxu0 0.0
        %1657 = vmatprep.subr.mxu0 0.0
        %1658 = vmatpush1.msra.mxu0 0.0
        %1659 = vmatprep.mubr.f32.mxu0 0.0
        %1660 = vmatmul.mubr.f32.gmra.mrb[0].mxu0 %v1584
        %v1661 = vpop.f32.mrb[0].mxu0
        %v1662 = vadd.f32 0.0, %v1661
        %v1663 = vpop.f32.mrb[0].mxu0
        %1664 = vmatprep.mubr.f32.mxu0 0.0
        %1665 = vmatmul.mubr.f32.gmra.mrb[0].mxu0 %v1587
        %v1666 = vpop.f32.mrb[0].mxu0
        %v1667 = vadd.f32 0.0, %v1666
        %v1668 = vpop.f32.mrb[0].mxu0
        %1669 = vmatprep.mubr.f32.mxu0 0.0
        %1670 = vmatmul.mubr.f32.gmra.mrb[0].mxu0 %v1590
        %v1671 = vpop.f32.mrb[0].mxu0
        %v1672 = vadd.f32 0.0, %v1671
        %v1673 = vpop.f32.mrb[0].mxu0
        %1674 = vmatprep.mubr.f32.mxu0 0.0
        %1675 = vmatmul.mubr.f32.gmra.mrb[0].mxu0 %v1593
        %v1676 = vpop.f32.mrb[0].mxu0
        %v1677 = vadd.f32 0.0, %v1676
        %v1678 = vpop.f32.mrb[0].mxu0
        %1679 = vdwg.mxu0
        %vm1680 = vcmask 261120
        %1681 = vst.msk [vmem:[#allocation3] sm:$0xff] %vm1680, 0.0
        %1682 = vst.msk [vmem:[#allocation3 + $0x8] sm:$0xff] %vm1680, 0.0
        %1683 = vst.msk [vmem:[#allocation3 + $0x10] sm:$0xff] %vm1680, 0.0
        %1684 = vst.msk [vmem:[#allocation3 + $0x18] sm:$0xff] %vm1680, 0.0
        %vm1685 = vcmask 254976
        %1686 = vst.msk [vmem:[#allocation3 + $0x20] sm:$0x3] %vm1685, 0.0
        %1687 = vst.msk [vmem:[#allocation3 + $0x1] sm:$0xff] %vm1680, %v1662
        %1688 = vst.msk [vmem:[#allocation3 + $0x9] sm:$0xff] %vm1680, %v1667
        %1689 = vst.msk [vmem:[#allocation3 + $0x11] sm:$0xff] %vm1680, %v1672
        %1690 = vst.msk [vmem:[#allocation3 + $0x19] sm:$0xff] %vm1680, %v1677
        %v1691 = vld [vmem:[#allocation3] sm:$0xff]
        %v1692 = vld [vmem:[#allocation3 + $0x8] sm:$0xff]
        %v1693 = vld [vmem:[#allocation3 + $0x10] sm:$0xff]
        %v1694 = vld [vmem:[#allocation3 + $0x18] sm:$0xff]
        %v1695 = vld [vmem:[#allocation3 + $0x1] sm:$0xff]
        %v1696 = vld [vmem:[#allocation3 + $0x9] sm:$0xff]
        %v1697 = vld [vmem:[#allocation3 + $0x11] sm:$0xff]
        %v1698 = vld [vmem:[#allocation3 + $0x19] sm:$0xff]
        %v1699 = vmax.f32 %v1691, %v1695
        %v1700 = vmax.f32 %v1692, %v1696
        %v1701 = vmax.f32 %v1693, %v1697
        %v1702 = vmax.f32 %v1694, %v1698
        %v1703 = vld [vmem:[#allocation3 + $0x2] sm:$0xff]
        %v1704 = vld [vmem:[#allocation3 + $0xa] sm:$0xff]
        %v1705 = vld [vmem:[#allocation3 + $0x12] sm:$0xff]
        %v1706 = vld [vmem:[#allocation3 + $0x1a] sm:$0xff]
        %v1707 = vmax.f32 %v1699, %v1703
        %v1708 = vmax.f32 %v1700, %v1704
        %v1709 = vmax.f32 %v1701, %v1705
        %v1710 = vmax.f32 %v1702, %v1706
        %v1711 = vsel %vm1680, %v1578, 0
        %v1713 = vsel %vm1680, %v1579, 0
        %1715 = vmatprep.subr.mxu0 0.0
        %1716 = vmatpush1.msra.mxu0 %v1707
        %1717 = vmatprep.subr.mxu0 0.0
        %1718 = vmatpush1.msra.mxu0 %v1708
        %1719 = vmatprep.subr.mxu0 0.0
        %1720 = vmatpush1.msra.mxu0 %v1709
        %1721 = vmatprep.subr.mxu0 0.0
        %1722 = vmatpush1.msra.mxu0 %v1710
        %1723 = vmatprep.subr.mxu0 0.0
        %1724 = vmatpush1.msra.mxu0 0.0
        %1725 = vmatprep.subr.mxu0 0.0
        %1726 = vmatpush1.msra.mxu0 0.0
        %1727 = vmatprep.subr.mxu0 0.0
        %1728 = vmatpush1.msra.mxu0 0.0
        %1729 = vmatprep.subr.mxu0 0.0
        %1730 = vmatpush1.msra.mxu0 0.0
        %1731 = vmatprep.subr.mxu0 0.0
        %1732 = vmatpush1.msra.mxu0 0.0
        %1733 = vmatprep.subr.mxu0 0.0
        %1734 = vmatpush1.msra.mxu0 0.0
        %1735 = vmatprep.subr.mxu0 0.0
        %1736 = vmatpush1.msra.mxu0 0.0
        %1737 = vmatprep.subr.mxu0 0.0
        %1738 = vmatpush1.msra.mxu0 0.0
        %1739 = vmatprep.subr.mxu0 0.0
        %1740 = vmatpush1.msra.mxu0 0.0
        %1741 = vmatprep.subr.mxu0 0.0
        %1742 = vmatpush1.msra.mxu0 0.0
        %1743 = vmatprep.subr.mxu0 0.0
        %1744 = vmatpush1.msra.mxu0 0.0
        %1745 = vmatprep.subr.mxu0 0.0
        %1746 = vmatpush1.msra.mxu0 0.0
        %1747 = vmatprep.subr.mxu0 0.0
        %1748 = vmatpush1.msra.mxu0 0.0
        %1749 = vmatprep.subr.mxu0 0.0
        %1750 = vmatpush1.msra.mxu0 0.0
        %1751 = vmatprep.subr.mxu0 0.0
        %1752 = vmatpush1.msra.mxu0 0.0
        %1753 = vmatprep.subr.mxu0 0.0
        %1754 = vmatpush1.msra.mxu0 0.0
        %1755 = vmatprep.subr.mxu0 0.0
        %1756 = vmatpush1.msra.mxu0 0.0
        %1757 = vmatprep.subr.mxu0 0.0
        %1758 = vmatpush1.msra.mxu0 0.0
        %1759 = vmatprep.subr.mxu0 0.0
        %1760 = vmatpush1.msra.mxu0 0.0
        %1761 = vmatprep.subr.mxu0 0.0
        %1762 = vmatpush1.msra.mxu0 0.0
        %1763 = vmatprep.subr.mxu0 0.0
        %1764 = vmatpush1.msra.mxu0 0.0
        %1765 = vmatprep.subr.mxu0 0.0
        %1766 = vmatpush1.msra.mxu0 0.0
        %1767 = vmatprep.subr.mxu0 0.0
        %1768 = vmatpush1.msra.mxu0 0.0
        %1769 = vmatprep.subr.mxu0 0.0
        %1770 = vmatpush1.msra.mxu0 0.0
        %1771 = vmatprep.subr.mxu0 0.0
        %1772 = vmatpush1.msra.mxu0 0.0
        %1773 = vmatprep.subr.mxu0 0.0
        %1774 = vmatpush1.msra.mxu0 0.0
        %1775 = vmatprep.subr.mxu0 0.0
        %1776 = vmatpush1.msra.mxu0 0.0
        %1777 = vmatprep.subr.mxu0 0.0
        %1778 = vmatpush1.msra.mxu0 0.0
        %1779 = vmatprep.mubr.f32.mxu0 0.0
        %1780 = vmatmul.mubr.f32.gmra.mrb[0].mxu0 %v1711
        %v1781 = vpop.f32.mrb[0].mxu0
        %v1782 = vadd.f32 0.0, %v1781
        %v1783 = vpop.f32.mrb[0].mxu0
        %1784 = vmatprep.mubr.f32.mxu0 0.0
        %1785 = vmatmul.mubr.f32.gmra.mrb[0].mxu0 %v1713
        %v1786 = vpop.f32.mrb[0].mxu0
        %v1787 = vadd.f32 0.0, %v1786
        %v1788 = vpop.f32.mrb[0].mxu0
        %1789 = vdwg.mxu0
        %vm1790 = vcmask 257024
        %1791 = vst.msk [vmem:[#allocation4] sm:$0xf] %vm1790, 0
        %1792 = vst.msk [vmem:[#allocation4 + $0x4] sm:$0xf] %vm1790, 0
        %vm1793 = vcmask 253952
        %1794 = vst.msk [vmem:[#allocation4 + $0x8] sm:$0x1] %vm1793, 0
        %v1795 = vpack.c.bf16 %v1787, %v1782
        %v1797 = vunpack.c.l.b16 %v1795
        %v1798 = vunpack.c.h.b16 %v1795
        %v1799 = vpack.c.b16 %v1797, %v1797
        %v1800 = vpack.c.b16 %v1798, %v1798
        %vm1801 = vsmask.f32 256
        %vm1802 = vsmask.f32 4368
        %vm1803 = vmor %vm1801, %vm1802
        %v1805 = vshrl.u32 %v1799, 16
        %v1807 = vrot.slane %v1805, 7
        %v1808 = vshll.u32 %v1799, 16
        %v1810 = vor.u32 %v1807, %v1808
        %v1811 = vrot.slane %v1807, 4
        %v1813 = vshrl.u32 %v1800, 16
        %v1815 = vrot.slane %v1813, 7
        %v1816 = vshll.u32 %v1800, 16
        %v1818 = vor.u32 %v1815, %v1816
        %v1819 = vsel %vm1803, %v1811, %v1818
        %v1820 = vrot.slane %v1815, 4
        %vm1824 = vcmask 257024
        %vm1825 = vsmask.f32 7938
        %vm1826 = vmand %vm1824, %vm1825
        %v1827 = vld [vmem:[#allocation4] sm:$0xf]
        %v1828 = vsel %vm1826, %v1810, %v1827
        %1829 = vst [vmem:[#allocation4] sm:$0xf] %v1828
        %1830 = vst.msk [vmem:[#allocation4 + $0x4] sm:$0xf] %vm1790, %v1819
        %vm1831 = vcmask 253952
        %vm1832 = vmand %vm1831, %vm1801
        %v1833 = vld [vmem:[#allocation4 + $0x8] sm:$0x1]
        %v1834 = vsel %vm1832, %v1820, %v1833
        %1835 = vst [vmem:[#allocation4 + $0x8] sm:$0x1] %v1834
        %v1836 = vld [vmem:[#allocation4] sm:$0xf]
        %v1837 = vld [vmem:[#allocation4 + $0x4] sm:$0xf]
        %v1838 = vld [vmem:[%s3] sm:$0xf]
        %v1839 = vld [vmem:[%s3 + $0x4] sm:$0xf]
        %v1840 = vld [vmem:[%s3 + $0x8] sm:$0xf]
        %v1841 = vld [vmem:[%s3 + $0xc] sm:$0xf]
        %v1842 = vld [vmem:[#allocation4 + $0x8] sm:$0x1]
        %v1843 = vld [vmem:[%s3 + $0x10] sm:$0xf]
        %v1844 = vld [vmem:[%s3 + $0x14] sm:$0xf]
        %v1845 = vld [vmem:[%s3 + $0x18] sm:$0xf]
        %v1846 = vld [vmem:[%s3 + $0x1c] sm:$0xf]
        %v1850 = vunpack.c.l.b16 %v1836
        %v1851 = vunpack.c.l.b16 %v1837
        %v1852 = vunpack.c.l.b16 %v1842
        %v1853 = vpack.c.b16 %v1851, %v1850
        %v1854 = vpack.c.b16 %v1852, %v1852
        %vm1855 = vsmask.f32 7424
        %v1857 = vshrl.u32 %v1853, 16
        %v1859 = vshll.u32 %v1853, 16
        %v1861 = vrot.slane %v1859, 1
        %v1862 = vor.u32 %v1857, %v1861
        %v1864 = vshll.u32 %v1854, 16
        %v1866 = vrot.slane %v1864, 1
        %v1867 = vsel %vm1855, %v1862, %v1866
        %v1872 = vunpack.c.l.b16 %v1843
        %v1873 = vunpack.c.l.b16 %v1844
        %v1874 = vunpack.c.l.b16 %v1845
        %v1875 = vunpack.c.l.b16 %v1846
        %v1876 = vpack.c.b16 %v1873, %v1872
        %v1877 = vpack.c.b16 %v1875, %v1874
        %v1881 = vsel %vm1680, %v1867, 0
        %1883 = vmatprep.subr.bf16.mxu0 0
        %1884 = vmatpush1.bf16.msra.mxu0 %v1876
        %1885 = vmatprep.subr.bf16.mxu0 0
        %1886 = vmatpush1.bf16.msra.mxu0 %v1877
        %1887 = vmatprep.subr.bf16.mxu0 0
        %1888 = vmatpush1.bf16.msra.mxu0 0
        %1889 = vmatprep.subr.bf16.mxu0 0
        %1890 = vmatpush1.bf16.msra.mxu0 0
        %1891 = vmatprep.subr.bf16.mxu0 0
        %1892 = vmatpush1.bf16.msra.mxu0 0
        %1893 = vmatprep.subr.bf16.mxu0 0
        %1894 = vmatpush1.bf16.msra.mxu0 0
        %1895 = vmatprep.subr.bf16.mxu0 0
        %1896 = vmatpush1.bf16.msra.mxu0 0
        %1897 = vmatprep.subr.bf16.mxu0 0
        %1898 = vmatpush1.bf16.msra.mxu0 0
        %1899 = vmatprep.subr.bf16.mxu0 0
        %1900 = vmatpush1.bf16.msra.mxu0 0
        %1901 = vmatprep.subr.bf16.mxu0 0
        %1902 = vmatpush1.bf16.msra.mxu0 0
        %1903 = vmatprep.subr.bf16.mxu0 0
        %1904 = vmatpush1.bf16.msra.mxu0 0
        %1905 = vmatprep.subr.bf16.mxu0 0
        %1906 = vmatpush1.bf16.msra.mxu0 0
        %1907 = vmatprep.subr.bf16.mxu0 0
        %1908 = vmatpush1.bf16.msra.mxu0 0
        %1909 = vmatprep.subr.bf16.mxu0 0
        %1910 = vmatpush1.bf16.msra.mxu0 0
        %1911 = vmatprep.subr.bf16.mxu0 0
        %1912 = vmatpush1.bf16.msra.mxu0 0
        %1913 = vmatprep.subr.bf16.mxu0 0
        %1914 = vmatpush1.bf16.msra.mxu0 0
        %1915 = vmatprep.mubr.bf16.mxu0 0
        %1916 = vmatmul.mubr.bf16.gmra.mrb[0].mxu0 %v1881
        %v1917 = vpop.f32.mrb[0].mxu0
        %v1918 = vadd.f32 0.0, %v1917
        %v1919 = vpop.f32.mrb[0].mxu0
        %v1920 = vpop.f32.mrb[0].mxu0
        %v1921 = vadd.f32 0.0, %v1920
        %v1922 = vpop.f32.mrb[0].mxu0
        %1923 = vdwg.mxu0
        %v1928 = vunpack.c.l.b16 %v1838
        %v1929 = vunpack.c.l.b16 %v1839
        %v1930 = vunpack.c.l.b16 %v1840
        %v1931 = vunpack.c.l.b16 %v1841
        %v1932 = vpack.c.b16 %v1929, %v1928
        %v1933 = vpack.c.b16 %v1931, %v1930
        %v1936 = vsel %vm1680, %v1853, 0
        %1938 = vmatprep.subr.bf16.mxu0 0
        %1939 = vmatpush1.bf16.msra.mxu0 %v1932
        %1940 = vmatprep.subr.bf16.mxu0 0
        %1941 = vmatpush1.bf16.msra.mxu0 %v1933
        %1942 = vmatprep.subr.bf16.mxu0 0
        %1943 = vmatpush1.bf16.msra.mxu0 0
        %1944 = vmatprep.subr.bf16.mxu0 0
        %1945 = vmatpush1.bf16.msra.mxu0 0
        %1946 = vmatprep.subr.bf16.mxu0 0
        %1947 = vmatpush1.bf16.msra.mxu0 0
        %1948 = vmatprep.subr.bf16.mxu0 0
        %1949 = vmatpush1.bf16.msra.mxu0 0
        %1950 = vmatprep.subr.bf16.mxu0 0
        %1951 = vmatpush1.bf16.msra.mxu0 0
        %1952 = vmatprep.subr.bf16.mxu0 0
        %1953 = vmatpush1.bf16.msra.mxu0 0
        %1954 = vmatprep.subr.bf16.mxu0 0
        %1955 = vmatpush1.bf16.msra.mxu0 0
        %1956 = vmatprep.subr.bf16.mxu0 0
        %1957 = vmatpush1.bf16.msra.mxu0 0
        %1958 = vmatprep.subr.bf16.mxu0 0
        %1959 = vmatpush1.bf16.msra.mxu0 0
        %1960 = vmatprep.subr.bf16.mxu0 0
        %1961 = vmatpush1.bf16.msra.mxu0 0
        %1962 = vmatprep.subr.bf16.mxu0 0
        %1963 = vmatpush1.bf16.msra.mxu0 0
        %1964 = vmatprep.subr.bf16.mxu0 0
        %1965 = vmatpush1.bf16.msra.mxu0 0
        %1966 = vmatprep.subr.bf16.mxu0 0
        %1967 = vmatpush1.bf16.msra.mxu0 0
        %1968 = vmatprep.subr.bf16.mxu0 0
        %1969 = vmatpush1.bf16.msra.mxu0 0
        %1970 = vmatprep.mubr.bf16.mxu0 0
        %1971 = vmatmul.mubr.bf16.gmra.mrb[0].mxu0 %v1936
        %v1972 = vpop.f32.mrb[0].mxu0
        %v1973 = vadd.f32 %v1918, %v1972
        %v1974 = vpop.f32.mrb[0].mxu0
        %v1975 = vpop.f32.mrb[0].mxu0
        %v1976 = vadd.f32 %v1921, %v1975
        %v1977 = vpop.f32.mrb[0].mxu0
        %1978 = vdwg.mxu0
        %v1979 = vld [vmem:[#allocation4] sm:$0xe]
        %v1980 = vld [vmem:[%s3 + $0x20] sm:$0xf]
        %v1981 = vld [vmem:[%s3 + $0x24] sm:$0xf]
        %v1982 = vld [vmem:[%s3 + $0x28] sm:$0xf]
        %v1983 = vld [vmem:[%s3 + $0x2c] sm:$0xf]
        %v1985 = vunpack.c.l.b16 %v1979
        %v1986 = vpack.c.b16 %v1851, %v1985
        %vm1987 = vcmask 1046528
        %v1988 = vrot.slane %v1986, 1
        %v1989 = vrot.slane %v1854, 1
        %v1990 = vsel %vm1987, %v1988, %v1989
        %v1995 = vunpack.c.l.b16 %v1980
        %v1996 = vunpack.c.l.b16 %v1981
        %v1997 = vunpack.c.l.b16 %v1982
        %v1998 = vunpack.c.l.b16 %v1983
        %v1999 = vpack.c.b16 %v1996, %v1995
        %v2000 = vpack.c.b16 %v1998, %v1997
        %v2004 = vsel %vm1680, %v1990, 0
        %2006 = vmatprep.subr.bf16.mxu0 0
        %2007 = vmatpush1.bf16.msra.mxu0 %v1999
        %2008 = vmatprep.subr.bf16.mxu0 0
        %2009 = vmatpush1.bf16.msra.mxu0 %v2000
        %2010 = vmatprep.subr.bf16.mxu0 0
        %2011 = vmatpush1.bf16.msra.mxu0 0
        %2012 = vmatprep.subr.bf16.mxu0 0
        %2013 = vmatpush1.bf16.msra.mxu0 0
        %2014 = vmatprep.subr.bf16.mxu0 0
        %2015 = vmatpush1.bf16.msra.mxu0 0
        %2016 = vmatprep.subr.bf16.mxu0 0
        %2017 = vmatpush1.bf16.msra.mxu0 0
        %2018 = vmatprep.subr.bf16.mxu0 0
        %2019 = vmatpush1.bf16.msra.mxu0 0
        %2020 = vmatprep.subr.bf16.mxu0 0
        %2021 = vmatpush1.bf16.msra.mxu0 0
        %2022 = vmatprep.subr.bf16.mxu0 0
        %2023 = vmatpush1.bf16.msra.mxu0 0
        %2024 = vmatprep.subr.bf16.mxu0 0
        %2025 = vmatpush1.bf16.msra.mxu0 0
        %2026 = vmatprep.subr.bf16.mxu0 0
        %2027 = vmatpush1.bf16.msra.mxu0 0
        %2028 = vmatprep.subr.bf16.mxu0 0
        %2029 = vmatpush1.bf16.msra.mxu0 0
        %2030 = vmatprep.subr.bf16.mxu0 0
        %2031 = vmatpush1.bf16.msra.mxu0 0
        %2032 = vmatprep.subr.bf16.mxu0 0
        %2033 = vmatpush1.bf16.msra.mxu0 0
        %2034 = vmatprep.subr.bf16.mxu0 0
        %2035 = vmatpush1.bf16.msra.mxu0 0
        %2036 = vmatprep.subr.bf16.mxu0 0
        %2037 = vmatpush1.bf16.msra.mxu0 0
        %2038 = vmatprep.mubr.bf16.mxu0 0
        %2039 = vmatmul.mubr.bf16.gmra.mrb[0].mxu0 %v2004
        %v2040 = vpop.f32.mrb[0].mxu0
        %v2041 = vadd.f32 0.0, %v2040
        %v2042 = vpop.f32.mrb[0].mxu0
        %v2043 = vpop.f32.mrb[0].mxu0
        %v2044 = vadd.f32 0.0, %v2043
        %v2045 = vpop.f32.mrb[0].mxu0
        %2046 = vdwg.mxu0
        %v2047 = vadd.f32 %v1973, %v2041
        %v2048 = vadd.f32 %v1976, %v2044
        %v2049 = vld [vmem:[#allocation8] sm:$0x1]
        %v2051 = vlaneseq
        %v2052 = vshrl.u32 %v2051, 7
        %v2053 = vsub.s32 0, %v2052
        %v2054 = vrot.slane %v2049, %v2053
        %v2056 = vadd.f32 %v2047, %v2054
        %v2057 = vadd.f32 %v2048, %v2054
        %v2058 = vmax.f32 %v2056, 0.0
        %v2059 = vmax.f32 %v2057, 0.0
        %2060 = vst.msk [vmem:[#allocation4] sm:$0xf] %vm1790, 0
        %2061 = vst.msk [vmem:[#allocation4 + $0x4] sm:$0xf] %vm1790, 0
        %2062 = vst.msk [vmem:[#allocation4 + $0x8] sm:$0x1] %vm1793, 0
        %v2063 = vpack.c.bf16 %v2059, %v2058
        %v2065 = vunpack.c.l.b16 %v2063
        %v2066 = vunpack.c.h.b16 %v2063
        %v2067 = vpack.c.b16 %v2065, %v2065
        %v2068 = vpack.c.b16 %v2066, %v2066
        %v2070 = vshrl.u32 %v2067, 16
        %v2072 = vrot.slane %v2070, 7
        %v2073 = vshll.u32 %v2067, 16
        %v2075 = vor.u32 %v2072, %v2073
        %v2076 = vrot.slane %v2072, 4
        %v2078 = vshrl.u32 %v2068, 16
        %v2080 = vrot.slane %v2078, 7
        %v2081 = vshll.u32 %v2068, 16
        %v2083 = vor.u32 %v2080, %v2081
        %v2084 = vsel %vm1803, %v2076, %v2083
        %v2085 = vrot.slane %v2080, 4
        %v2089 = vld [vmem:[#allocation4] sm:$0xf]
        %v2090 = vsel %vm1826, %v2075, %v2089
        %2091 = vst [vmem:[#allocation4] sm:$0xf] %v2090
        %2092 = vst.msk [vmem:[#allocation4 + $0x4] sm:$0xf] %vm1790, %v2084
        %v2093 = vld [vmem:[#allocation4 + $0x8] sm:$0x1]
        %v2094 = vsel %vm1832, %v2085, %v2093
        %2095 = vst [vmem:[#allocation4 + $0x8] sm:$0x1] %v2094
        %v2096 = vld [vmem:[#allocation4] sm:$0xf]
        %v2097 = vld [vmem:[#allocation4 + $0x4] sm:$0xf]
        %v2098 = vld [vmem:[%s5] sm:$0xf]
        %v2099 = vld [vmem:[%s5 + $0x4] sm:$0xf]
        %v2100 = vld [vmem:[%s5 + $0x8] sm:$0xf]
        %v2101 = vld [vmem:[%s5 + $0xc] sm:$0xf]
        %v2102 = vld [vmem:[#allocation4 + $0x8] sm:$0x1]
        %v2103 = vld [vmem:[%s5 + $0x10] sm:$0xf]
        %v2104 = vld [vmem:[%s5 + $0x14] sm:$0xf]
        %v2105 = vld [vmem:[%s5 + $0x18] sm:$0xf]
        %v2106 = vld [vmem:[%s5 + $0x1c] sm:$0xf]
        %v2110 = vunpack.c.l.b16 %v2096
        %v2111 = vunpack.c.l.b16 %v2097
        %v2112 = vunpack.c.l.b16 %v2102
        %v2113 = vpack.c.b16 %v2111, %v2110
        %v2114 = vpack.c.b16 %v2112, %v2112
        %v2116 = vshrl.u32 %v2113, 16
        %v2118 = vshll.u32 %v2113, 16
        %v2120 = vrot.slane %v2118, 1
        %v2121 = vor.u32 %v2116, %v2120
        %v2123 = vshll.u32 %v2114, 16
        %v2125 = vrot.slane %v2123, 1
        %v2126 = vsel %vm1855, %v2121, %v2125
        %v2131 = vunpack.c.l.b16 %v2103
        %v2132 = vunpack.c.l.b16 %v2104
        %v2133 = vunpack.c.l.b16 %v2105
        %v2134 = vunpack.c.l.b16 %v2106
        %v2135 = vpack.c.b16 %v2132, %v2131
        %v2136 = vpack.c.b16 %v2134, %v2133
        %v2140 = vsel %vm1680, %v2126, 0
        %2142 = vmatprep.subr.bf16.mxu0 0
        %2143 = vmatpush1.bf16.msra.mxu0 %v2135
        %2144 = vmatprep.subr.bf16.mxu0 0
        %2145 = vmatpush1.bf16.msra.mxu0 %v2136
        %2146 = vmatprep.subr.bf16.mxu0 0
        %2147 = vmatpush1.bf16.msra.mxu0 0
        %2148 = vmatprep.subr.bf16.mxu0 0
        %2149 = vmatpush1.bf16.msra.mxu0 0
        %2150 = vmatprep.subr.bf16.mxu0 0
        %2151 = vmatpush1.bf16.msra.mxu0 0
        %2152 = vmatprep.subr.bf16.mxu0 0
        %2153 = vmatpush1.bf16.msra.mxu0 0
        %2154 = vmatprep.subr.bf16.mxu0 0
        %2155 = vmatpush1.bf16.msra.mxu0 0
        %2156 = vmatprep.subr.bf16.mxu0 0
        %2157 = vmatpush1.bf16.msra.mxu0 0
        %2158 = vmatprep.subr.bf16.mxu0 0
        %2159 = vmatpush1.bf16.msra.mxu0 0
        %2160 = vmatprep.subr.bf16.mxu0 0
        %2161 = vmatpush1.bf16.msra.mxu0 0
        %2162 = vmatprep.subr.bf16.mxu0 0
        %2163 = vmatpush1.bf16.msra.mxu0 0
        %2164 = vmatprep.subr.bf16.mxu0 0
        %2165 = vmatpush1.bf16.msra.mxu0 0
        %2166 = vmatprep.subr.bf16.mxu0 0
        %2167 = vmatpush1.bf16.msra.mxu0 0
        %2168 = vmatprep.subr.bf16.mxu0 0
        %2169 = vmatpush1.bf16.msra.mxu0 0
        %2170 = vmatprep.subr.bf16.mxu0 0
        %2171 = vmatpush1.bf16.msra.mxu0 0
        %2172 = vmatprep.subr.bf16.mxu0 0
        %2173 = vmatpush1.bf16.msra.mxu0 0
        %2174 = vmatprep.mubr.bf16.mxu0 0
        %2175 = vmatmul.mubr.bf16.gmra.mrb[0].mxu0 %v2140
        %v2176 = vpop.f32.mrb[0].mxu0
        %v2177 = vadd.f32 0.0, %v2176
        %v2178 = vpop.f32.mrb[0].mxu0
        %v2179 = vpop.f32.mrb[0].mxu0
        %v2180 = vadd.f32 0.0, %v2179
        %v2181 = vpop.f32.mrb[0].mxu0
        %2182 = vdwg.mxu0
        %v2187 = vunpack.c.l.b16 %v2098
        %v2188 = vunpack.c.l.b16 %v2099
        %v2189 = vunpack.c.l.b16 %v2100
        %v2190 = vunpack.c.l.b16 %v2101
        %v2191 = vpack.c.b16 %v2188, %v2187
        %v2192 = vpack.c.b16 %v2190, %v2189
        %v2195 = vsel %vm1680, %v2113, 0
        %2197 = vmatprep.subr.bf16.mxu0 0
        %2198 = vmatpush1.bf16.msra.mxu0 %v2191
        %2199 = vmatprep.subr.bf16.mxu0 0
        %2200 = vmatpush1.bf16.msra.mxu0 %v2192
        %2201 = vmatprep.subr.bf16.mxu0 0
        %2202 = vmatpush1.bf16.msra.mxu0 0
        %2203 = vmatprep.subr.bf16.mxu0 0
        %2204 = vmatpush1.bf16.msra.mxu0 0
        %2205 = vmatprep.subr.bf16.mxu0 0
        %2206 = vmatpush1.bf16.msra.mxu0 0
        %2207 = vmatprep.subr.bf16.mxu0 0
        %2208 = vmatpush1.bf16.msra.mxu0 0
        %2209 = vmatprep.subr.bf16.mxu0 0
        %2210 = vmatpush1.bf16.msra.mxu0 0
        %2211 = vmatprep.subr.bf16.mxu0 0
        %2212 = vmatpush1.bf16.msra.mxu0 0
        %2213 = vmatprep.subr.bf16.mxu0 0
        %2214 = vmatpush1.bf16.msra.mxu0 0
        %2215 = vmatprep.subr.bf16.mxu0 0
        %2216 = vmatpush1.bf16.msra.mxu0 0
        %2217 = vmatprep.subr.bf16.mxu0 0
        %2218 = vmatpush1.bf16.msra.mxu0 0
        %2219 = vmatprep.subr.bf16.mxu0 0
        %2220 = vmatpush1.bf16.msra.mxu0 0
        %2221 = vmatprep.subr.bf16.mxu0 0
        %2222 = vmatpush1.bf16.msra.mxu0 0
        %2223 = vmatprep.subr.bf16.mxu0 0
        %2224 = vmatpush1.bf16.msra.mxu0 0
        %2225 = vmatprep.subr.bf16.mxu0 0
        %2226 = vmatpush1.bf16.msra.mxu0 0
        %2227 = vmatprep.subr.bf16.mxu0 0
        %2228 = vmatpush1.bf16.msra.mxu0 0
        %2229 = vmatprep.mubr.bf16.mxu0 0
        %2230 = vmatmul.mubr.bf16.gmra.mrb[0].mxu0 %v2195
        %v2231 = vpop.f32.mrb[0].mxu0
        %v2232 = vadd.f32 %v2177, %v2231
        %v2233 = vpop.f32.mrb[0].mxu0
        %v2234 = vpop.f32.mrb[0].mxu0
        %v2235 = vadd.f32 %v2180, %v2234
        %v2236 = vpop.f32.mrb[0].mxu0
        %2237 = vdwg.mxu0
        %v2238 = vld [vmem:[#allocation4] sm:$0xe]
        %v2239 = vld [vmem:[%s5 + $0x20] sm:$0xf]
        %v2240 = vld [vmem:[%s5 + $0x24] sm:$0xf]
        %v2241 = vld [vmem:[%s5 + $0x28] sm:$0xf]
        %v2242 = vld [vmem:[%s5 + $0x2c] sm:$0xf]
        %v2244 = vunpack.c.l.b16 %v2238
        %v2245 = vpack.c.b16 %v2111, %v2244
        %v2246 = vrot.slane %v2245, 1
        %v2247 = vrot.slane %v2114, 1
        %v2248 = vsel %vm1987, %v2246, %v2247
        %v2253 = vunpack.c.l.b16 %v2239
        %v2254 = vunpack.c.l.b16 %v2240
        %v2255 = vunpack.c.l.b16 %v2241
        %v2256 = vunpack.c.l.b16 %v2242
        %v2257 = vpack.c.b16 %v2254, %v2253
        %v2258 = vpack.c.b16 %v2256, %v2255
        %v2262 = vsel %vm1680, %v2248, 0
        %2264 = vmatprep.subr.bf16.mxu0 0
        %2265 = vmatpush1.bf16.msra.mxu0 %v2257
        %2266 = vmatprep.subr.bf16.mxu0 0
        %2267 = vmatpush1.bf16.msra.mxu0 %v2258
        %2268 = vmatprep.subr.bf16.mxu0 0
        %2269 = vmatpush1.bf16.msra.mxu0 0
        %2270 = vmatprep.subr.bf16.mxu0 0
        %2271 = vmatpush1.bf16.msra.mxu0 0
        %2272 = vmatprep.subr.bf16.mxu0 0
        %2273 = vmatpush1.bf16.msra.mxu0 0
        %2274 = vmatprep.subr.bf16.mxu0 0
        %2275 = vmatpush1.bf16.msra.mxu0 0
        %2276 = vmatprep.subr.bf16.mxu0 0
        %2277 = vmatpush1.bf16.msra.mxu0 0
        %2278 = vmatprep.subr.bf16.mxu0 0
        %2279 = vmatpush1.bf16.msra.mxu0 0
        %2280 = vmatprep.subr.bf16.mxu0 0
        %2281 = vmatpush1.bf16.msra.mxu0 0
        %2282 = vmatprep.subr.bf16.mxu0 0
        %2283 = vmatpush1.bf16.msra.mxu0 0
        %2284 = vmatprep.subr.bf16.mxu0 0
        %2285 = vmatpush1.bf16.msra.mxu0 0
        %2286 = vmatprep.subr.bf16.mxu0 0
        %2287 = vmatpush1.bf16.msra.mxu0 0
        %2288 = vmatprep.subr.bf16.mxu0 0
        %2289 = vmatpush1.bf16.msra.mxu0 0
        %2290 = vmatprep.subr.bf16.mxu0 0
        %2291 = vmatpush1.bf16.msra.mxu0 0
        %2292 = vmatprep.subr.bf16.mxu0 0
        %2293 = vmatpush1.bf16.msra.mxu0 0
        %2294 = vmatprep.subr.bf16.mxu0 0
        %2295 = vmatpush1.bf16.msra.mxu0 0
        %2296 = vmatprep.mubr.bf16.mxu0 0
        %2297 = vmatmul.mubr.bf16.gmra.mrb[0].mxu0 %v2262
        %v2298 = vpop.f32.mrb[0].mxu0
        %v2299 = vadd.f32 0.0, %v2298
        %v2300 = vpop.f32.mrb[0].mxu0
        %v2301 = vpop.f32.mrb[0].mxu0
        %v2302 = vadd.f32 0.0, %v2301
        %v2303 = vpop.f32.mrb[0].mxu0
        %2304 = vdwg.mxu0
        %v2305 = vadd.f32 %v2232, %v2299
        %v2306 = vadd.f32 %v2235, %v2302
        %v2307 = vld [vmem:[#allocation11] sm:$0x1]
        %v2309 = vlaneseq
        %v2310 = vshrl.u32 %v2309, 7
        %v2311 = vsub.s32 0, %v2310
        %v2312 = vrot.slane %v2307, %v2311
        %v2314 = vadd.f32 %v2305, %v2312
        %v2315 = vadd.f32 %v2306, %v2312
        %v2316 = vadd.f32 %v2314, %v1782
        %v2317 = vadd.f32 %v2315, %v1787
        %v2318 = vmax.f32 %v2316, 0.0
        %v2319 = vmax.f32 %v2317, 0.0
        %2320 = vst.msk [vmem:[#allocation4] sm:$0xf] %vm1790, 0
        %2321 = vst.msk [vmem:[#allocation4 + $0x4] sm:$0xf] %vm1790, 0
        %2322 = vst.msk [vmem:[#allocation4 + $0x8] sm:$0x1] %vm1793, 0
        %v2323 = vpack.c.bf16 %v2319, %v2318
        %v2325 = vunpack.c.l.b16 %v2323
        %v2326 = vunpack.c.h.b16 %v2323
        %v2327 = vpack.c.b16 %v2325, %v2325
        %v2328 = vpack.c.b16 %v2326, %v2326
        %v2330 = vshrl.u32 %v2327, 16
        %v2332 = vrot.slane %v2330, 7
        %v2333 = vshll.u32 %v2327, 16
        %v2335 = vor.u32 %v2332, %v2333
        %v2336 = vrot.slane %v2332, 4
        %v2338 = vshrl.u32 %v2328, 16
        %v2340 = vrot.slane %v2338, 7
        %v2341 = vshll.u32 %v2328, 16
        %v2343 = vor.u32 %v2340, %v2341
        %v2344 = vsel %vm1803, %v2336, %v2343
        %v2345 = vrot.slane %v2340, 4
        %v2349 = vld [vmem:[#allocation4] sm:$0xf]
        %v2350 = vsel %vm1826, %v2335, %v2349
        %2351 = vst [vmem:[#allocation4] sm:$0xf] %v2350
        %2352 = vst.msk [vmem:[#allocation4 + $0x4] sm:$0xf] %vm1790, %v2344
        %v2353 = vld [vmem:[#allocation4 + $0x8] sm:$0x1]
        %v2354 = vsel %vm1832, %v2345, %v2353
        %2355 = vst [vmem:[#allocation4 + $0x8] sm:$0x1] %v2354
        %v2356 = vld [vmem:[#allocation4] sm:$0xf]
        %v2357 = vld [vmem:[#allocation4 + $0x4] sm:$0xf]
        %v2358 = vld [vmem:[%s7] sm:$0xf]
        %v2359 = vld [vmem:[%s7 + $0x4] sm:$0xf]
        %v2360 = vld [vmem:[%s7 + $0x8] sm:$0xf]
        %v2361 = vld [vmem:[%s7 + $0xc] sm:$0xf]
        %v2362 = vld [vmem:[#allocation4 + $0x8] sm:$0x1]
        %v2363 = vld [vmem:[%s7 + $0x10] sm:$0xf]
        %v2364 = vld [vmem:[%s7 + $0x14] sm:$0xf]
        %v2365 = vld [vmem:[%s7 + $0x18] sm:$0xf]
        %v2366 = vld [vmem:[%s7 + $0x1c] sm:$0xf]
        %v2370 = vunpack.c.l.b16 %v2356
        %v2371 = vunpack.c.l.b16 %v2357
        %v2372 = vunpack.c.l.b16 %v2362
        %v2373 = vpack.c.b16 %v2371, %v2370
        %v2374 = vpack.c.b16 %v2372, %v2372
        %v2376 = vshrl.u32 %v2373, 16
        %v2378 = vshll.u32 %v2373, 16
        %v2380 = vrot.slane %v2378, 1
        %v2381 = vor.u32 %v2376, %v2380
        %v2383 = vshll.u32 %v2374, 16
        %v2385 = vrot.slane %v2383, 1
        %v2386 = vsel %vm1855, %v2381, %v2385
        %v2391 = vunpack.c.l.b16 %v2363
        %v2392 = vunpack.c.l.b16 %v2364
        %v2393 = vunpack.c.l.b16 %v2365
        %v2394 = vunpack.c.l.b16 %v2366
        %v2395 = vpack.c.b16 %v2392, %v2391
        %v2396 = vpack.c.b16 %v2394, %v2393
        %v2400 = vsel %vm1680, %v2386, 0
        %2402 = vmatprep.subr.bf16.mxu0 0
        %2403 = vmatpush1.bf16.msra.mxu0 %v2395
        %2404 = vmatprep.subr.bf16.mxu0 0
        %2405 = vmatpush1.bf16.msra.mxu0 %v2396
        %2406 = vmatprep.subr.bf16.mxu0 0
        %2407 = vmatpush1.bf16.msra.mxu0 0
        %2408 = vmatprep.subr.bf16.mxu0 0
        %2409 = vmatpush1.bf16.msra.mxu0 0
        %2410 = vmatprep.subr.bf16.mxu0 0
        %2411 = vmatpush1.bf16.msra.mxu0 0
        %2412 = vmatprep.subr.bf16.mxu0 0
        %2413 = vmatpush1.bf16.msra.mxu0 0
        %2414 = vmatprep.subr.bf16.mxu0 0
        %2415 = vmatpush1.bf16.msra.mxu0 0
        %2416 = vmatprep.subr.bf16.mxu0 0
        %2417 = vmatpush1.bf16.msra.mxu0 0
        %2418 = vmatprep.subr.bf16.mxu0 0
        %2419 = vmatpush1.bf16.msra.mxu0 0
        %2420 = vmatprep.subr.bf16.mxu0 0
        %2421 = vmatpush1.bf16.msra.mxu0 0
        %2422 = vmatprep.subr.bf16.mxu0 0
        %2423 = vmatpush1.bf16.msra.mxu0 0
        %2424 = vmatprep.subr.bf16.mxu0 0
        %2425 = vmatpush1.bf16.msra.mxu0 0
        %2426 = vmatprep.subr.bf16.mxu0 0
        %2427 = vmatpush1.bf16.msra.mxu0 0
        %2428 = vmatprep.subr.bf16.mxu0 0
        %2429 = vmatpush1.bf16.msra.mxu0 0
        %2430 = vmatprep.subr.bf16.mxu0 0
        %2431 = vmatpush1.bf16.msra.mxu0 0
        %2432 = vmatprep.subr.bf16.mxu0 0
        %2433 = vmatpush1.bf16.msra.mxu0 0
        %2434 = vmatprep.mubr.bf16.mxu0 0
        %2435 = vmatmul.mubr.bf16.gmra.mrb[0].mxu0 %v2400
        %v2436 = vpop.f32.mrb[0].mxu0
        %v2437 = vadd.f32 0.0, %v2436
        %v2438 = vpop.f32.mrb[0].mxu0
        %v2439 = vpop.f32.mrb[0].mxu0
        %v2440 = vadd.f32 0.0, %v2439
        %v2441 = vpop.f32.mrb[0].mxu0
        %2442 = vdwg.mxu0
        %v2447 = vunpack.c.l.b16 %v2358
        %v2448 = vunpack.c.l.b16 %v2359
        %v2449 = vunpack.c.l.b16 %v2360
        %v2450 = vunpack.c.l.b16 %v2361
        %v2451 = vpack.c.b16 %v2448, %v2447
        %v2452 = vpack.c.b16 %v2450, %v2449
        %v2455 = vsel %vm1680, %v2373, 0
        %2457 = vmatprep.subr.bf16.mxu0 0
        %2458 = vmatpush1.bf16.msra.mxu0 %v2451
        %2459 = vmatprep.subr.bf16.mxu0 0
        %2460 = vmatpush1.bf16.msra.mxu0 %v2452
        %2461 = vmatprep.subr.bf16.mxu0 0
        %2462 = vmatpush1.bf16.msra.mxu0 0
        %2463 = vmatprep.subr.bf16.mxu0 0
        %2464 = vmatpush1.bf16.msra.mxu0 0
        %2465 = vmatprep.subr.bf16.mxu0 0
        %2466 = vmatpush1.bf16.msra.mxu0 0
        %2467 = vmatprep.subr.bf16.mxu0 0
        %2468 = vmatpush1.bf16.msra.mxu0 0
        %2469 = vmatprep.subr.bf16.mxu0 0
        %2470 = vmatpush1.bf16.msra.mxu0 0
        %2471 = vmatprep.subr.bf16.mxu0 0
        %2472 = vmatpush1.bf16.msra.mxu0 0
        %2473 = vmatprep.subr.bf16.mxu0 0
        %2474 = vmatpush1.bf16.msra.mxu0 0
        %2475 = vmatprep.subr.bf16.mxu0 0
        %2476 = vmatpush1.bf16.msra.mxu0 0
        %2477 = vmatprep.subr.bf16.mxu0 0
        %2478 = vmatpush1.bf16.msra.mxu0 0
        %2479 = vmatprep.subr.bf16.mxu0 0
        %2480 = vmatpush1.bf16.msra.mxu0 0
        %2481 = vmatprep.subr.bf16.mxu0 0
        %2482 = vmatpush1.bf16.msra.mxu0 0
        %2483 = vmatprep.subr.bf16.mxu0 0
        %2484 = vmatpush1.bf16.msra.mxu0 0
        %2485 = vmatprep.subr.bf16.mxu0 0
        %2486 = vmatpush1.bf16.msra.mxu0 0
        %2487 = vmatprep.subr.bf16.mxu0 0
        %2488 = vmatpush1.bf16.msra.mxu0 0
        %2489 = vmatprep.mubr.bf16.mxu0 0
        %2490 = vmatmul.mubr.bf16.gmra.mrb[0].mxu0 %v2455
        %v2491 = vpop.f32.mrb[0].mxu0
        %v2492 = vadd.f32 %v2437, %v2491
        %v2493 = vpop.f32.mrb[0].mxu0
        %v2494 = vpop.f32.mrb[0].mxu0
        %v2495 = vadd.f32 %v2440, %v2494
        %v2496 = vpop.f32.mrb[0].mxu0
        %2497 = vdwg.mxu0
        %v2498 = vld [vmem:[#allocation4] sm:$0xe]
        %v2499 = vld [vmem:[%s7 + $0x20] sm:$0xf]
        %v2500 = vld [vmem:[%s7 + $0x24] sm:$0xf]
        %v2501 = vld [vmem:[%s7 + $0x28] sm:$0xf]
        %v2502 = vld [vmem:[%s7 + $0x2c] sm:$0xf]
        %v2504 = vunpack.c.l.b16 %v2498
        %v2505 = vpack.c.b16 %v2371, %v2504
        %v2506 = vrot.slane %v2505, 1
        %v2507 = vrot.slane %v2374, 1
        %v2508 = vsel %vm1987, %v2506, %v2507
        %v2513 = vunpack.c.l.b16 %v2499
        %v2514 = vunpack.c.l.b16 %v2500
        %v2515 = vunpack.c.l.b16 %v2501
        %v2516 = vunpack.c.l.b16 %v2502
        %v2517 = vpack.c.b16 %v2514, %v2513
        %v2518 = vpack.c.b16 %v2516, %v2515
        %v2522 = vsel %vm1680, %v2508, 0
        %2524 = vmatprep.subr.bf16.mxu0 0
        %2525 = vmatpush1.bf16.msra.mxu0 %v2517
        %2526 = vmatprep.subr.bf16.mxu0 0
        %2527 = vmatpush1.bf16.msra.mxu0 %v2518
        %2528 = vmatprep.subr.bf16.mxu0 0
        %2529 = vmatpush1.bf16.msra.mxu0 0
        %2530 = vmatprep.subr.bf16.mxu0 0
        %2531 = vmatpush1.bf16.msra.mxu0 0
        %2532 = vmatprep.subr.bf16.mxu0 0
        %2533 = vmatpush1.bf16.msra.mxu0 0
        %2534 = vmatprep.subr.bf16.mxu0 0
        %2535 = vmatpush1.bf16.msra.mxu0 0
        %2536 = vmatprep.subr.bf16.mxu0 0
        %2537 = vmatpush1.bf16.msra.mxu0 0
        %2538 = vmatprep.subr.bf16.mxu0 0
        %2539 = vmatpush1.bf16.msra.mxu0 0
        %2540 = vmatprep.subr.bf16.mxu0 0
        %2541 = vmatpush1.bf16.msra.mxu0 0
        %2542 = vmatprep.subr.bf16.mxu0 0
        %2543 = vmatpush1.bf16.msra.mxu0 0
        %2544 = vmatprep.subr.bf16.mxu0 0
        %2545 = vmatpush1.bf16.msra.mxu0 0
        %2546 = vmatprep.subr.bf16.mxu0 0
        %2547 = vmatpush1.bf16.msra.mxu0 0
        %2548 = vmatprep.subr.bf16.mxu0 0
        %2549 = vmatpush1.bf16.msra.mxu0 0
        %2550 = vmatprep.subr.bf16.mxu0 0
        %2551 = vmatpush1.bf16.msra.mxu0 0
        %2552 = vmatprep.subr.bf16.mxu0 0
        %2553 = vmatpush1.bf16.msra.mxu0 0
        %2554 = vmatprep.subr.bf16.mxu0 0
        %2555 = vmatpush1.bf16.msra.mxu0 0
        %2556 = vmatprep.mubr.bf16.mxu0 0
        %2557 = vmatmul.mubr.bf16.gmra.mrb[0].mxu0 %v2522
        %v2558 = vpop.f32.mrb[0].mxu0
        %v2559 = vadd.f32 0.0, %v2558
        %v2560 = vpop.f32.mrb[0].mxu0
        %v2561 = vpop.f32.mrb[0].mxu0
        %v2562 = vadd.f32 0.0, %v2561
        %v2563 = vpop.f32.mrb[0].mxu0
        %2564 = vdwg.mxu0
        %v2565 = vadd.f32 %v2492, %v2559
        %v2566 = vadd.f32 %v2495, %v2562
        %v2567 = vld [vmem:[#allocation13] sm:$0x1]
        %v2569 = vlaneseq
        %v2570 = vshrl.u32 %v2569, 7
        %v2571 = vsub.s32 0, %v2570
        %v2572 = vrot.slane %v2567, %v2571
        %vm2574 = vcmask 130048
        %v2575 = vsel %vm2574, %v1578, 0
        %2577 = vmatprep.subr.mxu0 0.0
        %2578 = vmatpush1.msra.mxu0 %v2565
        %2579 = vmatprep.subr.mxu0 0.0
        %2580 = vmatpush1.msra.mxu0 %v2566
        %2581 = vmatprep.subr.mxu0 0.0
        %2582 = vmatpush1.msra.mxu0 0.0
        %2583 = vmatprep.subr.mxu0 0.0
        %2584 = vmatpush1.msra.mxu0 0.0
        %2585 = vmatprep.subr.mxu0 0.0
        %2586 = vmatpush1.msra.mxu0 0.0
        %2587 = vmatprep.subr.mxu0 0.0
        %2588 = vmatpush1.msra.mxu0 0.0
        %2589 = vmatprep.subr.mxu0 0.0
        %2590 = vmatpush1.msra.mxu0 0.0
        %2591 = vmatprep.subr.mxu0 0.0
        %2592 = vmatpush1.msra.mxu0 0.0
        %2593 = vmatprep.subr.mxu0 0.0
        %2594 = vmatpush1.msra.mxu0 0.0
        %2595 = vmatprep.subr.mxu0 0.0
        %2596 = vmatpush1.msra.mxu0 0.0
        %2597 = vmatprep.subr.mxu0 0.0
        %2598 = vmatpush1.msra.mxu0 0.0
        %2599 = vmatprep.subr.mxu0 0.0
        %2600 = vmatpush1.msra.mxu0 0.0
        %2601 = vmatprep.subr.mxu0 0.0
        %2602 = vmatpush1.msra.mxu0 0.0
        %2603 = vmatprep.subr.mxu0 0.0
        %2604 = vmatpush1.msra.mxu0 0.0
        %2605 = vmatprep.subr.mxu0 0.0
        %2606 = vmatpush1.msra.mxu0 0.0
        %2607 = vmatprep.subr.mxu0 0.0
        %2608 = vmatpush1.msra.mxu0 0.0
        %2609 = vmatprep.subr.mxu0 0.0
        %2610 = vmatpush1.msra.mxu0 0.0
        %2611 = vmatprep.subr.mxu0 0.0
        %2612 = vmatpush1.msra.mxu0 0.0
        %2613 = vmatprep.subr.mxu0 0.0
        %2614 = vmatpush1.msra.mxu0 0.0
        %2615 = vmatprep.subr.mxu0 0.0
        %2616 = vmatpush1.msra.mxu0 0.0
        %2617 = vmatprep.subr.mxu0 0.0
        %2618 = vmatpush1.msra.mxu0 0.0
        %2619 = vmatprep.subr.mxu0 0.0
        %2620 = vmatpush1.msra.mxu0 0.0
        %2621 = vmatprep.subr.mxu0 0.0
        %2622 = vmatpush1.msra.mxu0 0.0
        %2623 = vmatprep.subr.mxu0 0.0
        %2624 = vmatpush1.msra.mxu0 0.0
        %2625 = vmatprep.subr.mxu0 0.0
        %2626 = vmatpush1.msra.mxu0 0.0
        %2627 = vmatprep.subr.mxu0 0.0
        %2628 = vmatpush1.msra.mxu0 0.0
        %2629 = vmatprep.subr.mxu0 0.0
        %2630 = vmatpush1.msra.mxu0 0.0
        %2631 = vmatprep.subr.mxu0 0.0
        %2632 = vmatpush1.msra.mxu0 0.0
        %2633 = vmatprep.subr.mxu0 0.0
        %2634 = vmatpush1.msra.mxu0 0.0
        %2635 = vmatprep.subr.mxu0 0.0
        %2636 = vmatpush1.msra.mxu0 0.0
        %2637 = vmatprep.subr.mxu0 0.0
        %2638 = vmatpush1.msra.mxu0 0.0
        %2639 = vmatprep.subr.mxu0 0.0
        %2640 = vmatpush1.msra.mxu0 0.0
        %2641 = vmatprep.mubr.f32.mxu0 0.0
        %2642 = vmatmul.mubr.f32.gmra.mrb[0].mxu0 %v2575
        %v2643 = vpop.f32.mrb[0].mxu0
        %v2644 = vadd.f32 %v2572, %v2643
        %v2645 = vpop.f32.mrb[0].mxu0
        %2646 = vdwg.mxu0
        %v2647 = vmax.f32 %v2644, 0.0
        %2648 = vmatprep.subr.mxu0 0.0
        %2649 = vmatpush1.msra.mxu0 %v2318
        %2650 = vmatprep.subr.mxu0 0.0
        %2651 = vmatpush1.msra.mxu0 %v2319
        %2652 = vmatprep.subr.mxu0 0.0
        %2653 = vmatpush1.msra.mxu0 0.0
        %2654 = vmatprep.subr.mxu0 0.0
        %2655 = vmatpush1.msra.mxu0 0.0
        %2656 = vmatprep.subr.mxu0 0.0
        %2657 = vmatpush1.msra.mxu0 0.0
        %2658 = vmatprep.subr.mxu0 0.0
        %2659 = vmatpush1.msra.mxu0 0.0
        %2660 = vmatprep.subr.mxu0 0.0
        %2661 = vmatpush1.msra.mxu0 0.0
        %2662 = vmatprep.subr.mxu0 0.0
        %2663 = vmatpush1.msra.mxu0 0.0
        %2664 = vmatprep.subr.mxu0 0.0
        %2665 = vmatpush1.msra.mxu0 0.0
        %2666 = vmatprep.subr.mxu0 0.0
        %2667 = vmatpush1.msra.mxu0 0.0
        %2668 = vmatprep.subr.mxu0 0.0
        %2669 = vmatpush1.msra.mxu0 0.0
        %2670 = vmatprep.subr.mxu0 0.0
        %2671 = vmatpush1.msra.mxu0 0.0
        %2672 = vmatprep.subr.mxu0 0.0
        %2673 = vmatpush1.msra.mxu0 0.0
        %2674 = vmatprep.subr.mxu0 0.0
        %2675 = vmatpush1.msra.mxu0 0.0
        %2676 = vmatprep.subr.mxu0 0.0
        %2677 = vmatpush1.msra.mxu0 0.0
        %2678 = vmatprep.subr.mxu0 0.0
        %2679 = vmatpush1.msra.mxu0 0.0
        %2680 = vmatprep.subr.mxu0 0.0
        %2681 = vmatpush1.msra.mxu0 0.0
        %2682 = vmatprep.subr.mxu0 0.0
        %2683 = vmatpush1.msra.mxu0 0.0
        %2684 = vmatprep.subr.mxu0 0.0
        %2685 = vmatpush1.msra.mxu0 0.0
        %2686 = vmatprep.subr.mxu0 0.0
        %2687 = vmatpush1.msra.mxu0 0.0
        %2688 = vmatprep.subr.mxu0 0.0
        %2689 = vmatpush1.msra.mxu0 0.0
        %2690 = vmatprep.subr.mxu0 0.0
        %2691 = vmatpush1.msra.mxu0 0.0
        %2692 = vmatprep.subr.mxu0 0.0
        %2693 = vmatpush1.msra.mxu0 0.0
        %2694 = vmatprep.subr.mxu0 0.0
        %2695 = vmatpush1.msra.mxu0 0.0
        %2696 = vmatprep.subr.mxu0 0.0
        %2697 = vmatpush1.msra.mxu0 0.0
        %2698 = vmatprep.subr.mxu0 0.0
        %2699 = vmatpush1.msra.mxu0 0.0
        %2700 = vmatprep.subr.mxu0 0.0
        %2701 = vmatpush1.msra.mxu0 0.0
        %2702 = vmatprep.subr.mxu0 0.0
        %2703 = vmatpush1.msra.mxu0 0.0
        %2704 = vmatprep.subr.mxu0 0.0
        %2705 = vmatpush1.msra.mxu0 0.0
        %2706 = vmatprep.subr.mxu0 0.0
        %2707 = vmatpush1.msra.mxu0 0.0
        %2708 = vmatprep.subr.mxu0 0.0
        %2709 = vmatpush1.msra.mxu0 0.0
        %2710 = vmatprep.subr.mxu0 0.0
        %2711 = vmatpush1.msra.mxu0 0.0
        %2712 = vmatprep.mubr.f32.mxu0 0.0
        %2713 = vmatmul.mubr.f32.gmra.mrb[0].mxu0 %v2575
        %v2714 = vpop.f32.mrb[0].mxu0
        %v2715 = vadd.f32 0.0, %v2714
        %v2716 = vpop.f32.mrb[0].mxu0
        %2717 = vdwg.mxu0
        %v2718 = vpack.c.bf16 %v2715, %v2715
        %v2719 = vld [vmem:[#allocation14] sm:$0xf]
        %v2720 = vld [vmem:[#allocation14 + $0x4] sm:$0xf]
        %v2721 = vld [vmem:[#allocation14 + $0x8] sm:$0xf]
        %v2722 = vld [vmem:[#allocation14 + $0xc] sm:$0xf]
        %v2723 = vld [vmem:[#allocation16] sm:$0x1]
        %v2725 = vlaneseq
        %v2726 = vshrl.u32 %v2725, 7
        %v2727 = vsub.s32 0, %v2726
        %v2728 = vrot.slane %v2723, %v2727
        %v2734 = vunpack.c.l.b16 %v2719
        %v2735 = vunpack.c.l.b16 %v2720
        %v2736 = vunpack.c.l.b16 %v2721
        %v2737 = vunpack.c.l.b16 %v2722
        %v2738 = vpack.c.b16 %v2735, %v2734
        %v2739 = vpack.c.b16 %v2737, %v2736
        %v2743 = vsel %vm1680, %v2718, 0
        %2745 = vmatprep.subr.bf16.mxu0 0
        %2746 = vmatpush1.bf16.msra.mxu0 %v2738
        %2747 = vmatprep.subr.bf16.mxu0 0
        %2748 = vmatpush1.bf16.msra.mxu0 %v2739
        %2749 = vmatprep.subr.bf16.mxu0 0
        %2750 = vmatpush1.bf16.msra.mxu0 0
        %2751 = vmatprep.subr.bf16.mxu0 0
        %2752 = vmatpush1.bf16.msra.mxu0 0
        %2753 = vmatprep.subr.bf16.mxu0 0
        %2754 = vmatpush1.bf16.msra.mxu0 0
        %2755 = vmatprep.subr.bf16.mxu0 0
        %2756 = vmatpush1.bf16.msra.mxu0 0
        %2757 = vmatprep.subr.bf16.mxu0 0
        %2758 = vmatpush1.bf16.msra.mxu0 0
        %2759 = vmatprep.subr.bf16.mxu0 0
        %2760 = vmatpush1.bf16.msra.mxu0 0
        %2761 = vmatprep.subr.bf16.mxu0 0
        %2762 = vmatpush1.bf16.msra.mxu0 0
        %2763 = vmatprep.subr.bf16.mxu0 0
        %2764 = vmatpush1.bf16.msra.mxu0 0
        %2765 = vmatprep.subr.bf16.mxu0 0
        %2766 = vmatpush1.bf16.msra.mxu0 0
        %2767 = vmatprep.subr.bf16.mxu0 0
        %2768 = vmatpush1.bf16.msra.mxu0 0
        %2769 = vmatprep.subr.bf16.mxu0 0
        %2770 = vmatpush1.bf16.msra.mxu0 0
        %2771 = vmatprep.subr.bf16.mxu0 0
        %2772 = vmatpush1.bf16.msra.mxu0 0
        %2773 = vmatprep.subr.bf16.mxu0 0
        %2774 = vmatpush1.bf16.msra.mxu0 0
        %2775 = vmatprep.subr.bf16.mxu0 0
        %2776 = vmatpush1.bf16.msra.mxu0 0
        %2777 = vmatprep.mubr.bf16.mxu0 0
        %2778 = vmatmul.mubr.bf16.gmra.mrb[0].mxu0 %v2743
        %v2779 = vpop.f32.mrb[0].mxu0
        %v2780 = vadd.f32 %v2728, %v2779
        %v2781 = vpop.f32.mrb[0].mxu0
        %v2782 = vpop.f32.mrb[0].mxu0
        %v2783 = vpop.f32.mrb[0].mxu0
        %2784 = vdwg.mxu0
        %vm2785 = vcmask 519168
        %2786 = vst.msk [vmem:[#allocation5] sm:$0xf] %vm2785, 0
        %vm2787 = vcmask 516096
        %2788 = vst.msk [vmem:[#allocation5 + $0x4] sm:$0x1] %vm2787, 0
        %v2789 = vpack.c.bf16 %v2647, %v2647
        %v2791 = vunpack.c.l.b16 %v2789
        %v2792 = vpack.c.b16 %v2791, %v2791
        %v2794 = vshrl.u32 %v2792, 16
        %v2796 = vrot.slane %v2794, 7
        %v2797 = vshll.u32 %v2792, 16
        %v2799 = vor.u32 %v2796, %v2797
        %v2800 = vrot.slane %v2796, 4
        %vm2803 = vcmask 519168
        %vm2804 = vmand %vm2803, %vm1825
        %v2805 = vld [vmem:[#allocation5] sm:$0xf]
        %v2806 = vsel %vm2804, %v2799, %v2805
        %2807 = vst [vmem:[#allocation5] sm:$0xf] %v2806
        %vm2808 = vcmask 516096
        %vm2809 = vmand %vm2808, %vm1801
        %v2810 = vld [vmem:[#allocation5 + $0x4] sm:$0x1]
        %v2811 = vsel %vm2809, %v2800, %v2810
        %2812 = vst [vmem:[#allocation5 + $0x4] sm:$0x1] %v2811
        %v2813 = vld [vmem:[#allocation5] sm:$0xf]
        %v2814 = vld [vmem:[%s11] sm:$0xf]
        %v2815 = vld [vmem:[%s11 + $0x4] sm:$0xf]
        %v2816 = vld [vmem:[%s11 + $0x8] sm:$0xf]
        %v2817 = vld [vmem:[%s11 + $0xc] sm:$0xf]
        %v2818 = vld [vmem:[%s11 + $0x10] sm:$0xf]
        %v2819 = vld [vmem:[%s11 + $0x14] sm:$0xf]
        %v2820 = vld [vmem:[%s11 + $0x18] sm:$0xf]
        %v2821 = vld [vmem:[%s11 + $0x1c] sm:$0xf]
        %v2822 = vld [vmem:[#allocation5 + $0x4] sm:$0x1]
        %v2823 = vld [vmem:[%s11 + $0x20] sm:$0xf]
        %v2824 = vld [vmem:[%s11 + $0x24] sm:$0xf]
        %v2825 = vld [vmem:[%s11 + $0x28] sm:$0xf]
        %v2826 = vld [vmem:[%s11 + $0x2c] sm:$0xf]
        %v2827 = vld [vmem:[%s11 + $0x30] sm:$0xf]
        %v2828 = vld [vmem:[%s11 + $0x34] sm:$0xf]
        %v2829 = vld [vmem:[%s11 + $0x38] sm:$0xf]
        %v2830 = vld [vmem:[%s11 + $0x3c] sm:$0xf]
        %v2833 = vunpack.c.l.b16 %v2813
        %v2834 = vunpack.c.l.b16 %v2822
        %v2835 = vpack.c.b16 %v2834, %v2833
        %v2837 = vshrl.u32 %v2835, 16
        %v2839 = vshll.u32 %v2835, 16
        %v2841 = vrot.slane %v2839, 1
        %v2842 = vor.u32 %v2837, %v2841
        %v2851 = vunpack.c.l.b16 %v2823
        %v2852 = vunpack.c.l.b16 %v2824
        %v2853 = vunpack.c.l.b16 %v2825
        %v2854 = vunpack.c.l.b16 %v2826
        %v2855 = vunpack.c.l.b16 %v2827
        %v2856 = vunpack.c.l.b16 %v2828
        %v2857 = vunpack.c.l.b16 %v2829
        %v2858 = vunpack.c.l.b16 %v2830
        %v2859 = vpack.c.b16 %v2852, %v2851
        %v2860 = vpack.c.b16 %v2854, %v2853
        %v2861 = vpack.c.b16 %v2856, %v2855
        %v2862 = vpack.c.b16 %v2858, %v2857
        %v2868 = vsel %vm1582, %v2842, 0
        %2870 = vmatprep.subr.bf16.mxu0 0
        %2871 = vmatpush1.bf16.msra.mxu0 %v2859
        %2872 = vmatprep.subr.bf16.mxu0 0
        %2873 = vmatpush1.bf16.msra.mxu0 %v2860
        %2874 = vmatprep.subr.bf16.mxu0 0
        %2875 = vmatpush1.bf16.msra.mxu0 %v2861
        %2876 = vmatprep.subr.bf16.mxu0 0
        %2877 = vmatpush1.bf16.msra.mxu0 %v2862
        %2878 = vmatprep.subr.bf16.mxu0 0
        %2879 = vmatpush1.bf16.msra.mxu0 0
        %2880 = vmatprep.subr.bf16.mxu0 0
        %2881 = vmatpush1.bf16.msra.mxu0 0
        %2882 = vmatprep.subr.bf16.mxu0 0
        %2883 = vmatpush1.bf16.msra.mxu0 0
        %2884 = vmatprep.subr.bf16.mxu0 0
        %2885 = vmatpush1.bf16.msra.mxu0 0
        %2886 = vmatprep.subr.bf16.mxu0 0
        %2887 = vmatpush1.bf16.msra.mxu0 0
        %2888 = vmatprep.subr.bf16.mxu0 0
        %2889 = vmatpush1.bf16.msra.mxu0 0
        %2890 = vmatprep.subr.bf16.mxu0 0
        %2891 = vmatpush1.bf16.msra.mxu0 0
        %2892 = vmatprep.subr.bf16.mxu0 0
        %2893 = vmatpush1.bf16.msra.mxu0 0
        %2894 = vmatprep.subr.bf16.mxu0 0
        %2895 = vmatpush1.bf16.msra.mxu0 0
        %2896 = vmatprep.subr.bf16.mxu0 0
        %2897 = vmatpush1.bf16.msra.mxu0 0
        %2898 = vmatprep.subr.bf16.mxu0 0
        %2899 = vmatpush1.bf16.msra.mxu0 0
        %2900 = vmatprep.subr.bf16.mxu0 0
        %2901 = vmatpush1.bf16.msra.mxu0 0
        %2902 = vmatprep.mubr.bf16.mxu0 0
        %2903 = vmatmul.mubr.bf16.gmra.mrb[0].mxu0 %v2868
        %v2904 = vpop.f32.mrb[0].mxu0
        %v2905 = vadd.f32 0.0, %v2904
        %v2906 = vpop.f32.mrb[0].mxu0
        %v2907 = vpop.f32.mrb[0].mxu0
        %v2908 = vpop.f32.mrb[0].mxu0
        %2909 = vdwg.mxu0
        %v2918 = vunpack.c.l.b16 %v2814
        %v2919 = vunpack.c.l.b16 %v2815
        %v2920 = vunpack.c.l.b16 %v2816
        %v2921 = vunpack.c.l.b16 %v2817
        %v2922 = vunpack.c.l.b16 %v2818
        %v2923 = vunpack.c.l.b16 %v2819
        %v2924 = vunpack.c.l.b16 %v2820
        %v2925 = vunpack.c.l.b16 %v2821
        %v2926 = vpack.c.b16 %v2919, %v2918
        %v2927 = vpack.c.b16 %v2921, %v2920
        %v2928 = vpack.c.b16 %v2923, %v2922
        %v2929 = vpack.c.b16 %v2925, %v2924
        %v2935 = vsel %vm1582, %v2813, 0
        %2937 = vmatprep.subr.bf16.mxu0 0
        %2938 = vmatpush1.bf16.msra.mxu0 %v2926
        %2939 = vmatprep.subr.bf16.mxu0 0
        %2940 = vmatpush1.bf16.msra.mxu0 %v2927
        %2941 = vmatprep.subr.bf16.mxu0 0
        %2942 = vmatpush1.bf16.msra.mxu0 %v2928
        %2943 = vmatprep.subr.bf16.mxu0 0
        %2944 = vmatpush1.bf16.msra.mxu0 %v2929
        %2945 = vmatprep.subr.bf16.mxu0 0
        %2946 = vmatpush1.bf16.msra.mxu0 0
        %2947 = vmatprep.subr.bf16.mxu0 0
        %2948 = vmatpush1.bf16.msra.mxu0 0
        %2949 = vmatprep.subr.bf16.mxu0 0
        %2950 = vmatpush1.bf16.msra.mxu0 0
        %2951 = vmatprep.subr.bf16.mxu0 0
        %2952 = vmatpush1.bf16.msra.mxu0 0
        %2953 = vmatprep.subr.bf16.mxu0 0
        %2954 = vmatpush1.bf16.msra.mxu0 0
        %2955 = vmatprep.subr.bf16.mxu0 0
        %2956 = vmatpush1.bf16.msra.mxu0 0
        %2957 = vmatprep.subr.bf16.mxu0 0
        %2958 = vmatpush1.bf16.msra.mxu0 0
        %2959 = vmatprep.subr.bf16.mxu0 0
        %2960 = vmatpush1.bf16.msra.mxu0 0
        %2961 = vmatprep.subr.bf16.mxu0 0
        %2962 = vmatpush1.bf16.msra.mxu0 0
        %2963 = vmatprep.subr.bf16.mxu0 0
        %2964 = vmatpush1.bf16.msra.mxu0 0
        %2965 = vmatprep.subr.bf16.mxu0 0
        %2966 = vmatpush1.bf16.msra.mxu0 0
        %2967 = vmatprep.subr.bf16.mxu0 0
        %2968 = vmatpush1.bf16.msra.mxu0 0
        %2969 = vmatprep.mubr.bf16.mxu0 0
        %2970 = vmatmul.mubr.bf16.gmra.mrb[0].mxu0 %v2935
        %v2971 = vpop.f32.mrb[0].mxu0
        %v2972 = vadd.f32 %v2905, %v2971
        %v2973 = vpop.f32.mrb[0].mxu0
        %v2974 = vpop.f32.mrb[0].mxu0
        %v2975 = vpop.f32.mrb[0].mxu0
        %2976 = vdwg.mxu0
        %v2977 = vld [vmem:[#allocation5] sm:$0xe]
        %v2978 = vld [vmem:[%s11 + $0x40] sm:$0xf]
        %v2979 = vld [vmem:[%s11 + $0x44] sm:$0xf]
        %v2980 = vld [vmem:[%s11 + $0x48] sm:$0xf]
        %v2981 = vld [vmem:[%s11 + $0x4c] sm:$0xf]
        %v2982 = vld [vmem:[%s11 + $0x50] sm:$0xf]
        %v2983 = vld [vmem:[%s11 + $0x54] sm:$0xf]
        %v2984 = vld [vmem:[%s11 + $0x58] sm:$0xf]
        %v2985 = vld [vmem:[%s11 + $0x5c] sm:$0xf]
        %v2987 = vunpack.c.l.b16 %v2977
        %v2988 = vpack.c.b16 %v2834, %v2987
        %v2989 = vrot.slane %v2988, 1
        %v2998 = vunpack.c.l.b16 %v2978
        %v2999 = vunpack.c.l.b16 %v2979
        %v3000 = vunpack.c.l.b16 %v2980
        %v3001 = vunpack.c.l.b16 %v2981
        %v3002 = vunpack.c.l.b16 %v2982
        %v3003 = vunpack.c.l.b16 %v2983
        %v3004 = vunpack.c.l.b16 %v2984
        %v3005 = vunpack.c.l.b16 %v2985
        %v3006 = vpack.c.b16 %v2999, %v2998
        %v3007 = vpack.c.b16 %v3001, %v3000
        %v3008 = vpack.c.b16 %v3003, %v3002
        %v3009 = vpack.c.b16 %v3005, %v3004
        %v3015 = vsel %vm1582, %v2989, 0
        %3017 = vmatprep.subr.bf16.mxu0 0
        %3018 = vmatpush1.bf16.msra.mxu0 %v3006
        %3019 = vmatprep.subr.bf16.mxu0 0
        %3020 = vmatpush1.bf16.msra.mxu0 %v3007
        %3021 = vmatprep.subr.bf16.mxu0 0
        %3022 = vmatpush1.bf16.msra.mxu0 %v3008
        %3023 = vmatprep.subr.bf16.mxu0 0
        %3024 = vmatpush1.bf16.msra.mxu0 %v3009
        %3025 = vmatprep.subr.bf16.mxu0 0
        %3026 = vmatpush1.bf16.msra.mxu0 0
        %3027 = vmatprep.subr.bf16.mxu0 0
        %3028 = vmatpush1.bf16.msra.mxu0 0
        %3029 = vmatprep.subr.bf16.mxu0 0
        %3030 = vmatpush1.bf16.msra.mxu0 0
        %3031 = vmatprep.subr.bf16.mxu0 0
        %3032 = vmatpush1.bf16.msra.mxu0 0
        %3033 = vmatprep.subr.bf16.mxu0 0
        %3034 = vmatpush1.bf16.msra.mxu0 0
        %3035 = vmatprep.subr.bf16.mxu0 0
        %3036 = vmatpush1.bf16.msra.mxu0 0
        %3037 = vmatprep.subr.bf16.mxu0 0
        %3038 = vmatpush1.bf16.msra.mxu0 0
        %3039 = vmatprep.subr.bf16.mxu0 0
        %3040 = vmatpush1.bf16.msra.mxu0 0
        %3041 = vmatprep.subr.bf16.mxu0 0
        %3042 = vmatpush1.bf16.msra.mxu0 0
        %3043 = vmatprep.subr.bf16.mxu0 0
        %3044 = vmatpush1.bf16.msra.mxu0 0
        %3045 = vmatprep.subr.bf16.mxu0 0
        %3046 = vmatpush1.bf16.msra.mxu0 0
        %3047 = vmatprep.subr.bf16.mxu0 0
        %3048 = vmatpush1.bf16.msra.mxu0 0
        %3049 = vmatprep.mubr.bf16.mxu0 0
        %3050 = vmatmul.mubr.bf16.gmra.mrb[0].mxu0 %v3015
        %v3051 = vpop.f32.mrb[0].mxu0
        %v3052 = vadd.f32 0.0, %v3051
        %v3053 = vpop.f32.mrb[0].mxu0
        %v3054 = vpop.f32.mrb[0].mxu0
        %v3055 = vpop.f32.mrb[0].mxu0
        %3056 = vdwg.mxu0
        %v3057 = vadd.f32 %v2972, %v3052
        %v3058 = vld [vmem:[#allocation17] sm:$0x1]
        %v3060 = vlaneseq
        %v3061 = vshrl.u32 %v3060, 7
        %v3062 = vsub.s32 0, %v3061
        %v3063 = vrot.slane %v3058, %v3062
        %v3065 = vadd.f32 %v3057, %v3063
        %v3066 = vadd.f32 %v3065, %v2780
        %v3067 = vmax.f32 %v3066, 0.0
        %3068 = vst.msk [vmem:[#allocation5] sm:$0xf] %vm2785, 0
        %3069 = vst.msk [vmem:[#allocation5 + $0x4] sm:$0x1] %vm2787, 0
        %v3070 = vpack.c.bf16 %v3067, %v3067
        %v3072 = vunpack.c.l.b16 %v3070
        %v3073 = vpack.c.b16 %v3072, %v3072
        %v3075 = vshrl.u32 %v3073, 16
        %v3077 = vrot.slane %v3075, 7
        %v3078 = vshll.u32 %v3073, 16
        %v3080 = vor.u32 %v3077, %v3078
        %v3081 = vrot.slane %v3077, 4
        %v3084 = vld [vmem:[#allocation5] sm:$0xf]
        %v3085 = vsel %vm2804, %v3080, %v3084
        %3086 = vst [vmem:[#allocation5] sm:$0xf] %v3085
        %v3087 = vld [vmem:[#allocation5 + $0x4] sm:$0x1]
        %v3088 = vsel %vm2809, %v3081, %v3087
        %3089 = vst [vmem:[#allocation5 + $0x4] sm:$0x1] %v3088
        %v3090 = vld [vmem:[#allocation5] sm:$0xf]
        %v3091 = vld [vmem:[#allocation19] sm:$0xf]
        %v3092 = vld [vmem:[#allocation19 + $0x4] sm:$0xf]
        %v3093 = vld [vmem:[#allocation19 + $0x8] sm:$0xf]
        %v3094 = vld [vmem:[#allocation19 + $0xc] sm:$0xf]
        %v3095 = vld [vmem:[#allocation19 + $0x10] sm:$0xf]
        %v3096 = vld [vmem:[#allocation19 + $0x14] sm:$0xf]
        %v3097 = vld [vmem:[#allocation19 + $0x18] sm:$0xf]
        %v3098 = vld [vmem:[#allocation19 + $0x1c] sm:$0xf]
        %v3099 = vld [vmem:[#allocation5 + $0x4] sm:$0x1]
        %v3100 = vld [vmem:[#allocation19 + $0x20] sm:$0xf]
        %v3101 = vld [vmem:[#allocation19 + $0x24] sm:$0xf]
        %v3102 = vld [vmem:[#allocation19 + $0x28] sm:$0xf]
        %v3103 = vld [vmem:[#allocation19 + $0x2c] sm:$0xf]
        %v3104 = vld [vmem:[#allocation19 + $0x30] sm:$0xf]
        %v3105 = vld [vmem:[#allocation19 + $0x34] sm:$0xf]
        %v3106 = vld [vmem:[#allocation19 + $0x38] sm:$0xf]
        %v3107 = vld [vmem:[#allocation19 + $0x3c] sm:$0xf]
        %v3110 = vunpack.c.l.b16 %v3090
        %v3111 = vunpack.c.l.b16 %v3099
        %v3112 = vpack.c.b16 %v3111, %v3110
        %v3114 = vshrl.u32 %v3112, 16
        %v3116 = vshll.u32 %v3112, 16
        %v3118 = vrot.slane %v3116, 1
        %v3119 = vor.u32 %v3114, %v3118
        %v3128 = vunpack.c.l.b16 %v3100
        %v3129 = vunpack.c.l.b16 %v3101
        %v3130 = vunpack.c.l.b16 %v3102
        %v3131 = vunpack.c.l.b16 %v3103
        %v3132 = vunpack.c.l.b16 %v3104
        %v3133 = vunpack.c.l.b16 %v3105
        %v3134 = vunpack.c.l.b16 %v3106
        %v3135 = vunpack.c.l.b16 %v3107
        %v3136 = vpack.c.b16 %v3129, %v3128
        %v3137 = vpack.c.b16 %v3131, %v3130
        %v3138 = vpack.c.b16 %v3133, %v3132
        %v3139 = vpack.c.b16 %v3135, %v3134
        %v3145 = vsel %vm1582, %v3119, 0
        %3147 = vmatprep.subr.bf16.mxu0 0
        %3148 = vmatpush1.bf16.msra.mxu0 %v3136
        %3149 = vmatprep.subr.bf16.mxu0 0
        %3150 = vmatpush1.bf16.msra.mxu0 %v3137
        %3151 = vmatprep.subr.bf16.mxu0 0
        %3152 = vmatpush1.bf16.msra.mxu0 %v3138
        %3153 = vmatprep.subr.bf16.mxu0 0
        %3154 = vmatpush1.bf16.msra.mxu0 %v3139
        %3155 = vmatprep.subr.bf16.mxu0 0
        %3156 = vmatpush1.bf16.msra.mxu0 0
        %3157 = vmatprep.subr.bf16.mxu0 0
        %3158 = vmatpush1.bf16.msra.mxu0 0
        %3159 = vmatprep.subr.bf16.mxu0 0
        %3160 = vmatpush1.bf16.msra.mxu0 0
        %3161 = vmatprep.subr.bf16.mxu0 0
        %3162 = vmatpush1.bf16.msra.mxu0 0
        %3163 = vmatprep.subr.bf16.mxu0 0
        %3164 = vmatpush1.bf16.msra.mxu0 0
        %3165 = vmatprep.subr.bf16.mxu0 0
        %3166 = vmatpush1.bf16.msra.mxu0 0
        %3167 = vmatprep.subr.bf16.mxu0 0
        %3168 = vmatpush1.bf16.msra.mxu0 0
        %3169 = vmatprep.subr.bf16.mxu0 0
        %3170 = vmatpush1.bf16.msra.mxu0 0
        %3171 = vmatprep.subr.bf16.mxu0 0
        %3172 = vmatpush1.bf16.msra.mxu0 0
        %3173 = vmatprep.subr.bf16.mxu0 0
        %3174 = vmatpush1.bf16.msra.mxu0 0
        %3175 = vmatprep.subr.bf16.mxu0 0
        %3176 = vmatpush1.bf16.msra.mxu0 0
        %3177 = vmatprep.subr.bf16.mxu0 0
        %3178 = vmatpush1.bf16.msra.mxu0 0
        %3179 = vmatprep.mubr.bf16.mxu0 0
        %3180 = vmatmul.mubr.bf16.gmra.mrb[0].mxu0 %v3145
        %v3181 = vpop.f32.mrb[0].mxu0
        %v3182 = vadd.f32 0.0, %v3181
        %v3183 = vpop.f32.mrb[0].mxu0
        %v3184 = vpop.f32.mrb[0].mxu0
        %v3185 = vpop.f32.mrb[0].mxu0
        %3186 = vdwg.mxu0
        %v3195 = vunpack.c.l.b16 %v3091
        %v3196 = vunpack.c.l.b16 %v3092
        %v3197 = vunpack.c.l.b16 %v3093
        %v3198 = vunpack.c.l.b16 %v3094
        %v3199 = vunpack.c.l.b16 %v3095
        %v3200 = vunpack.c.l.b16 %v3096
        %v3201 = vunpack.c.l.b16 %v3097
        %v3202 = vunpack.c.l.b16 %v3098
        %v3203 = vpack.c.b16 %v3196, %v3195
        %v3204 = vpack.c.b16 %v3198, %v3197
        %v3205 = vpack.c.b16 %v3200, %v3199
        %v3206 = vpack.c.b16 %v3202, %v3201
        %v3212 = vsel %vm1582, %v3090, 0
        %3214 = vmatprep.subr.bf16.mxu0 0
        %3215 = vmatpush1.bf16.msra.mxu0 %v3203
        %3216 = vmatprep.subr.bf16.mxu0 0
        %3217 = vmatpush1.bf16.msra.mxu0 %v3204
        %3218 = vmatprep.subr.bf16.mxu0 0
        %3219 = vmatpush1.bf16.msra.mxu0 %v3205
        %3220 = vmatprep.subr.bf16.mxu0 0
        %3221 = vmatpush1.bf16.msra.mxu0 %v3206
        %3222 = vmatprep.subr.bf16.mxu0 0
        %3223 = vmatpush1.bf16.msra.mxu0 0
        %3224 = vmatprep.subr.bf16.mxu0 0
        %3225 = vmatpush1.bf16.msra.mxu0 0
        %3226 = vmatprep.subr.bf16.mxu0 0
        %3227 = vmatpush1.bf16.msra.mxu0 0
        %3228 = vmatprep.subr.bf16.mxu0 0
        %3229 = vmatpush1.bf16.msra.mxu0 0
        %3230 = vmatprep.subr.bf16.mxu0 0
        %3231 = vmatpush1.bf16.msra.mxu0 0
        %3232 = vmatprep.subr.bf16.mxu0 0
        %3233 = vmatpush1.bf16.msra.mxu0 0
        %3234 = vmatprep.subr.bf16.mxu0 0
        %3235 = vmatpush1.bf16.msra.mxu0 0
        %3236 = vmatprep.subr.bf16.mxu0 0
        %3237 = vmatpush1.bf16.msra.mxu0 0
        %3238 = vmatprep.subr.bf16.mxu0 0
        %3239 = vmatpush1.bf16.msra.mxu0 0
        %3240 = vmatprep.subr.bf16.mxu0 0
        %3241 = vmatpush1.bf16.msra.mxu0 0
        %3242 = vmatprep.subr.bf16.mxu0 0
        %3243 = vmatpush1.bf16.msra.mxu0 0
        %3244 = vmatprep.subr.bf16.mxu0 0
        %3245 = vmatpush1.bf16.msra.mxu0 0
        %3246 = vmatprep.mubr.bf16.mxu0 0
        %3247 = vmatmul.mubr.bf16.gmra.mrb[0].mxu0 %v3212
        %v3248 = vpop.f32.mrb[0].mxu0
        %v3249 = vadd.f32 %v3182, %v3248
        %v3250 = vpop.f32.mrb[0].mxu0
        %v3251 = vpop.f32.mrb[0].mxu0
        %v3252 = vpop.f32.mrb[0].mxu0
        %3253 = vdwg.mxu0
        %v3254 = vld [vmem:[#allocation5] sm:$0xe]
        %v3255 = vld [vmem:[#allocation19 + $0x40] sm:$0xf]
        %v3256 = vld [vmem:[#allocation19 + $0x44] sm:$0xf]
        %v3257 = vld [vmem:[#allocation19 + $0x48] sm:$0xf]
        %v3258 = vld [vmem:[#allocation19 + $0x4c] sm:$0xf]
        %v3259 = vld [vmem:[#allocation19 + $0x50] sm:$0xf]
        %v3260 = vld [vmem:[#allocation19 + $0x54] sm:$0xf]
        %v3261 = vld [vmem:[#allocation19 + $0x58] sm:$0xf]
        %v3262 = vld [vmem:[#allocation19 + $0x5c] sm:$0xf]
        %v3264 = vunpack.c.l.b16 %v3254
        %v3265 = vpack.c.b16 %v3111, %v3264
        %v3266 = vrot.slane %v3265, 1
        %v3275 = vunpack.c.l.b16 %v3255
        %v3276 = vunpack.c.l.b16 %v3256
        %v3277 = vunpack.c.l.b16 %v3257
        %v3278 = vunpack.c.l.b16 %v3258
        %v3279 = vunpack.c.l.b16 %v3259
        %v3280 = vunpack.c.l.b16 %v3260
        %v3281 = vunpack.c.l.b16 %v3261
        %v3282 = vunpack.c.l.b16 %v3262
        %v3283 = vpack.c.b16 %v3276, %v3275
        %v3284 = vpack.c.b16 %v3278, %v3277
        %v3285 = vpack.c.b16 %v3280, %v3279
        %v3286 = vpack.c.b16 %v3282, %v3281
        %v3292 = vsel %vm1582, %v3266, 0
        %3294 = vmatprep.subr.bf16.mxu0 0
        %3295 = vmatpush1.bf16.msra.mxu0 %v3283
        %3296 = vmatprep.subr.bf16.mxu0 0
        %3297 = vmatpush1.bf16.msra.mxu0 %v3284
        %3298 = vmatprep.subr.bf16.mxu0 0
        %3299 = vmatpush1.bf16.msra.mxu0 %v3285
        %3300 = vmatprep.subr.bf16.mxu0 0
        %3301 = vmatpush1.bf16.msra.mxu0 %v3286
        %3302 = vmatprep.subr.bf16.mxu0 0
        %3303 = vmatpush1.bf16.msra.mxu0 0
        %3304 = vmatprep.subr.bf16.mxu0 0
        %3305 = vmatpush1.bf16.msra.mxu0 0
        %3306 = vmatprep.subr.bf16.mxu0 0
        %3307 = vmatpush1.bf16.msra.mxu0 0
        %3308 = vmatprep.subr.bf16.mxu0 0
        %3309 = vmatpush1.bf16.msra.mxu0 0
        %3310 = vmatprep.subr.bf16.mxu0 0
        %3311 = vmatpush1.bf16.msra.mxu0 0
        %3312 = vmatprep.subr.bf16.mxu0 0
        %3313 = vmatpush1.bf16.msra.mxu0 0
        %3314 = vmatprep.subr.bf16.mxu0 0
        %3315 = vmatpush1.bf16.msra.mxu0 0
        %3316 = vmatprep.subr.bf16.mxu0 0
        %3317 = vmatpush1.bf16.msra.mxu0 0
        %3318 = vmatprep.subr.bf16.mxu0 0
        %3319 = vmatpush1.bf16.msra.mxu0 0
        %3320 = vmatprep.subr.bf16.mxu0 0
        %3321 = vmatpush1.bf16.msra.mxu0 0
        %3322 = vmatprep.subr.bf16.mxu0 0
        %3323 = vmatpush1.bf16.msra.mxu0 0
        %3324 = vmatprep.subr.bf16.mxu0 0
        %3325 = vmatpush1.bf16.msra.mxu0 0
        %3326 = vmatprep.mubr.bf16.mxu0 0
        %3327 = vmatmul.mubr.bf16.gmra.mrb[0].mxu0 %v3292
        %v3328 = vpop.f32.mrb[0].mxu0
        %v3329 = vadd.f32 0.0, %v3328
        %v3330 = vpop.f32.mrb[0].mxu0
        %v3331 = vpop.f32.mrb[0].mxu0
        %v3332 = vpop.f32.mrb[0].mxu0
        %3333 = vdwg.mxu0
        %v3334 = vadd.f32 %v3249, %v3329
        %v3335 = vld [vmem:[#allocation20] sm:$0x1]
        %v3337 = vlaneseq
        %v3338 = vshrl.u32 %v3337, 7
        %v3339 = vsub.s32 0, %v3338
        %v3340 = vrot.slane %v3335, %v3339
        %vm3342 = vcmask 64512
        %v3343 = vsel %vm3342, %v1578, 0
        %3345 = vmatprep.subr.mxu0 0.0
        %3346 = vmatpush1.msra.mxu0 %v3334
        %3347 = vmatprep.subr.mxu0 0.0
        %3348 = vmatpush1.msra.mxu0 0.0
        %3349 = vmatprep.subr.mxu0 0.0
        %3350 = vmatpush1.msra.mxu0 0.0
        %3351 = vmatprep.subr.mxu0 0.0
        %3352 = vmatpush1.msra.mxu0 0.0
        %3353 = vmatprep.subr.mxu0 0.0
        %3354 = vmatpush1.msra.mxu0 0.0
        %3355 = vmatprep.subr.mxu0 0.0
        %3356 = vmatpush1.msra.mxu0 0.0
        %3357 = vmatprep.subr.mxu0 0.0
        %3358 = vmatpush1.msra.mxu0 0.0
        %3359 = vmatprep.subr.mxu0 0.0
        %3360 = vmatpush1.msra.mxu0 0.0
        %3361 = vmatprep.subr.mxu0 0.0
        %3362 = vmatpush1.msra.mxu0 0.0
        %3363 = vmatprep.subr.mxu0 0.0
        %3364 = vmatpush1.msra.mxu0 0.0
        %3365 = vmatprep.subr.mxu0 0.0
        %3366 = vmatpush1.msra.mxu0 0.0
        %3367 = vmatprep.subr.mxu0 0.0
        %3368 = vmatpush1.msra.mxu0 0.0
        %3369 = vmatprep.subr.mxu0 0.0
        %3370 = vmatpush1.msra.mxu0 0.0
        %3371 = vmatprep.subr.mxu0 0.0
        %3372 = vmatpush1.msra.mxu0 0.0
        %3373 = vmatprep.subr.mxu0 0.0
        %3374 = vmatpush1.msra.mxu0 0.0
        %3375 = vmatprep.subr.mxu0 0.0
        %3376 = vmatpush1.msra.mxu0 0.0
        %3377 = vmatprep.subr.mxu0 0.0
        %3378 = vmatpush1.msra.mxu0 0.0
        %3379 = vmatprep.subr.mxu0 0.0
        %3380 = vmatpush1.msra.mxu0 0.0
        %3381 = vmatprep.subr.mxu0 0.0
        %3382 = vmatpush1.msra.mxu0 0.0
        %3383 = vmatprep.subr.mxu0 0.0
        %3384 = vmatpush1.msra.mxu0 0.0
        %3385 = vmatprep.subr.mxu0 0.0
        %3386 = vmatpush1.msra.mxu0 0.0
        %3387 = vmatprep.subr.mxu0 0.0
        %3388 = vmatpush1.msra.mxu0 0.0
        %3389 = vmatprep.subr.mxu0 0.0
        %3390 = vmatpush1.msra.mxu0 0.0
        %3391 = vmatprep.subr.mxu0 0.0
        %3392 = vmatpush1.msra.mxu0 0.0
        %3393 = vmatprep.subr.mxu0 0.0
        %3394 = vmatpush1.msra.mxu0 0.0
        %3395 = vmatprep.subr.mxu0 0.0
        %3396 = vmatpush1.msra.mxu0 0.0
        %3397 = vmatprep.subr.mxu0 0.0
        %3398 = vmatpush1.msra.mxu0 0.0
        %3399 = vmatprep.subr.mxu0 0.0
        %3400 = vmatpush1.msra.mxu0 0.0
        %3401 = vmatprep.subr.mxu0 0.0
        %3402 = vmatpush1.msra.mxu0 0.0
        %3403 = vmatprep.subr.mxu0 0.0
        %3404 = vmatpush1.msra.mxu0 0.0
        %3405 = vmatprep.subr.mxu0 0.0
        %3406 = vmatpush1.msra.mxu0 0.0
        %3407 = vmatprep.subr.mxu0 0.0
        %3408 = vmatpush1.msra.mxu0 0.0
        %3409 = vmatprep.mubr.f32.mxu0 0.0
        %3410 = vmatmul.mubr.f32.gmra.mrb[0].mxu0 %v3343
        %v3411 = vpop.f32.mrb[0].mxu0
        %v3412 = vadd.f32 %v3340, %v3411
        %v3413 = vpop.f32.mrb[0].mxu0
        %3414 = vdwg.mxu0
        %v3415 = vmax.f32 %v3412, 0.0
        %3416 = vmatprep.subr.mxu0 0.0
        %3417 = vmatpush1.msra.mxu0 %v3067
        %3418 = vmatprep.subr.mxu0 0.0
        %3419 = vmatpush1.msra.mxu0 0.0
        %3420 = vmatprep.subr.mxu0 0.0
        %3421 = vmatpush1.msra.mxu0 0.0
        %3422 = vmatprep.subr.mxu0 0.0
        %3423 = vmatpush1.msra.mxu0 0.0
        %3424 = vmatprep.subr.mxu0 0.0
        %3425 = vmatpush1.msra.mxu0 0.0
        %3426 = vmatprep.subr.mxu0 0.0
        %3427 = vmatpush1.msra.mxu0 0.0
        %3428 = vmatprep.subr.mxu0 0.0
        %3429 = vmatpush1.msra.mxu0 0.0
        %3430 = vmatprep.subr.mxu0 0.0
        %3431 = vmatpush1.msra.mxu0 0.0
        %3432 = vmatprep.subr.mxu0 0.0
        %3433 = vmatpush1.msra.mxu0 0.0
        %3434 = vmatprep.subr.mxu0 0.0
        %3435 = vmatpush1.msra.mxu0 0.0
        %3436 = vmatprep.subr.mxu0 0.0
        %3437 = vmatpush1.msra.mxu0 0.0
        %3438 = vmatprep.subr.mxu0 0.0
        %3439 = vmatpush1.msra.mxu0 0.0
        %3440 = vmatprep.subr.mxu0 0.0
        %3441 = vmatpush1.msra.mxu0 0.0
        %3442 = vmatprep.subr.mxu0 0.0
        %3443 = vmatpush1.msra.mxu0 0.0
        %3444 = vmatprep.subr.mxu0 0.0
        %3445 = vmatpush1.msra.mxu0 0.0
        %3446 = vmatprep.subr.mxu0 0.0
        %3447 = vmatpush1.msra.mxu0 0.0
        %3448 = vmatprep.subr.mxu0 0.0
        %3449 = vmatpush1.msra.mxu0 0.0
        %3450 = vmatprep.subr.mxu0 0.0
        %3451 = vmatpush1.msra.mxu0 0.0
        %3452 = vmatprep.subr.mxu0 0.0
        %3453 = vmatpush1.msra.mxu0 0.0
        %3454 = vmatprep.subr.mxu0 0.0
        %3455 = vmatpush1.msra.mxu0 0.0
        %3456 = vmatprep.subr.mxu0 0.0
        %3457 = vmatpush1.msra.mxu0 0.0
        %3458 = vmatprep.subr.mxu0 0.0
        %3459 = vmatpush1.msra.mxu0 0.0
        %3460 = vmatprep.subr.mxu0 0.0
        %3461 = vmatpush1.msra.mxu0 0.0
        %3462 = vmatprep.subr.mxu0 0.0
        %3463 = vmatpush1.msra.mxu0 0.0
        %3464 = vmatprep.subr.mxu0 0.0
        %3465 = vmatpush1.msra.mxu0 0.0
        %3466 = vmatprep.subr.mxu0 0.0
        %3467 = vmatpush1.msra.mxu0 0.0
        %3468 = vmatprep.subr.mxu0 0.0
        %3469 = vmatpush1.msra.mxu0 0.0
        %3470 = vmatprep.subr.mxu0 0.0
        %3471 = vmatpush1.msra.mxu0 0.0
        %3472 = vmatprep.subr.mxu0 0.0
        %3473 = vmatpush1.msra.mxu0 0.0
        %3474 = vmatprep.subr.mxu0 0.0
        %3475 = vmatpush1.msra.mxu0 0.0
        %3476 = vmatprep.subr.mxu0 0.0
        %3477 = vmatpush1.msra.mxu0 0.0
        %3478 = vmatprep.subr.mxu0 0.0
        %3479 = vmatpush1.msra.mxu0 0.0
        %3480 = vmatprep.mubr.f32.mxu0 0.0
        %3481 = vmatmul.mubr.f32.gmra.mrb[0].mxu0 %v3343
        %v3482 = vpop.f32.mrb[0].mxu0
        %v3483 = vadd.f32 0.0, %v3482
        %v3484 = vpop.f32.mrb[0].mxu0
        %3485 = vdwg.mxu0
        %v3486 = vpack.c.bf16 %v3483, %v3483
        %v3487 = vld [vmem:[#allocation22] sm:$0xf]
        %v3488 = vld [vmem:[#allocation22 + $0x4] sm:$0xf]
        %v3489 = vld [vmem:[#allocation22 + $0x8] sm:$0xf]
        %v3490 = vld [vmem:[#allocation22 + $0xc] sm:$0xf]
        %v3491 = vld [vmem:[#allocation22 + $0x10] sm:$0xf]
        %v3492 = vld [vmem:[#allocation22 + $0x14] sm:$0xf]
        %v3493 = vld [vmem:[#allocation22 + $0x18] sm:$0xf]
        %v3494 = vld [vmem:[#allocation22 + $0x1c] sm:$0xf]
        %v3495 = vld [vmem:[#allocation23] sm:$0x1]
        %v3497 = vlaneseq
        %v3498 = vshrl.u32 %v3497, 7
        %v3499 = vsub.s32 0, %v3498
        %v3500 = vrot.slane %v3495, %v3499
        %v3510 = vunpack.c.l.b16 %v3487
        %v3511 = vunpack.c.l.b16 %v3488
        %v3512 = vunpack.c.l.b16 %v3489
        %v3513 = vunpack.c.l.b16 %v3490
        %v3514 = vunpack.c.l.b16 %v3491
        %v3515 = vunpack.c.l.b16 %v3492
        %v3516 = vunpack.c.l.b16 %v3493
        %v3517 = vunpack.c.l.b16 %v3494
        %v3518 = vpack.c.b16 %v3511, %v3510
        %v3519 = vpack.c.b16 %v3513, %v3512
        %v3520 = vpack.c.b16 %v3515, %v3514
        %v3521 = vpack.c.b16 %v3517, %v3516
        %v3527 = vsel %vm1582, %v3486, 0
        %3529 = vmatprep.subr.bf16.mxu0 0
        %3530 = vmatpush1.bf16.msra.mxu0 %v3518
        %3531 = vmatprep.subr.bf16.mxu0 0
        %3532 = vmatpush1.bf16.msra.mxu0 %v3519
        %3533 = vmatprep.subr.bf16.mxu0 0
        %3534 = vmatpush1.bf16.msra.mxu0 %v3520
        %3535 = vmatprep.subr.bf16.mxu0 0
        %3536 = vmatpush1.bf16.msra.mxu0 %v3521
        %3537 = vmatprep.subr.bf16.mxu0 0
        %3538 = vmatpush1.bf16.msra.mxu0 0
        %3539 = vmatprep.subr.bf16.mxu0 0
        %3540 = vmatpush1.bf16.msra.mxu0 0
        %3541 = vmatprep.subr.bf16.mxu0 0
        %3542 = vmatpush1.bf16.msra.mxu0 0
        %3543 = vmatprep.subr.bf16.mxu0 0
        %3544 = vmatpush1.bf16.msra.mxu0 0
        %3545 = vmatprep.subr.bf16.mxu0 0
        %3546 = vmatpush1.bf16.msra.mxu0 0
        %3547 = vmatprep.subr.bf16.mxu0 0
        %3548 = vmatpush1.bf16.msra.mxu0 0
        %3549 = vmatprep.subr.bf16.mxu0 0
        %3550 = vmatpush1.bf16.msra.mxu0 0
        %3551 = vmatprep.subr.bf16.mxu0 0
        %3552 = vmatpush1.bf16.msra.mxu0 0
        %3553 = vmatprep.subr.bf16.mxu0 0
        %3554 = vmatpush1.bf16.msra.mxu0 0
        %3555 = vmatprep.subr.bf16.mxu0 0
        %3556 = vmatpush1.bf16.msra.mxu0 0
        %3557 = vmatprep.subr.bf16.mxu0 0
        %3558 = vmatpush1.bf16.msra.mxu0 0
        %3559 = vmatprep.subr.bf16.mxu0 0
        %3560 = vmatpush1.bf16.msra.mxu0 0
        %3561 = vmatprep.mubr.bf16.mxu0 0
        %3562 = vmatmul.mubr.bf16.gmra.mrb[0].mxu0 %v3527
        %v3563 = vpop.f32.mrb[0].mxu0
        %v3564 = vadd.f32 %v3500, %v3563
        %v3565 = vpop.f32.mrb[0].mxu0
        %v3566 = vpop.f32.mrb[0].mxu0
        %v3567 = vpop.f32.mrb[0].mxu0
        %3568 = vdwg.mxu0
        %3569 = vst [vmem:[#allocation6] sm:$0x7] 0
        %v3570 = vpack.c.bf16 %v3415, %v3415
        %v3572 = vunpack.c.l.b16 %v3570
        %v3573 = vpack.c.b16 %v3572, %v3572
        %v3575 = vshrl.u32 %v3573, 16
        %v3577 = vrot.slane %v3575, 7
        %v3578 = vshll.u32 %v3573, 16
        %v3580 = vor.u32 %v3577, %v3578
        %vm3582 = vcmask 1042432
        %vm3583 = vsmask.f32 2306
        %vm3584 = vmand %vm3582, %vm3583
        %v3585 = vld [vmem:[#allocation6] sm:$0x7]
        %v3586 = vsel %vm3584, %v3580, %v3585
        %3587 = vst [vmem:[#allocation6] sm:$0x7] %v3586
        %v3588 = vld [vmem:[#allocation6] sm:$0x3]
        %v3589 = vld [vmem:[%s17] sm:$0xf]
        %v3590 = vld [vmem:[%s17 + $0x4] sm:$0xf]
        %v3591 = vld [vmem:[%s17 + $0x8] sm:$0xf]
        %v3592 = vld [vmem:[%s17 + $0xc] sm:$0xf]
        %v3593 = vld [vmem:[%s17 + $0x10] sm:$0xf]
        %v3594 = vld [vmem:[%s17 + $0x14] sm:$0xf]
        %v3595 = vld [vmem:[%s17 + $0x18] sm:$0xf]
        %v3596 = vld [vmem:[%s17 + $0x1c] sm:$0xf]
        %v3597 = vld [vmem:[%s17 + $0x20] sm:$0xf]
        %v3598 = vld [vmem:[%s17 + $0x24] sm:$0xf]
        %v3599 = vld [vmem:[%s17 + $0x28] sm:$0xf]
        %v3600 = vld [vmem:[%s17 + $0x2c] sm:$0xf]
        %v3601 = vld [vmem:[%s17 + $0x30] sm:$0xf]
        %v3602 = vld [vmem:[%s17 + $0x34] sm:$0xf]
        %v3603 = vld [vmem:[%s17 + $0x38] sm:$0xf]
        %v3604 = vld [vmem:[%s17 + $0x3c] sm:$0xf]
        %v3605 = vld [vmem:[#allocation6] sm:$0x7]
        %v3606 = vld [vmem:[%s17 + $0x40] sm:$0xf]
        %v3607 = vld [vmem:[%s17 + $0x44] sm:$0xf]
        %v3608 = vld [vmem:[%s17 + $0x48] sm:$0xf]
        %v3609 = vld [vmem:[%s17 + $0x4c] sm:$0xf]
        %v3610 = vld [vmem:[%s17 + $0x50] sm:$0xf]
        %v3611 = vld [vmem:[%s17 + $0x54] sm:$0xf]
        %v3612 = vld [vmem:[%s17 + $0x58] sm:$0xf]
        %v3613 = vld [vmem:[%s17 + $0x5c] sm:$0xf]
        %v3614 = vld [vmem:[%s17 + $0x60] sm:$0xf]
        %v3615 = vld [vmem:[%s17 + $0x64] sm:$0xf]
        %v3616 = vld [vmem:[%s17 + $0x68] sm:$0xf]
        %v3617 = vld [vmem:[%s17 + $0x6c] sm:$0xf]
        %v3618 = vld [vmem:[%s17 + $0x70] sm:$0xf]
        %v3619 = vld [vmem:[%s17 + $0x74] sm:$0xf]
        %v3620 = vld [vmem:[%s17 + $0x78] sm:$0xf]
        %v3621 = vld [vmem:[%s17 + $0x7c] sm:$0xf]
        %v3623 = vunpack.c.l.b16 %v3605
        %v3624 = vpack.c.b16 %v3623, %v3623
        %v3626 = vshrl.u32 %v3624, 16
        %v3628 = vshll.u32 %v3624, 16
        %v3630 = vrot.slane %v3628, 1
        %v3631 = vor.u32 %v3626, %v3630
        %v3649 = vunpack.c.l.b16 %v3606
        %v3650 = vunpack.c.l.b16 %v3607
        %v3651 = vunpack.c.l.b16 %v3608
        %v3652 = vunpack.c.l.b16 %v3609
        %v3653 = vunpack.c.l.b16 %v3610
        %v3654 = vunpack.c.l.b16 %v3611
        %v3655 = vunpack.c.l.b16 %v3612
        %v3656 = vunpack.c.l.b16 %v3613
        %v3657 = vunpack.c.l.b16 %v3614
        %v3658 = vunpack.c.l.b16 %v3615
        %v3659 = vunpack.c.l.b16 %v3616
        %v3660 = vunpack.c.l.b16 %v3617
        %v3661 = vunpack.c.l.b16 %v3618
        %v3662 = vunpack.c.l.b16 %v3619
        %v3663 = vunpack.c.l.b16 %v3620
        %v3664 = vunpack.c.l.b16 %v3621
        %v3665 = vpack.c.b16 %v3650, %v3649
        %v3666 = vpack.c.b16 %v3652, %v3651
        %v3667 = vpack.c.b16 %v3654, %v3653
        %v3668 = vpack.c.b16 %v3656, %v3655
        %v3669 = vpack.c.b16 %v3658, %v3657
        %v3670 = vpack.c.b16 %v3660, %v3659
        %v3671 = vpack.c.b16 %v3662, %v3661
        %v3672 = vpack.c.b16 %v3664, %v3663
        %3681 = vmatprep.subr.bf16.mxu0 0
        %3682 = vmatpush1.bf16.msra.mxu0 %v3665
        %3683 = vmatprep.subr.bf16.mxu0 0
        %3684 = vmatpush1.bf16.msra.mxu0 %v3666
        %3685 = vmatprep.subr.bf16.mxu0 0
        %3686 = vmatpush1.bf16.msra.mxu0 %v3667
        %3687 = vmatprep.subr.bf16.mxu0 0
        %3688 = vmatpush1.bf16.msra.mxu0 %v3668
        %3689 = vmatprep.subr.bf16.mxu0 0
        %3690 = vmatpush1.bf16.msra.mxu0 %v3669
        %3691 = vmatprep.subr.bf16.mxu0 0
        %3692 = vmatpush1.bf16.msra.mxu0 %v3670
        %3693 = vmatprep.subr.bf16.mxu0 0
        %3694 = vmatpush1.bf16.msra.mxu0 %v3671
        %3695 = vmatprep.subr.bf16.mxu0 0
        %3696 = vmatpush1.bf16.msra.mxu0 %v3672
        %3697 = vmatprep.subr.bf16.mxu0 0
        %3698 = vmatpush1.bf16.msra.mxu0 0
        %3699 = vmatprep.subr.bf16.mxu0 0
        %3700 = vmatpush1.bf16.msra.mxu0 0
        %3701 = vmatprep.subr.bf16.mxu0 0
        %3702 = vmatpush1.bf16.msra.mxu0 0
        %3703 = vmatprep.subr.bf16.mxu0 0
        %3704 = vmatpush1.bf16.msra.mxu0 0
        %3705 = vmatprep.subr.bf16.mxu0 0
        %3706 = vmatpush1.bf16.msra.mxu0 0
        %3707 = vmatprep.subr.bf16.mxu0 0
        %3708 = vmatpush1.bf16.msra.mxu0 0
        %3709 = vmatprep.subr.bf16.mxu0 0
        %3710 = vmatpush1.bf16.msra.mxu0 0
        %3711 = vmatprep.subr.bf16.mxu0 0
        %3712 = vmatpush1.bf16.msra.mxu0 0
        %3713 = vmatprep.mubr.bf16.mxu0 0
        %3714 = vmatmul.mubr.bf16.gmra.mrb[0].mxu0 %v3631
        %v3715 = vpop.f32.mrb[0].mxu0
        %v3716 = vadd.f32 0.0, %v3715
        %v3717 = vpop.f32.mrb[0].mxu0
        %v3718 = vpop.f32.mrb[0].mxu0
        %v3719 = vpop.f32.mrb[0].mxu0
        %3720 = vdwg.mxu0
        %v3737 = vunpack.c.l.b16 %v3589
        %v3738 = vunpack.c.l.b16 %v3590
        %v3739 = vunpack.c.l.b16 %v3591
        %v3740 = vunpack.c.l.b16 %v3592
        %v3741 = vunpack.c.l.b16 %v3593
        %v3742 = vunpack.c.l.b16 %v3594
        %v3743 = vunpack.c.l.b16 %v3595
        %v3744 = vunpack.c.l.b16 %v3596
        %v3745 = vunpack.c.l.b16 %v3597
        %v3746 = vunpack.c.l.b16 %v3598
        %v3747 = vunpack.c.l.b16 %v3599
        %v3748 = vunpack.c.l.b16 %v3600
        %v3749 = vunpack.c.l.b16 %v3601
        %v3750 = vunpack.c.l.b16 %v3602
        %v3751 = vunpack.c.l.b16 %v3603
        %v3752 = vunpack.c.l.b16 %v3604
        %v3753 = vpack.c.b16 %v3738, %v3737
        %v3754 = vpack.c.b16 %v3740, %v3739
        %v3755 = vpack.c.b16 %v3742, %v3741
        %v3756 = vpack.c.b16 %v3744, %v3743
        %v3757 = vpack.c.b16 %v3746, %v3745
        %v3758 = vpack.c.b16 %v3748, %v3747
        %v3759 = vpack.c.b16 %v3750, %v3749
        %v3760 = vpack.c.b16 %v3752, %v3751
        %3769 = vmatprep.subr.bf16.mxu0 0
        %3770 = vmatpush1.bf16.msra.mxu0 %v3753
        %3771 = vmatprep.subr.bf16.mxu0 0
        %3772 = vmatpush1.bf16.msra.mxu0 %v3754
        %3773 = vmatprep.subr.bf16.mxu0 0
        %3774 = vmatpush1.bf16.msra.mxu0 %v3755
        %3775 = vmatprep.subr.bf16.mxu0 0
        %3776 = vmatpush1.bf16.msra.mxu0 %v3756
        %3777 = vmatprep.subr.bf16.mxu0 0
        %3778 = vmatpush1.bf16.msra.mxu0 %v3757
        %3779 = vmatprep.subr.bf16.mxu0 0
        %3780 = vmatpush1.bf16.msra.mxu0 %v3758
        %3781 = vmatprep.subr.bf16.mxu0 0
        %3782 = vmatpush1.bf16.msra.mxu0 %v3759
        %3783 = vmatprep.subr.bf16.mxu0 0
        %3784 = vmatpush1.bf16.msra.mxu0 %v3760
        %3785 = vmatprep.subr.bf16.mxu0 0
        %3786 = vmatpush1.bf16.msra.mxu0 0
        %3787 = vmatprep.subr.bf16.mxu0 0
        %3788 = vmatpush1.bf16.msra.mxu0 0
        %3789 = vmatprep.subr.bf16.mxu0 0
        %3790 = vmatpush1.bf16.msra.mxu0 0
        %3791 = vmatprep.subr.bf16.mxu0 0
        %3792 = vmatpush1.bf16.msra.mxu0 0
        %3793 = vmatprep.subr.bf16.mxu0 0
        %3794 = vmatpush1.bf16.msra.mxu0 0
        %3795 = vmatprep.subr.bf16.mxu0 0
        %3796 = vmatpush1.bf16.msra.mxu0 0
        %3797 = vmatprep.subr.bf16.mxu0 0
        %3798 = vmatpush1.bf16.msra.mxu0 0
        %3799 = vmatprep.subr.bf16.mxu0 0
        %3800 = vmatpush1.bf16.msra.mxu0 0
        %3801 = vmatprep.mubr.bf16.mxu0 0
        %3802 = vmatmul.mubr.bf16.gmra.mrb[0].mxu0 %v3588
        %v3803 = vpop.f32.mrb[0].mxu0
        %v3804 = vadd.f32 %v3716, %v3803
        %v3805 = vpop.f32.mrb[0].mxu0
        %v3806 = vpop.f32.mrb[0].mxu0
        %v3807 = vpop.f32.mrb[0].mxu0
        %3808 = vdwg.mxu0
        %v3809 = vld [vmem:[#allocation6] sm:$0x6]
        %v3810 = vld [vmem:[%s17 + $0x80] sm:$0xf]
        %v3811 = vld [vmem:[%s17 + $0x84] sm:$0xf]
        %v3812 = vld [vmem:[%s17 + $0x88] sm:$0xf]
        %v3813 = vld [vmem:[%s17 + $0x8c] sm:$0xf]
        %v3814 = vld [vmem:[%s17 + $0x90] sm:$0xf]
        %v3815 = vld [vmem:[%s17 + $0x94] sm:$0xf]
        %v3816 = vld [vmem:[%s17 + $0x98] sm:$0xf]
        %v3817 = vld [vmem:[%s17 + $0x9c] sm:$0xf]
        %v3818 = vld [vmem:[%s17 + $0xa0] sm:$0xf]
        %v3819 = vld [vmem:[%s17 + $0xa4] sm:$0xf]
        %v3820 = vld [vmem:[%s17 + $0xa8] sm:$0xf]
        %v3821 = vld [vmem:[%s17 + $0xac] sm:$0xf]
        %v3822 = vld [vmem:[%s17 + $0xb0] sm:$0xf]
        %v3823 = vld [vmem:[%s17 + $0xb4] sm:$0xf]
        %v3824 = vld [vmem:[%s17 + $0xb8] sm:$0xf]
        %v3825 = vld [vmem:[%s17 + $0xbc] sm:$0xf]
        %v3827 = vunpack.c.l.b16 %v3809
        %v3828 = vpack.c.b16 %v3827, %v3827
        %v3829 = vrot.slane %v3828, 1
        %v3847 = vunpack.c.l.b16 %v3810
        %v3848 = vunpack.c.l.b16 %v3811
        %v3849 = vunpack.c.l.b16 %v3812
        %v3850 = vunpack.c.l.b16 %v3813
        %v3851 = vunpack.c.l.b16 %v3814
        %v3852 = vunpack.c.l.b16 %v3815
        %v3853 = vunpack.c.l.b16 %v3816
        %v3854 = vunpack.c.l.b16 %v3817
        %v3855 = vunpack.c.l.b16 %v3818
        %v3856 = vunpack.c.l.b16 %v3819
        %v3857 = vunpack.c.l.b16 %v3820
        %v3858 = vunpack.c.l.b16 %v3821
        %v3859 = vunpack.c.l.b16 %v3822
        %v3860 = vunpack.c.l.b16 %v3823
        %v3861 = vunpack.c.l.b16 %v3824
        %v3862 = vunpack.c.l.b16 %v3825
        %v3863 = vpack.c.b16 %v3848, %v3847
        %v3864 = vpack.c.b16 %v3850, %v3849
        %v3865 = vpack.c.b16 %v3852, %v3851
        %v3866 = vpack.c.b16 %v3854, %v3853
        %v3867 = vpack.c.b16 %v3856, %v3855
        %v3868 = vpack.c.b16 %v3858, %v3857
        %v3869 = vpack.c.b16 %v3860, %v3859
        %v3870 = vpack.c.b16 %v3862, %v3861
        %3879 = vmatprep.subr.bf16.mxu0 0
        %3880 = vmatpush1.bf16.msra.mxu0 %v3863
        %3881 = vmatprep.subr.bf16.mxu0 0
        %3882 = vmatpush1.bf16.msra.mxu0 %v3864
        %3883 = vmatprep.subr.bf16.mxu0 0
        %3884 = vmatpush1.bf16.msra.mxu0 %v3865
        %3885 = vmatprep.subr.bf16.mxu0 0
        %3886 = vmatpush1.bf16.msra.mxu0 %v3866
        %3887 = vmatprep.subr.bf16.mxu0 0
        %3888 = vmatpush1.bf16.msra.mxu0 %v3867
        %3889 = vmatprep.subr.bf16.mxu0 0
        %3890 = vmatpush1.bf16.msra.mxu0 %v3868
        %3891 = vmatprep.subr.bf16.mxu0 0
        %3892 = vmatpush1.bf16.msra.mxu0 %v3869
        %3893 = vmatprep.subr.bf16.mxu0 0
        %3894 = vmatpush1.bf16.msra.mxu0 %v3870
        %3895 = vmatprep.subr.bf16.mxu0 0
        %3896 = vmatpush1.bf16.msra.mxu0 0
        %3897 = vmatprep.subr.bf16.mxu0 0
        %3898 = vmatpush1.bf16.msra.mxu0 0
        %3899 = vmatprep.subr.bf16.mxu0 0
        %3900 = vmatpush1.bf16.msra.mxu0 0
        %3901 = vmatprep.subr.bf16.mxu0 0
        %3902 = vmatpush1.bf16.msra.mxu0 0
        %3903 = vmatprep.subr.bf16.mxu0 0
        %3904 = vmatpush1.bf16.msra.mxu0 0
        %3905 = vmatprep.subr.bf16.mxu0 0
        %3906 = vmatpush1.bf16.msra.mxu0 0
        %3907 = vmatprep.subr.bf16.mxu0 0
        %3908 = vmatpush1.bf16.msra.mxu0 0
        %3909 = vmatprep.subr.bf16.mxu0 0
        %3910 = vmatpush1.bf16.msra.mxu0 0
        %3911 = vmatprep.mubr.bf16.mxu0 0
        %3912 = vmatmul.mubr.bf16.gmra.mrb[0].mxu0 %v3829
        %v3913 = vpop.f32.mrb[0].mxu0
        %v3914 = vadd.f32 0.0, %v3913
        %v3915 = vpop.f32.mrb[0].mxu0
        %v3916 = vpop.f32.mrb[0].mxu0
        %v3917 = vpop.f32.mrb[0].mxu0
        %3918 = vdwg.mxu0
        %v3919 = vadd.f32 %v3804, %v3914
        %v3920 = vld [vmem:[#allocation25] sm:$0x1]
        %v3922 = vlaneseq
        %v3923 = vshrl.u32 %v3922, 7
        %v3924 = vsub.s32 0, %v3923
        %v3925 = vrot.slane %v3920, %v3924
        %v3927 = vadd.f32 %v3919, %v3925
        %v3928 = vadd.f32 %v3927, %v3564
        %v3929 = vmax.f32 %v3928, 0.0
        %3930 = vst [vmem:[#allocation6] sm:$0x7] 0
        %v3931 = vpack.c.bf16 %v3929, %v3929
        %v3933 = vunpack.c.l.b16 %v3931
        %v3934 = vpack.c.b16 %v3933, %v3933
        %v3936 = vshrl.u32 %v3934, 16
        %v3938 = vrot.slane %v3936, 7
        %v3939 = vshll.u32 %v3934, 16
        %v3941 = vor.u32 %v3938, %v3939
        %v3943 = vld [vmem:[#allocation6] sm:$0x7]
        %v3944 = vsel %vm3584, %v3941, %v3943
        %3945 = vst [vmem:[#allocation6] sm:$0x7] %v3944
        %v3946 = vld [vmem:[#allocation6] sm:$0x3]
        %v3947 = vld [vmem:[%s19] sm:$0xff]
        %v3948 = vld [vmem:[%s19 + $0x8] sm:$0xff]
        %v3949 = vld [vmem:[%s19 + $0x10] sm:$0xff]
        %v3950 = vld [vmem:[%s19 + $0x18] sm:$0xff]
        %v3951 = vld [vmem:[%s19 + $0x20] sm:$0xff]
        %v3952 = vld [vmem:[%s19 + $0x28] sm:$0xff]
        %v3953 = vld [vmem:[%s19 + $0x30] sm:$0xff]
        %v3954 = vld [vmem:[%s19 + $0x38] sm:$0xff]
        %v3955 = vld [vmem:[%s19 + $0x40] sm:$0xff]
        %v3956 = vld [vmem:[%s19 + $0x48] sm:$0xff]
        %v3957 = vld [vmem:[%s19 + $0x50] sm:$0xff]
        %v3958 = vld [vmem:[%s19 + $0x58] sm:$0xff]
        %v3959 = vld [vmem:[%s19 + $0x60] sm:$0xff]
        %v3960 = vld [vmem:[%s19 + $0x68] sm:$0xff]
        %v3961 = vld [vmem:[%s19 + $0x70] sm:$0xff]
        %v3962 = vld [vmem:[%s19 + $0x78] sm:$0xff]
        %v3963 = vld [vmem:[#allocation6] sm:$0x7]
        %v3964 = vld [vmem:[%s19 + $0x80] sm:$0xff]
        %v3965 = vld [vmem:[%s19 + $0x88] sm:$0xff]
        %v3966 = vld [vmem:[%s19 + $0x90] sm:$0xff]
        %v3967 = vld [vmem:[%s19 + $0x98] sm:$0xff]
        %v3968 = vld [vmem:[%s19 + $0xa0] sm:$0xff]
        %v3969 = vld [vmem:[%s19 + $0xa8] sm:$0xff]
        %v3970 = vld [vmem:[%s19 + $0xb0] sm:$0xff]
        %v3971 = vld [vmem:[%s19 + $0xb8] sm:$0xff]
        %v3972 = vld [vmem:[%s19 + $0xc0] sm:$0xff]
        %v3973 = vld [vmem:[%s19 + $0xc8] sm:$0xff]
        %v3974 = vld [vmem:[%s19 + $0xd0] sm:$0xff]
        %v3975 = vld [vmem:[%s19 + $0xd8] sm:$0xff]
        %v3976 = vld [vmem:[%s19 + $0xe0] sm:$0xff]
        %v3977 = vld [vmem:[%s19 + $0xe8] sm:$0xff]
        %v3978 = vld [vmem:[%s19 + $0xf0] sm:$0xff]
        %v3979 = vld [vmem:[%s19 + $0xf8] sm:$0xff]
        %v3981 = vunpack.c.l.b16 %v3963
        %v3982 = vpack.c.b16 %v3981, %v3981
        %v3984 = vshrl.u32 %v3982, 16
        %v3986 = vshll.u32 %v3982, 16
        %v3988 = vrot.slane %v3986, 1
        %v3989 = vor.u32 %v3984, %v3988
        %v4007 = vunpack.c.l.b16 %v3964
        %v4008 = vunpack.c.h.b16 %v3964
        %v4009 = vunpack.c.l.b16 %v3965
        %v4010 = vunpack.c.h.b16 %v3965
        %v4011 = vunpack.c.l.b16 %v3966
        %v4012 = vunpack.c.h.b16 %v3966
        %v4013 = vunpack.c.l.b16 %v3967
        %v4014 = vunpack.c.h.b16 %v3967
        %v4015 = vunpack.c.l.b16 %v3968
        %v4016 = vunpack.c.h.b16 %v3968
        %v4017 = vunpack.c.l.b16 %v3969
        %v4018 = vunpack.c.h.b16 %v3969
        %v4019 = vunpack.c.l.b16 %v3970
        %v4020 = vunpack.c.h.b16 %v3970
        %v4021 = vunpack.c.l.b16 %v3971
        %v4022 = vunpack.c.h.b16 %v3971
        %v4023 = vunpack.c.l.b16 %v3972
        %v4024 = vunpack.c.h.b16 %v3972
        %v4025 = vunpack.c.l.b16 %v3973
        %v4026 = vunpack.c.h.b16 %v3973
        %v4027 = vunpack.c.l.b16 %v3974
        %v4028 = vunpack.c.h.b16 %v3974
        %v4029 = vunpack.c.l.b16 %v3975
        %v4030 = vunpack.c.h.b16 %v3975
        %v4031 = vunpack.c.l.b16 %v3976
        %v4032 = vunpack.c.h.b16 %v3976
        %v4033 = vunpack.c.l.b16 %v3977
        %v4034 = vunpack.c.h.b16 %v3977
        %v4035 = vunpack.c.l.b16 %v3978
        %v4036 = vunpack.c.h.b16 %v3978
        %v4037 = vunpack.c.l.b16 %v3979
        %v4038 = vunpack.c.h.b16 %v3979
        %v4039 = vpack.c.b16 %v4009, %v4007
        %v4040 = vpack.c.b16 %v4010, %v4008
        %v4041 = vpack.c.b16 %v4013, %v4011
        %v4042 = vpack.c.b16 %v4014, %v4012
        %v4043 = vpack.c.b16 %v4017, %v4015
        %v4044 = vpack.c.b16 %v4018, %v4016
        %v4045 = vpack.c.b16 %v4021, %v4019
        %v4046 = vpack.c.b16 %v4022, %v4020
        %v4047 = vpack.c.b16 %v4025, %v4023
        %v4048 = vpack.c.b16 %v4026, %v4024
        %v4049 = vpack.c.b16 %v4029, %v4027
        %v4050 = vpack.c.b16 %v4030, %v4028
        %v4051 = vpack.c.b16 %v4033, %v4031
        %v4052 = vpack.c.b16 %v4034, %v4032
        %v4053 = vpack.c.b16 %v4037, %v4035
        %v4054 = vpack.c.b16 %v4038, %v4036
        %4071 = vmatprep.subr.bf16.mxu0 %v4040
        %4072 = vmatpush1.bf16.msra.mxu0 %v4039
        %4073 = vmatprep.subr.bf16.mxu0 %v4042
        %4074 = vmatpush1.bf16.msra.mxu0 %v4041
        %4075 = vmatprep.subr.bf16.mxu0 %v4044
        %4076 = vmatpush1.bf16.msra.mxu0 %v4043
        %4077 = vmatprep.subr.bf16.mxu0 %v4046
        %4078 = vmatpush1.bf16.msra.mxu0 %v4045
        %4079 = vmatprep.subr.bf16.mxu0 %v4048
        %4080 = vmatpush1.bf16.msra.mxu0 %v4047
        %4081 = vmatprep.subr.bf16.mxu0 %v4050
        %4082 = vmatpush1.bf16.msra.mxu0 %v4049
        %4083 = vmatprep.subr.bf16.mxu0 %v4052
        %4084 = vmatpush1.bf16.msra.mxu0 %v4051
        %4085 = vmatprep.subr.bf16.mxu0 %v4054
        %4086 = vmatpush1.bf16.msra.mxu0 %v4053
        %4087 = vmatprep.subr.bf16.mxu0 0
        %4088 = vmatpush1.bf16.msra.mxu0 0
        %4089 = vmatprep.subr.bf16.mxu0 0
        %4090 = vmatpush1.bf16.msra.mxu0 0
        %4091 = vmatprep.subr.bf16.mxu0 0
        %4092 = vmatpush1.bf16.msra.mxu0 0
        %4093 = vmatprep.subr.bf16.mxu0 0
        %4094 = vmatpush1.bf16.msra.mxu0 0
        %4095 = vmatprep.subr.bf16.mxu0 0
        %4096 = vmatpush1.bf16.msra.mxu0 0
        %4097 = vmatprep.subr.bf16.mxu0 0
        %4098 = vmatpush1.bf16.msra.mxu0 0
        %4099 = vmatprep.subr.bf16.mxu0 0
        %4100 = vmatpush1.bf16.msra.mxu0 0
        %4101 = vmatprep.subr.bf16.mxu0 0
        %4102 = vmatpush1.bf16.msra.mxu0 0
        %4103 = vmatprep.mubr.bf16.mxu0 0
        %4104 = vmatmul.mubr.bf16.gmra.mrb[0].mxu0 %v3989
        %v4105 = vpop.f32.mrb[0].mxu0
        %v4106 = vadd.f32 0.0, %v4105
        %v4107 = vpop.f32.mrb[0].mxu0
        %v4108 = vadd.f32 0.0, %v4107
        %v4109 = vpop.f32.mrb[0].mxu0
        %v4110 = vpop.f32.mrb[0].mxu0
        %4111 = vdwg.mxu0
        %v4128 = vunpack.c.l.b16 %v3947
        %v4129 = vunpack.c.h.b16 %v3947
        %v4130 = vunpack.c.l.b16 %v3948
        %v4131 = vunpack.c.h.b16 %v3948
        %v4132 = vunpack.c.l.b16 %v3949
        %v4133 = vunpack.c.h.b16 %v3949
        %v4134 = vunpack.c.l.b16 %v3950
        %v4135 = vunpack.c.h.b16 %v3950
        %v4136 = vunpack.c.l.b16 %v3951
        %v4137 = vunpack.c.h.b16 %v3951
        %v4138 = vunpack.c.l.b16 %v3952
        %v4139 = vunpack.c.h.b16 %v3952
        %v4140 = vunpack.c.l.b16 %v3953
        %v4141 = vunpack.c.h.b16 %v3953
        %v4142 = vunpack.c.l.b16 %v3954
        %v4143 = vunpack.c.h.b16 %v3954
        %v4144 = vunpack.c.l.b16 %v3955
        %v4145 = vunpack.c.h.b16 %v3955
        %v4146 = vunpack.c.l.b16 %v3956
        %v4147 = vunpack.c.h.b16 %v3956
        %v4148 = vunpack.c.l.b16 %v3957
        %v4149 = vunpack.c.h.b16 %v3957
        %v4150 = vunpack.c.l.b16 %v3958
        %v4151 = vunpack.c.h.b16 %v3958
        %v4152 = vunpack.c.l.b16 %v3959
        %v4153 = vunpack.c.h.b16 %v3959
        %v4154 = vunpack.c.l.b16 %v3960
        %v4155 = vunpack.c.h.b16 %v3960
        %v4156 = vunpack.c.l.b16 %v3961
        %v4157 = vunpack.c.h.b16 %v3961
        %v4158 = vunpack.c.l.b16 %v3962
        %v4159 = vunpack.c.h.b16 %v3962
        %v4160 = vpack.c.b16 %v4130, %v4128
        %v4161 = vpack.c.b16 %v4131, %v4129
        %v4162 = vpack.c.b16 %v4134, %v4132
        %v4163 = vpack.c.b16 %v4135, %v4133
        %v4164 = vpack.c.b16 %v4138, %v4136
        %v4165 = vpack.c.b16 %v4139, %v4137
        %v4166 = vpack.c.b16 %v4142, %v4140
        %v4167 = vpack.c.b16 %v4143, %v4141
        %v4168 = vpack.c.b16 %v4146, %v4144
        %v4169 = vpack.c.b16 %v4147, %v4145
        %v4170 = vpack.c.b16 %v4150, %v4148
        %v4171 = vpack.c.b16 %v4151, %v4149
        %v4172 = vpack.c.b16 %v4154, %v4152
        %v4173 = vpack.c.b16 %v4155, %v4153
        %v4174 = vpack.c.b16 %v4158, %v4156
        %v4175 = vpack.c.b16 %v4159, %v4157
        %4192 = vmatprep.subr.bf16.mxu0 %v4161
        %4193 = vmatpush1.bf16.msra.mxu0 %v4160
        %4194 = vmatprep.subr.bf16.mxu0 %v4163
        %4195 = vmatpush1.bf16.msra.mxu0 %v4162
        %4196 = vmatprep.subr.bf16.mxu0 %v4165
        %4197 = vmatpush1.bf16.msra.mxu0 %v4164
        %4198 = vmatprep.subr.bf16.mxu0 %v4167
        %4199 = vmatpush1.bf16.msra.mxu0 %v4166
        %4200 = vmatprep.subr.bf16.mxu0 %v4169
        %4201 = vmatpush1.bf16.msra.mxu0 %v4168
        %4202 = vmatprep.subr.bf16.mxu0 %v4171
        %4203 = vmatpush1.bf16.msra.mxu0 %v4170
        %4204 = vmatprep.subr.bf16.mxu0 %v4173
        %4205 = vmatpush1.bf16.msra.mxu0 %v4172
        %4206 = vmatprep.subr.bf16.mxu0 %v4175
        %4207 = vmatpush1.bf16.msra.mxu0 %v4174
        %4208 = vmatprep.subr.bf16.mxu0 0
        %4209 = vmatpush1.bf16.msra.mxu0 0
        %4210 = vmatprep.subr.bf16.mxu0 0
        %4211 = vmatpush1.bf16.msra.mxu0 0
        %4212 = vmatprep.subr.bf16.mxu0 0
        %4213 = vmatpush1.bf16.msra.mxu0 0
        %4214 = vmatprep.subr.bf16.mxu0 0
        %4215 = vmatpush1.bf16.msra.mxu0 0
        %4216 = vmatprep.subr.bf16.mxu0 0
        %4217 = vmatpush1.bf16.msra.mxu0 0
        %4218 = vmatprep.subr.bf16.mxu0 0
        %4219 = vmatpush1.bf16.msra.mxu0 0
        %4220 = vmatprep.subr.bf16.mxu0 0
        %4221 = vmatpush1.bf16.msra.mxu0 0
        %4222 = vmatprep.subr.bf16.mxu0 0
        %4223 = vmatpush1.bf16.msra.mxu0 0
        %4224 = vmatprep.mubr.bf16.mxu0 0
        %4225 = vmatmul.mubr.bf16.gmra.mrb[0].mxu0 %v3946
        %v4226 = vpop.f32.mrb[0].mxu0
        %v4227 = vadd.f32 %v4106, %v4226
        %v4228 = vpop.f32.mrb[0].mxu0
        %v4229 = vadd.f32 %v4108, %v4228
        %v4230 = vpop.f32.mrb[0].mxu0
        %v4231 = vpop.f32.mrb[0].mxu0
        %4232 = vdwg.mxu0
        %v4233 = vld [vmem:[#allocation6] sm:$0x6]
        %v4234 = vld [vmem:[%s19 + $0x100] sm:$0xff]
        %v4235 = vld [vmem:[%s19 + $0x108] sm:$0xff]
        %v4236 = vld [vmem:[%s19 + $0x110] sm:$0xff]
        %v4237 = vld [vmem:[%s19 + $0x118] sm:$0xff]
        %v4238 = vld [vmem:[%s19 + $0x120] sm:$0xff]
        %v4239 = vld [vmem:[%s19 + $0x128] sm:$0xff]
        %v4240 = vld [vmem:[%s19 + $0x130] sm:$0xff]
        %v4241 = vld [vmem:[%s19 + $0x138] sm:$0xff]
        %v4242 = vld [vmem:[%s19 + $0x140] sm:$0xff]
        %v4243 = vld [vmem:[%s19 + $0x148] sm:$0xff]
        %v4244 = vld [vmem:[%s19 + $0x150] sm:$0xff]
        %v4245 = vld [vmem:[%s19 + $0x158] sm:$0xff]
        %v4246 = vld [vmem:[%s19 + $0x160] sm:$0xff]
        %v4247 = vld [vmem:[%s19 + $0x168] sm:$0xff]
        %v4248 = vld [vmem:[%s19 + $0x170] sm:$0xff]
        %v4249 = vld [vmem:[%s19 + $0x178] sm:$0xff]
        %v4251 = vunpack.c.l.b16 %v4233
        %v4252 = vpack.c.b16 %v4251, %v4251
        %v4253 = vrot.slane %v4252, 1
        %v4271 = vunpack.c.l.b16 %v4234
        %v4272 = vunpack.c.h.b16 %v4234
        %v4273 = vunpack.c.l.b16 %v4235
        %v4274 = vunpack.c.h.b16 %v4235
        %v4275 = vunpack.c.l.b16 %v4236
        %v4276 = vunpack.c.h.b16 %v4236
        %v4277 = vunpack.c.l.b16 %v4237
        %v4278 = vunpack.c.h.b16 %v4237
        %v4279 = vunpack.c.l.b16 %v4238
        %v4280 = vunpack.c.h.b16 %v4238
        %v4281 = vunpack.c.l.b16 %v4239
        %v4282 = vunpack.c.h.b16 %v4239
        %v4283 = vunpack.c.l.b16 %v4240
        %v4284 = vunpack.c.h.b16 %v4240
        %v4285 = vunpack.c.l.b16 %v4241
        %v4286 = vunpack.c.h.b16 %v4241
        %v4287 = vunpack.c.l.b16 %v4242
        %v4288 = vunpack.c.h.b16 %v4242
        %v4289 = vunpack.c.l.b16 %v4243
        %v4290 = vunpack.c.h.b16 %v4243
        %v4291 = vunpack.c.l.b16 %v4244
        %v4292 = vunpack.c.h.b16 %v4244
        %v4293 = vunpack.c.l.b16 %v4245
        %v4294 = vunpack.c.h.b16 %v4245
        %v4295 = vunpack.c.l.b16 %v4246
        %v4296 = vunpack.c.h.b16 %v4246
        %v4297 = vunpack.c.l.b16 %v4247
        %v4298 = vunpack.c.h.b16 %v4247
        %v4299 = vunpack.c.l.b16 %v4248
        %v4300 = vunpack.c.h.b16 %v4248
        %v4301 = vunpack.c.l.b16 %v4249
        %v4302 = vunpack.c.h.b16 %v4249
        %v4303 = vpack.c.b16 %v4273, %v4271
        %v4304 = vpack.c.b16 %v4274, %v4272
        %v4305 = vpack.c.b16 %v4277, %v4275
        %v4306 = vpack.c.b16 %v4278, %v4276
        %v4307 = vpack.c.b16 %v4281, %v4279
        %v4308 = vpack.c.b16 %v4282, %v4280
        %v4309 = vpack.c.b16 %v4285, %v4283
        %v4310 = vpack.c.b16 %v4286, %v4284
        %v4311 = vpack.c.b16 %v4289, %v4287
        %v4312 = vpack.c.b16 %v4290, %v4288
        %v4313 = vpack.c.b16 %v4293, %v4291
        %v4314 = vpack.c.b16 %v4294, %v4292
        %v4315 = vpack.c.b16 %v4297, %v4295
        %v4316 = vpack.c.b16 %v4298, %v4296
        %v4317 = vpack.c.b16 %v4301, %v4299
        %v4318 = vpack.c.b16 %v4302, %v4300
        %4335 = vmatprep.subr.bf16.mxu0 %v4304
        %4336 = vmatpush1.bf16.msra.mxu0 %v4303
        %4337 = vmatprep.subr.bf16.mxu0 %v4306
        %4338 = vmatpush1.bf16.msra.mxu0 %v4305
        %4339 = vmatprep.subr.bf16.mxu0 %v4308
        %4340 = vmatpush1.bf16.msra.mxu0 %v4307
        %4341 = vmatprep.subr.bf16.mxu0 %v4310
        %4342 = vmatpush1.bf16.msra.mxu0 %v4309
        %4343 = vmatprep.subr.bf16.mxu0 %v4312
        %4344 = vmatpush1.bf16.msra.mxu0 %v4311
        %4345 = vmatprep.subr.bf16.mxu0 %v4314
        %4346 = vmatpush1.bf16.msra.mxu0 %v4313
        %4347 = vmatprep.subr.bf16.mxu0 %v4316
        %4348 = vmatpush1.bf16.msra.mxu0 %v4315
        %4349 = vmatprep.subr.bf16.mxu0 %v4318
        %4350 = vmatpush1.bf16.msra.mxu0 %v4317
        %4351 = vmatprep.subr.bf16.mxu0 0
        %4352 = vmatpush1.bf16.msra.mxu0 0
        %4353 = vmatprep.subr.bf16.mxu0 0
        %4354 = vmatpush1.bf16.msra.mxu0 0
        %4355 = vmatprep.subr.bf16.mxu0 0
        %4356 = vmatpush1.bf16.msra.mxu0 0
        %4357 = vmatprep.subr.bf16.mxu0 0
        %4358 = vmatpush1.bf16.msra.mxu0 0
        %4359 = vmatprep.subr.bf16.mxu0 0
        %4360 = vmatpush1.bf16.msra.mxu0 0
        %4361 = vmatprep.subr.bf16.mxu0 0
        %4362 = vmatpush1.bf16.msra.mxu0 0
        %4363 = vmatprep.subr.bf16.mxu0 0
        %4364 = vmatpush1.bf16.msra.mxu0 0
        %4365 = vmatprep.subr.bf16.mxu0 0
        %4366 = vmatpush1.bf16.msra.mxu0 0
        %4367 = vmatprep.mubr.bf16.mxu0 0
        %4368 = vmatmul.mubr.bf16.gmra.mrb[0].mxu0 %v4253
        %v4369 = vpop.f32.mrb[0].mxu0
        %v4370 = vadd.f32 0.0, %v4369
        %v4371 = vpop.f32.mrb[0].mxu0
        %v4372 = vadd.f32 0.0, %v4371
        %v4373 = vpop.f32.mrb[0].mxu0
        %v4374 = vpop.f32.mrb[0].mxu0
        %4375 = vdwg.mxu0
        %v4376 = vadd.f32 %v4227, %v4370
        %v4377 = vadd.f32 %v4229, %v4372
        %v4378 = vld [vmem:[#allocation26] sm:$0x3]
        %v4380 = vlaneseq
        %v4381 = vshrl.u32 %v4380, 7
        %v4382 = vsub.s32 0, %v4381
        %v4383 = vrot.slane %v4378, %v4382
        %v4384 = vlaneseq
        %v4385 = vshrl.u32 %v4384, 7
        %v4386 = vsub.s32 1, %v4385
        %v4387 = vrot.slane %v4378, %v4386
        %vm4390 = vcmask 31744
        %v4391 = vsel %vm4390, %v1578, 0
        %vm4393 = vcmask 1043456
        %v4395 = vsel %vm4393, %v4376, 0
        %v4398 = vsel %vm4393, %v4377, 0
        %4400 = vmatprep.subr.mxu0 %v4398
        %4401 = vmatpush1.msra.mxu0 %v4395
        %4402 = vmatprep.subr.mxu0 0.0
        %4403 = vmatpush1.msra.mxu0 0.0
        %4404 = vmatprep.subr.mxu0 0.0
        %4405 = vmatpush1.msra.mxu0 0.0
        %4406 = vmatprep.subr.mxu0 0.0
        %4407 = vmatpush1.msra.mxu0 0.0
        %4408 = vmatprep.subr.mxu0 0.0
        %4409 = vmatpush1.msra.mxu0 0.0
        %4410 = vmatprep.subr.mxu0 0.0
        %4411 = vmatpush1.msra.mxu0 0.0
        %4412 = vmatprep.subr.mxu0 0.0
        %4413 = vmatpush1.msra.mxu0 0.0
        %4414 = vmatprep.subr.mxu0 0.0
        %4415 = vmatpush1.msra.mxu0 0.0
        %4416 = vmatprep.subr.mxu0 0.0
        %4417 = vmatpush1.msra.mxu0 0.0
        %4418 = vmatprep.subr.mxu0 0.0
        %4419 = vmatpush1.msra.mxu0 0.0
        %4420 = vmatprep.subr.mxu0 0.0
        %4421 = vmatpush1.msra.mxu0 0.0
        %4422 = vmatprep.subr.mxu0 0.0
        %4423 = vmatpush1.msra.mxu0 0.0
        %4424 = vmatprep.subr.mxu0 0.0
        %4425 = vmatpush1.msra.mxu0 0.0
        %4426 = vmatprep.subr.mxu0 0.0
        %4427 = vmatpush1.msra.mxu0 0.0
        %4428 = vmatprep.subr.mxu0 0.0
        %4429 = vmatpush1.msra.mxu0 0.0
        %4430 = vmatprep.subr.mxu0 0.0
        %4431 = vmatpush1.msra.mxu0 0.0
        %4432 = vmatprep.subr.mxu0 0.0
        %4433 = vmatpush1.msra.mxu0 0.0
        %4434 = vmatprep.subr.mxu0 0.0
        %4435 = vmatpush1.msra.mxu0 0.0
        %4436 = vmatprep.subr.mxu0 0.0
        %4437 = vmatpush1.msra.mxu0 0.0
        %4438 = vmatprep.subr.mxu0 0.0
        %4439 = vmatpush1.msra.mxu0 0.0
        %4440 = vmatprep.subr.mxu0 0.0
        %4441 = vmatpush1.msra.mxu0 0.0
        %4442 = vmatprep.subr.mxu0 0.0
        %4443 = vmatpush1.msra.mxu0 0.0
        %4444 = vmatprep.subr.mxu0 0.0
        %4445 = vmatpush1.msra.mxu0 0.0
        %4446 = vmatprep.subr.mxu0 0.0
        %4447 = vmatpush1.msra.mxu0 0.0
        %4448 = vmatprep.subr.mxu0 0.0
        %4449 = vmatpush1.msra.mxu0 0.0
        %4450 = vmatprep.subr.mxu0 0.0
        %4451 = vmatpush1.msra.mxu0 0.0
        %4452 = vmatprep.subr.mxu0 0.0
        %4453 = vmatpush1.msra.mxu0 0.0
        %4454 = vmatprep.subr.mxu0 0.0
        %4455 = vmatpush1.msra.mxu0 0.0
        %4456 = vmatprep.subr.mxu0 0.0
        %4457 = vmatpush1.msra.mxu0 0.0
        %4458 = vmatprep.subr.mxu0 0.0
        %4459 = vmatpush1.msra.mxu0 0.0
        %4460 = vmatprep.subr.mxu0 0.0
        %4461 = vmatpush1.msra.mxu0 0.0
        %4462 = vmatprep.subr.mxu0 0.0
        %4463 = vmatpush1.msra.mxu0 0.0
        %4464 = vmatprep.mubr.f32.mxu0 0.0
        %4465 = vmatmul.mubr.f32.gmra.mrb[0].mxu0 %v4391
        %v4466 = vpop.f32.mrb[0].mxu0
        %v4467 = vadd.f32 %v4383, %v4466
        %v4468 = vpop.f32.mrb[0].mxu0
        %v4469 = vadd.f32 %v4387, %v4468
        %4470 = vdwg.mxu0
        %v4471 = vmax.f32 %v4467, 0.0
        %v4472 = vmax.f32 %v4469, 0.0
        %v4474 = vsel %vm4393, %v3929, 0
        %4476 = vmatprep.subr.mxu0 0.0
        %4477 = vmatpush1.msra.mxu0 %v4474
        %4478 = vmatprep.subr.mxu0 0.0
        %4479 = vmatpush1.msra.mxu0 0.0
        %4480 = vmatprep.subr.mxu0 0.0
        %4481 = vmatpush1.msra.mxu0 0.0
        %4482 = vmatprep.subr.mxu0 0.0
        %4483 = vmatpush1.msra.mxu0 0.0
        %4484 = vmatprep.subr.mxu0 0.0
        %4485 = vmatpush1.msra.mxu0 0.0
        %4486 = vmatprep.subr.mxu0 0.0
        %4487 = vmatpush1.msra.mxu0 0.0
        %4488 = vmatprep.subr.mxu0 0.0
        %4489 = vmatpush1.msra.mxu0 0.0
        %4490 = vmatprep.subr.mxu0 0.0
        %4491 = vmatpush1.msra.mxu0 0.0
        %4492 = vmatprep.subr.mxu0 0.0
        %4493 = vmatpush1.msra.mxu0 0.0
        %4494 = vmatprep.subr.mxu0 0.0
        %4495 = vmatpush1.msra.mxu0 0.0
        %4496 = vmatprep.subr.mxu0 0.0
        %4497 = vmatpush1.msra.mxu0 0.0
        %4498 = vmatprep.subr.mxu0 0.0
        %4499 = vmatpush1.msra.mxu0 0.0
        %4500 = vmatprep.subr.mxu0 0.0
        %4501 = vmatpush1.msra.mxu0 0.0
        %4502 = vmatprep.subr.mxu0 0.0
        %4503 = vmatpush1.msra.mxu0 0.0
        %4504 = vmatprep.subr.mxu0 0.0
        %4505 = vmatpush1.msra.mxu0 0.0
        %4506 = vmatprep.subr.mxu0 0.0
        %4507 = vmatpush1.msra.mxu0 0.0
        %4508 = vmatprep.subr.mxu0 0.0
        %4509 = vmatpush1.msra.mxu0 0.0
        %4510 = vmatprep.subr.mxu0 0.0
        %4511 = vmatpush1.msra.mxu0 0.0
        %4512 = vmatprep.subr.mxu0 0.0
        %4513 = vmatpush1.msra.mxu0 0.0
        %4514 = vmatprep.subr.mxu0 0.0
        %4515 = vmatpush1.msra.mxu0 0.0
        %4516 = vmatprep.subr.mxu0 0.0
        %4517 = vmatpush1.msra.mxu0 0.0
        %4518 = vmatprep.subr.mxu0 0.0
        %4519 = vmatpush1.msra.mxu0 0.0
        %4520 = vmatprep.subr.mxu0 0.0
        %4521 = vmatpush1.msra.mxu0 0.0
        %4522 = vmatprep.subr.mxu0 0.0
        %4523 = vmatpush1.msra.mxu0 0.0
        %4524 = vmatprep.subr.mxu0 0.0
        %4525 = vmatpush1.msra.mxu0 0.0
        %4526 = vmatprep.subr.mxu0 0.0
        %4527 = vmatpush1.msra.mxu0 0.0
        %4528 = vmatprep.subr.mxu0 0.0
        %4529 = vmatpush1.msra.mxu0 0.0
        %4530 = vmatprep.subr.mxu0 0.0
        %4531 = vmatpush1.msra.mxu0 0.0
        %4532 = vmatprep.subr.mxu0 0.0
        %4533 = vmatpush1.msra.mxu0 0.0
        %4534 = vmatprep.subr.mxu0 0.0
        %4535 = vmatpush1.msra.mxu0 0.0
        %4536 = vmatprep.subr.mxu0 0.0
        %4537 = vmatpush1.msra.mxu0 0.0
        %4538 = vmatprep.subr.mxu0 0.0
        %4539 = vmatpush1.msra.mxu0 0.0
        %4540 = vmatprep.mubr.f32.mxu0 0.0
        %4541 = vmatmul.mubr.f32.gmra.mrb[0].mxu0 %v4391
        %v4542 = vpop.f32.mrb[0].mxu0
        %v4543 = vadd.f32 0.0, %v4542
        %v4544 = vpop.f32.mrb[0].mxu0
        %4545 = vdwg.mxu0
        %v4546 = vpack.c.bf16 %v4543, %v4543
        %v4547 = vld [vmem:[%s21] sm:$0xff]
        %v4548 = vld [vmem:[%s21 + $0x8] sm:$0xff]
        %v4549 = vld [vmem:[%s21 + $0x10] sm:$0xff]
        %v4550 = vld [vmem:[%s21 + $0x18] sm:$0xff]
        %v4551 = vld [vmem:[%s21 + $0x20] sm:$0xff]
        %v4552 = vld [vmem:[%s21 + $0x28] sm:$0xff]
        %v4553 = vld [vmem:[%s21 + $0x30] sm:$0xff]
        %v4554 = vld [vmem:[%s21 + $0x38] sm:$0xff]
        %v4555 = vld [vmem:[%s21 + $0x40] sm:$0xff]
        %v4556 = vld [vmem:[%s21 + $0x48] sm:$0xff]
        %v4557 = vld [vmem:[%s21 + $0x50] sm:$0xff]
        %v4558 = vld [vmem:[%s21 + $0x58] sm:$0xff]
        %v4559 = vld [vmem:[%s21 + $0x60] sm:$0xff]
        %v4560 = vld [vmem:[%s21 + $0x68] sm:$0xff]
        %v4561 = vld [vmem:[%s21 + $0x70] sm:$0xff]
        %v4562 = vld [vmem:[%s21 + $0x78] sm:$0xff]
        %v4563 = vld [vmem:[#allocation28] sm:$0x3]
        %v4565 = vlaneseq
        %v4566 = vshrl.u32 %v4565, 7
        %v4567 = vsub.s32 0, %v4566
        %v4568 = vrot.slane %v4563, %v4567
        %v4569 = vlaneseq
        %v4570 = vshrl.u32 %v4569, 7
        %v4571 = vsub.s32 1, %v4570
        %v4572 = vrot.slane %v4563, %v4571
        %v4591 = vunpack.c.l.b16 %v4547
        %v4592 = vunpack.c.h.b16 %v4547
        %v4593 = vunpack.c.l.b16 %v4548
        %v4594 = vunpack.c.h.b16 %v4548
        %v4595 = vunpack.c.l.b16 %v4549
        %v4596 = vunpack.c.h.b16 %v4549
        %v4597 = vunpack.c.l.b16 %v4550
        %v4598 = vunpack.c.h.b16 %v4550
        %v4599 = vunpack.c.l.b16 %v4551
        %v4600 = vunpack.c.h.b16 %v4551
        %v4601 = vunpack.c.l.b16 %v4552
        %v4602 = vunpack.c.h.b16 %v4552
        %v4603 = vunpack.c.l.b16 %v4553
        %v4604 = vunpack.c.h.b16 %v4553
        %v4605 = vunpack.c.l.b16 %v4554
        %v4606 = vunpack.c.h.b16 %v4554
        %v4607 = vunpack.c.l.b16 %v4555
        %v4608 = vunpack.c.h.b16 %v4555
        %v4609 = vunpack.c.l.b16 %v4556
        %v4610 = vunpack.c.h.b16 %v4556
        %v4611 = vunpack.c.l.b16 %v4557
        %v4612 = vunpack.c.h.b16 %v4557
        %v4613 = vunpack.c.l.b16 %v4558
        %v4614 = vunpack.c.h.b16 %v4558
        %v4615 = vunpack.c.l.b16 %v4559
        %v4616 = vunpack.c.h.b16 %v4559
        %v4617 = vunpack.c.l.b16 %v4560
        %v4618 = vunpack.c.h.b16 %v4560
        %v4619 = vunpack.c.l.b16 %v4561
        %v4620 = vunpack.c.h.b16 %v4561
        %v4621 = vunpack.c.l.b16 %v4562
        %v4622 = vunpack.c.h.b16 %v4562
        %v4623 = vpack.c.b16 %v4593, %v4591
        %v4624 = vpack.c.b16 %v4594, %v4592
        %v4625 = vpack.c.b16 %v4597, %v4595
        %v4626 = vpack.c.b16 %v4598, %v4596
        %v4627 = vpack.c.b16 %v4601, %v4599
        %v4628 = vpack.c.b16 %v4602, %v4600
        %v4629 = vpack.c.b16 %v4605, %v4603
        %v4630 = vpack.c.b16 %v4606, %v4604
        %v4631 = vpack.c.b16 %v4609, %v4607
        %v4632 = vpack.c.b16 %v4610, %v4608
        %v4633 = vpack.c.b16 %v4613, %v4611
        %v4634 = vpack.c.b16 %v4614, %v4612
        %v4635 = vpack.c.b16 %v4617, %v4615
        %v4636 = vpack.c.b16 %v4618, %v4616
        %v4637 = vpack.c.b16 %v4621, %v4619
        %v4638 = vpack.c.b16 %v4622, %v4620
        %4655 = vmatprep.subr.bf16.mxu0 %v4624
        %4656 = vmatpush1.bf16.msra.mxu0 %v4623
        %4657 = vmatprep.subr.bf16.mxu0 %v4626
        %4658 = vmatpush1.bf16.msra.mxu0 %v4625
        %4659 = vmatprep.subr.bf16.mxu0 %v4628
        %4660 = vmatpush1.bf16.msra.mxu0 %v4627
        %4661 = vmatprep.subr.bf16.mxu0 %v4630
        %4662 = vmatpush1.bf16.msra.mxu0 %v4629
        %4663 = vmatprep.subr.bf16.mxu0 %v4632
        %4664 = vmatpush1.bf16.msra.mxu0 %v4631
        %4665 = vmatprep.subr.bf16.mxu0 %v4634
        %4666 = vmatpush1.bf16.msra.mxu0 %v4633
        %4667 = vmatprep.subr.bf16.mxu0 %v4636
        %4668 = vmatpush1.bf16.msra.mxu0 %v4635
        %4669 = vmatprep.subr.bf16.mxu0 %v4638
        %4670 = vmatpush1.bf16.msra.mxu0 %v4637
        %4671 = vmatprep.subr.bf16.mxu0 0
        %4672 = vmatpush1.bf16.msra.mxu0 0
        %4673 = vmatprep.subr.bf16.mxu0 0
        %4674 = vmatpush1.bf16.msra.mxu0 0
        %4675 = vmatprep.subr.bf16.mxu0 0
        %4676 = vmatpush1.bf16.msra.mxu0 0
        %4677 = vmatprep.subr.bf16.mxu0 0
        %4678 = vmatpush1.bf16.msra.mxu0 0
        %4679 = vmatprep.subr.bf16.mxu0 0
        %4680 = vmatpush1.bf16.msra.mxu0 0
        %4681 = vmatprep.subr.bf16.mxu0 0
        %4682 = vmatpush1.bf16.msra.mxu0 0
        %4683 = vmatprep.subr.bf16.mxu0 0
        %4684 = vmatpush1.bf16.msra.mxu0 0
        %4685 = vmatprep.subr.bf16.mxu0 0
        %4686 = vmatpush1.bf16.msra.mxu0 0
        %4687 = vmatprep.mubr.bf16.mxu0 0
        %4688 = vmatmul.mubr.bf16.gmra.mrb[0].mxu0 %v4546
        %v4689 = vpop.f32.mrb[0].mxu0
        %v4690 = vadd.f32 %v4568, %v4689
        %v4691 = vpop.f32.mrb[0].mxu0
        %v4692 = vadd.f32 %v4572, %v4691
        %v4693 = vpop.f32.mrb[0].mxu0
        %v4694 = vpop.f32.mrb[0].mxu0
        %4695 = vdwg.mxu0
        %4696 = vst [vmem:[#allocation7] sm:$0xf] 0
        %v4697 = vpack.c.bf16 %v4471, %v4471
        %v4698 = vpack.c.bf16 %v4472, %v4472
        %v4701 = vcombine.low %v4697, %v4698
        %v4703 = vunpack.c.l.s4 1983009808
        %v4704 = vunpack.c.0.s8 %v4703
        %v4705 = vlaneseq
        %v4706 = vshrl.u32 %v4705, 7
        %v4707 = vsub.s32 %v4704, %v4706
        %v4708 = vrot.slane %v4701, %v4707
        %v4710 = vshrl.u32 %v4708, 16
        %v4712 = vrot.slane %v4710, 7
        %v4713 = vshll.u32 %v4708, 16
        %v4715 = vor.u32 %v4712, %v4713
        %vm4717 = vcmask 1041408
        %vm4718 = vsmask.f32 1282
        %vm4719 = vmand %vm4717, %vm4718
        %vm4720 = vcmask 1043458
        %vm4721 = vsmask.f32 3338
        %vm4722 = vmand %vm4720, %vm4721
        %vm4723 = vmor %vm4722, %vm4719
        %v4724 = vld [vmem:[#allocation7] sm:$0xf]
        %v4725 = vsel %vm4723, %v4715, %v4724
        %4726 = vst [vmem:[#allocation7] sm:$0xf] %v4725
        %v4727 = vld [vmem:[#allocation7] sm:$0x5]
        %v4728 = vld [vmem:[#allocation29] sm:$0xff]
        %v4729 = vld [vmem:[#allocation29 + $0x8] sm:$0xff]
        %v4730 = vld [vmem:[#allocation29 + $0x10] sm:$0xff]
        %v4731 = vld [vmem:[#allocation29 + $0x18] sm:$0xff]
        %v4732 = vld [vmem:[#allocation29 + $0x20] sm:$0xff]
        %v4733 = vld [vmem:[#allocation29 + $0x28] sm:$0xff]
        %v4734 = vld [vmem:[#allocation29 + $0x30] sm:$0xff]
        %v4735 = vld [vmem:[#allocation29 + $0x38] sm:$0xff]
        %v4736 = vld [vmem:[#allocation29 + $0x40] sm:$0xff]
        %v4737 = vld [vmem:[#allocation29 + $0x48] sm:$0xff]
        %v4738 = vld [vmem:[#allocation29 + $0x50] sm:$0xff]
        %v4739 = vld [vmem:[#allocation29 + $0x58] sm:$0xff]
        %v4740 = vld [vmem:[#allocation29 + $0x60] sm:$0xff]
        %v4741 = vld [vmem:[#allocation29 + $0x68] sm:$0xff]
        %v4742 = vld [vmem:[#allocation29 + $0x70] sm:$0xff]
        %v4743 = vld [vmem:[#allocation29 + $0x78] sm:$0xff]
        %v4744 = vld [vmem:[#allocation29 + $0x80] sm:$0xff]
        %v4745 = vld [vmem:[#allocation29 + $0x88] sm:$0xff]
        %v4746 = vld [vmem:[#allocation29 + $0x90] sm:$0xff]
        %v4747 = vld [vmem:[#allocation29 + $0x98] sm:$0xff]
        %v4748 = vld [vmem:[#allocation29 + $0xa0] sm:$0xff]
        %v4749 = vld [vmem:[#allocation29 + $0xa8] sm:$0xff]
        %v4750 = vld [vmem:[#allocation29 + $0xb0] sm:$0xff]
        %v4751 = vld [vmem:[#allocation29 + $0xb8] sm:$0xff]
        %v4752 = vld [vmem:[#allocation29 + $0xc0] sm:$0xff]
        %v4753 = vld [vmem:[#allocation29 + $0xc8] sm:$0xff]
        %v4754 = vld [vmem:[#allocation29 + $0xd0] sm:$0xff]
        %v4755 = vld [vmem:[#allocation29 + $0xd8] sm:$0xff]
        %v4756 = vld [vmem:[#allocation29 + $0xe0] sm:$0xff]
        %v4757 = vld [vmem:[#allocation29 + $0xe8] sm:$0xff]
        %v4758 = vld [vmem:[#allocation29 + $0xf0] sm:$0xff]
        %v4759 = vld [vmem:[#allocation29 + $0xf8] sm:$0xff]
        %v4760 = vld [vmem:[#allocation7] sm:$0xf]
        %v4761 = vld [vmem:[#allocation29 + $0x100] sm:$0xff]
        %v4762 = vld [vmem:[#allocation29 + $0x108] sm:$0xff]
        %v4763 = vld [vmem:[#allocation29 + $0x110] sm:$0xff]
        %v4764 = vld [vmem:[#allocation29 + $0x118] sm:$0xff]
        %v4765 = vld [vmem:[#allocation29 + $0x120] sm:$0xff]
        %v4766 = vld [vmem:[#allocation29 + $0x128] sm:$0xff]
        %v4767 = vld [vmem:[#allocation29 + $0x130] sm:$0xff]
        %v4768 = vld [vmem:[#allocation29 + $0x138] sm:$0xff]
        %v4769 = vld [vmem:[#allocation29 + $0x140] sm:$0xff]
        %v4770 = vld [vmem:[#allocation29 + $0x148] sm:$0xff]
        %v4771 = vld [vmem:[#allocation29 + $0x150] sm:$0xff]
        %v4772 = vld [vmem:[#allocation29 + $0x158] sm:$0xff]
        %v4773 = vld [vmem:[#allocation29 + $0x160] sm:$0xff]
        %v4774 = vld [vmem:[#allocation29 + $0x168] sm:$0xff]
        %v4775 = vld [vmem:[#allocation29 + $0x170] sm:$0xff]
        %v4776 = vld [vmem:[#allocation29 + $0x178] sm:$0xff]
        %v4777 = vld [vmem:[#allocation29 + $0x180] sm:$0xff]
        %v4778 = vld [vmem:[#allocation29 + $0x188] sm:$0xff]
        %v4779 = vld [vmem:[#allocation29 + $0x190] sm:$0xff]
        %v4780 = vld [vmem:[#allocation29 + $0x198] sm:$0xff]
        %v4781 = vld [vmem:[#allocation29 + $0x1a0] sm:$0xff]
        %v4782 = vld [vmem:[#allocation29 + $0x1a8] sm:$0xff]
        %v4783 = vld [vmem:[#allocation29 + $0x1b0] sm:$0xff]
        %v4784 = vld [vmem:[#allocation29 + $0x1b8] sm:$0xff]
        %v4785 = vld [vmem:[#allocation29 + $0x1c0] sm:$0xff]
        %v4786 = vld [vmem:[#allocation29 + $0x1c8] sm:$0xff]
        %v4787 = vld [vmem:[#allocation29 + $0x1d0] sm:$0xff]
        %v4788 = vld [vmem:[#allocation29 + $0x1d8] sm:$0xff]
        %v4789 = vld [vmem:[#allocation29 + $0x1e0] sm:$0xff]
        %v4790 = vld [vmem:[#allocation29 + $0x1e8] sm:$0xff]
        %v4791 = vld [vmem:[#allocation29 + $0x1f0] sm:$0xff]
        %v4792 = vld [vmem:[#allocation29 + $0x1f8] sm:$0xff]
        %v4795 = vunpack.c.l.s4 1983009808
        %v4796 = vunpack.c.0.s8 %v4795
        %v4797 = vlaneseq
        %v4798 = vshrl.u32 %v4797, 7
        %v4799 = vsub.s32 %v4796, %v4798
        %v4800 = vrot.slane %v4760, %v4799
        %v4801 = vcombine.high %v4800, %v4800
        %v4803 = vshrl.u32 %v4800, 16
        %v4805 = vshll.u32 %v4800, 16
        %v4807 = vrot.slane %v4805, 1
        %v4808 = vor.u32 %v4803, %v4807
        %v4810 = vshrl.u32 %v4801, 16
        %v4812 = vshll.u32 %v4801, 16
        %v4814 = vrot.slane %v4812, 1
        %v4815 = vor.u32 %v4810, %v4814
        %v4850 = vunpack.c.l.b16 %v4761
        %v4851 = vunpack.c.h.b16 %v4761
        %v4852 = vunpack.c.l.b16 %v4762
        %v4853 = vunpack.c.h.b16 %v4762
        %v4854 = vunpack.c.l.b16 %v4763
        %v4855 = vunpack.c.h.b16 %v4763
        %v4856 = vunpack.c.l.b16 %v4764
        %v4857 = vunpack.c.h.b16 %v4764
        %v4858 = vunpack.c.l.b16 %v4765
        %v4859 = vunpack.c.h.b16 %v4765
        %v4860 = vunpack.c.l.b16 %v4766
        %v4861 = vunpack.c.h.b16 %v4766
        %v4862 = vunpack.c.l.b16 %v4767
        %v4863 = vunpack.c.h.b16 %v4767
        %v4864 = vunpack.c.l.b16 %v4768
        %v4865 = vunpack.c.h.b16 %v4768
        %v4866 = vunpack.c.l.b16 %v4769
        %v4867 = vunpack.c.h.b16 %v4769
        %v4868 = vunpack.c.l.b16 %v4770
        %v4869 = vunpack.c.h.b16 %v4770
        %v4870 = vunpack.c.l.b16 %v4771
        %v4871 = vunpack.c.h.b16 %v4771
        %v4872 = vunpack.c.l.b16 %v4772
        %v4873 = vunpack.c.h.b16 %v4772
        %v4874 = vunpack.c.l.b16 %v4773
        %v4875 = vunpack.c.h.b16 %v4773
        %v4876 = vunpack.c.l.b16 %v4774
        %v4877 = vunpack.c.h.b16 %v4774
        %v4878 = vunpack.c.l.b16 %v4775
        %v4879 = vunpack.c.h.b16 %v4775
        %v4880 = vunpack.c.l.b16 %v4776
        %v4881 = vunpack.c.h.b16 %v4776
        %v4882 = vunpack.c.l.b16 %v4777
        %v4883 = vunpack.c.h.b16 %v4777
        %v4884 = vunpack.c.l.b16 %v4778
        %v4885 = vunpack.c.h.b16 %v4778
        %v4886 = vunpack.c.l.b16 %v4779
        %v4887 = vunpack.c.h.b16 %v4779
        %v4888 = vunpack.c.l.b16 %v4780
        %v4889 = vunpack.c.h.b16 %v4780
        %v4890 = vunpack.c.l.b16 %v4781
        %v4891 = vunpack.c.h.b16 %v4781
        %v4892 = vunpack.c.l.b16 %v4782
        %v4893 = vunpack.c.h.b16 %v4782
        %v4894 = vunpack.c.l.b16 %v4783
        %v4895 = vunpack.c.h.b16 %v4783
        %v4896 = vunpack.c.l.b16 %v4784
        %v4897 = vunpack.c.h.b16 %v4784
        %v4898 = vunpack.c.l.b16 %v4785
        %v4899 = vunpack.c.h.b16 %v4785
        %v4900 = vunpack.c.l.b16 %v4786
        %v4901 = vunpack.c.h.b16 %v4786
        %v4902 = vunpack.c.l.b16 %v4787
        %v4903 = vunpack.c.h.b16 %v4787
        %v4904 = vunpack.c.l.b16 %v4788
        %v4905 = vunpack.c.h.b16 %v4788
        %v4906 = vunpack.c.l.b16 %v4789
        %v4907 = vunpack.c.h.b16 %v4789
        %v4908 = vunpack.c.l.b16 %v4790
        %v4909 = vunpack.c.h.b16 %v4790
        %v4910 = vunpack.c.l.b16 %v4791
        %v4911 = vunpack.c.h.b16 %v4791
        %v4912 = vunpack.c.l.b16 %v4792
        %v4913 = vunpack.c.h.b16 %v4792
        %v4914 = vpack.c.b16 %v4852, %v4850
        %v4915 = vpack.c.b16 %v4853, %v4851
        %v4916 = vpack.c.b16 %v4856, %v4854
        %v4917 = vpack.c.b16 %v4857, %v4855
        %v4918 = vpack.c.b16 %v4860, %v4858
        %v4919 = vpack.c.b16 %v4861, %v4859
        %v4920 = vpack.c.b16 %v4864, %v4862
        %v4921 = vpack.c.b16 %v4865, %v4863
        %v4922 = vpack.c.b16 %v4868, %v4866
        %v4923 = vpack.c.b16 %v4869, %v4867
        %v4924 = vpack.c.b16 %v4872, %v4870
        %v4925 = vpack.c.b16 %v4873, %v4871
        %v4926 = vpack.c.b16 %v4876, %v4874
        %v4927 = vpack.c.b16 %v4877, %v4875
        %v4928 = vpack.c.b16 %v4880, %v4878
        %v4929 = vpack.c.b16 %v4881, %v4879
        %v4930 = vpack.c.b16 %v4884, %v4882
        %v4931 = vpack.c.b16 %v4885, %v4883
        %v4932 = vpack.c.b16 %v4888, %v4886
        %v4933 = vpack.c.b16 %v4889, %v4887
        %v4934 = vpack.c.b16 %v4892, %v4890
        %v4935 = vpack.c.b16 %v4893, %v4891
        %v4936 = vpack.c.b16 %v4896, %v4894
        %v4937 = vpack.c.b16 %v4897, %v4895
        %v4938 = vpack.c.b16 %v4900, %v4898
        %v4939 = vpack.c.b16 %v4901, %v4899
        %v4940 = vpack.c.b16 %v4904, %v4902
        %v4941 = vpack.c.b16 %v4905, %v4903
        %v4942 = vpack.c.b16 %v4908, %v4906
        %v4943 = vpack.c.b16 %v4909, %v4907
        %v4944 = vpack.c.b16 %v4912, %v4910
        %v4945 = vpack.c.b16 %v4913, %v4911
        %4978 = vmatprep.subr.bf16.mxu0 %v4915
        %4979 = vmatpush1.bf16.msra.mxu0 %v4914
        %4980 = vmatprep.subr.bf16.mxu0 %v4917
        %4981 = vmatpush1.bf16.msra.mxu0 %v4916
        %4982 = vmatprep.subr.bf16.mxu0 %v4919
        %4983 = vmatpush1.bf16.msra.mxu0 %v4918
        %4984 = vmatprep.subr.bf16.mxu0 %v4921
        %4985 = vmatpush1.bf16.msra.mxu0 %v4920
        %4986 = vmatprep.subr.bf16.mxu0 %v4923
        %4987 = vmatpush1.bf16.msra.mxu0 %v4922
        %4988 = vmatprep.subr.bf16.mxu0 %v4925
        %4989 = vmatpush1.bf16.msra.mxu0 %v4924
        %4990 = vmatprep.subr.bf16.mxu0 %v4927
        %4991 = vmatpush1.bf16.msra.mxu0 %v4926
        %4992 = vmatprep.subr.bf16.mxu0 %v4929
        %4993 = vmatpush1.bf16.msra.mxu0 %v4928
        %4994 = vmatprep.subr.bf16.mxu0 %v4931
        %4995 = vmatpush1.bf16.msra.mxu0 %v4930
        %4996 = vmatprep.subr.bf16.mxu0 %v4933
        %4997 = vmatpush1.bf16.msra.mxu0 %v4932
        %4998 = vmatprep.subr.bf16.mxu0 %v4935
        %4999 = vmatpush1.bf16.msra.mxu0 %v4934
        %5000 = vmatprep.subr.bf16.mxu0 %v4937
        %5001 = vmatpush1.bf16.msra.mxu0 %v4936
        %5002 = vmatprep.subr.bf16.mxu0 %v4939
        %5003 = vmatpush1.bf16.msra.mxu0 %v4938
        %5004 = vmatprep.subr.bf16.mxu0 %v4941
        %5005 = vmatpush1.bf16.msra.mxu0 %v4940
        %5006 = vmatprep.subr.bf16.mxu0 %v4943
        %5007 = vmatpush1.bf16.msra.mxu0 %v4942
        %5008 = vmatprep.subr.bf16.mxu0 %v4945
        %5009 = vmatpush1.bf16.msra.mxu0 %v4944
        %5010 = vmatprep.mubr.bf16.mxu0 %v4815
        %5011 = vmatmul.mubr.bf16.gmra.mrb[0].mxu0 %v4808
        %v5012 = vpop.f32.mrb[0].mxu0
        %v5013 = vadd.f32 0.0, %v5012
        %v5014 = vpop.f32.mrb[0].mxu0
        %v5015 = vadd.f32 0.0, %v5014
        %v5016 = vpop.f32.mrb[0].mxu0
        %v5017 = vpop.f32.mrb[0].mxu0
        %5018 = vdwg.mxu0
        %v5021 = vunpack.c.l.s4 1983009808
        %v5022 = vunpack.c.0.s8 %v5021
        %v5023 = vlaneseq
        %v5024 = vshrl.u32 %v5023, 7
        %v5025 = vsub.s32 %v5022, %v5024
        %v5026 = vrot.slane %v4727, %v5025
        %v5027 = vcombine.high %v5026, %v5026
        %v5062 = vunpack.c.l.b16 %v4728
        %v5063 = vunpack.c.h.b16 %v4728
        %v5064 = vunpack.c.l.b16 %v4729
        %v5065 = vunpack.c.h.b16 %v4729
        %v5066 = vunpack.c.l.b16 %v4730
        %v5067 = vunpack.c.h.b16 %v4730
        %v5068 = vunpack.c.l.b16 %v4731
        %v5069 = vunpack.c.h.b16 %v4731
        %v5070 = vunpack.c.l.b16 %v4732
        %v5071 = vunpack.c.h.b16 %v4732
        %v5072 = vunpack.c.l.b16 %v4733
        %v5073 = vunpack.c.h.b16 %v4733
        %v5074 = vunpack.c.l.b16 %v4734
        %v5075 = vunpack.c.h.b16 %v4734
        %v5076 = vunpack.c.l.b16 %v4735
        %v5077 = vunpack.c.h.b16 %v4735
        %v5078 = vunpack.c.l.b16 %v4736
        %v5079 = vunpack.c.h.b16 %v4736
        %v5080 = vunpack.c.l.b16 %v4737
        %v5081 = vunpack.c.h.b16 %v4737
        %v5082 = vunpack.c.l.b16 %v4738
        %v5083 = vunpack.c.h.b16 %v4738
        %v5084 = vunpack.c.l.b16 %v4739
        %v5085 = vunpack.c.h.b16 %v4739
        %v5086 = vunpack.c.l.b16 %v4740
        %v5087 = vunpack.c.h.b16 %v4740
        %v5088 = vunpack.c.l.b16 %v4741
        %v5089 = vunpack.c.h.b16 %v4741
        %v5090 = vunpack.c.l.b16 %v4742
        %v5091 = vunpack.c.h.b16 %v4742
        %v5092 = vunpack.c.l.b16 %v4743
        %v5093 = vunpack.c.h.b16 %v4743
        %v5094 = vunpack.c.l.b16 %v4744
        %v5095 = vunpack.c.h.b16 %v4744
        %v5096 = vunpack.c.l.b16 %v4745
        %v5097 = vunpack.c.h.b16 %v4745
        %v5098 = vunpack.c.l.b16 %v4746
        %v5099 = vunpack.c.h.b16 %v4746
        %v5100 = vunpack.c.l.b16 %v4747
        %v5101 = vunpack.c.h.b16 %v4747
        %v5102 = vunpack.c.l.b16 %v4748
        %v5103 = vunpack.c.h.b16 %v4748
        %v5104 = vunpack.c.l.b16 %v4749
        %v5105 = vunpack.c.h.b16 %v4749
        %v5106 = vunpack.c.l.b16 %v4750
        %v5107 = vunpack.c.h.b16 %v4750
        %v5108 = vunpack.c.l.b16 %v4751
        %v5109 = vunpack.c.h.b16 %v4751
        %v5110 = vunpack.c.l.b16 %v4752
        %v5111 = vunpack.c.h.b16 %v4752
        %v5112 = vunpack.c.l.b16 %v4753
        %v5113 = vunpack.c.h.b16 %v4753
        %v5114 = vunpack.c.l.b16 %v4754
        %v5115 = vunpack.c.h.b16 %v4754
        %v5116 = vunpack.c.l.b16 %v4755
        %v5117 = vunpack.c.h.b16 %v4755
        %v5118 = vunpack.c.l.b16 %v4756
        %v5119 = vunpack.c.h.b16 %v4756
        %v5120 = vunpack.c.l.b16 %v4757
        %v5121 = vunpack.c.h.b16 %v4757
        %v5122 = vunpack.c.l.b16 %v4758
        %v5123 = vunpack.c.h.b16 %v4758
        %v5124 = vunpack.c.l.b16 %v4759
        %v5125 = vunpack.c.h.b16 %v4759
        %v5126 = vpack.c.b16 %v5064, %v5062
        %v5127 = vpack.c.b16 %v5065, %v5063
        %v5128 = vpack.c.b16 %v5068, %v5066
        %v5129 = vpack.c.b16 %v5069, %v5067
        %v5130 = vpack.c.b16 %v5072, %v5070
        %v5131 = vpack.c.b16 %v5073, %v5071
        %v5132 = vpack.c.b16 %v5076, %v5074
        %v5133 = vpack.c.b16 %v5077, %v5075
        %v5134 = vpack.c.b16 %v5080, %v5078
        %v5135 = vpack.c.b16 %v5081, %v5079
        %v5136 = vpack.c.b16 %v5084, %v5082
        %v5137 = vpack.c.b16 %v5085, %v5083
        %v5138 = vpack.c.b16 %v5088, %v5086
        %v5139 = vpack.c.b16 %v5089, %v5087
        %v5140 = vpack.c.b16 %v5092, %v5090
        %v5141 = vpack.c.b16 %v5093, %v5091
        %v5142 = vpack.c.b16 %v5096, %v5094
        %v5143 = vpack.c.b16 %v5097, %v5095
        %v5144 = vpack.c.b16 %v5100, %v5098
        %v5145 = vpack.c.b16 %v5101, %v5099
        %v5146 = vpack.c.b16 %v5104, %v5102
        %v5147 = vpack.c.b16 %v5105, %v5103
        %v5148 = vpack.c.b16 %v5108, %v5106
        %v5149 = vpack.c.b16 %v5109, %v5107
        %v5150 = vpack.c.b16 %v5112, %v5110
        %v5151 = vpack.c.b16 %v5113, %v5111
        %v5152 = vpack.c.b16 %v5116, %v5114
        %v5153 = vpack.c.b16 %v5117, %v5115
        %v5154 = vpack.c.b16 %v5120, %v5118
        %v5155 = vpack.c.b16 %v5121, %v5119
        %v5156 = vpack.c.b16 %v5124, %v5122
        %v5157 = vpack.c.b16 %v5125, %v5123
        %5190 = vmatprep.subr.bf16.mxu0 %v5127
        %5191 = vmatpush1.bf16.msra.mxu0 %v5126
        %5192 = vmatprep.subr.bf16.mxu0 %v5129
        %5193 = vmatpush1.bf16.msra.mxu0 %v5128
        %5194 = vmatprep.subr.bf16.mxu0 %v5131
        %5195 = vmatpush1.bf16.msra.mxu0 %v5130
        %5196 = vmatprep.subr.bf16.mxu0 %v5133
        %5197 = vmatpush1.bf16.msra.mxu0 %v5132
        %5198 = vmatprep.subr.bf16.mxu0 %v5135
        %5199 = vmatpush1.bf16.msra.mxu0 %v5134
        %5200 = vmatprep.subr.bf16.mxu0 %v5137
        %5201 = vmatpush1.bf16.msra.mxu0 %v5136
        %5202 = vmatprep.subr.bf16.mxu0 %v5139
        %5203 = vmatpush1.bf16.msra.mxu0 %v5138
        %5204 = vmatprep.subr.bf16.mxu0 %v5141
        %5205 = vmatpush1.bf16.msra.mxu0 %v5140
        %5206 = vmatprep.subr.bf16.mxu0 %v5143
        %5207 = vmatpush1.bf16.msra.mxu0 %v5142
        %5208 = vmatprep.subr.bf16.mxu0 %v5145
        %5209 = vmatpush1.bf16.msra.mxu0 %v5144
        %5210 = vmatprep.subr.bf16.mxu0 %v5147
        %5211 = vmatpush1.bf16.msra.mxu0 %v5146
        %5212 = vmatprep.subr.bf16.mxu0 %v5149
        %5213 = vmatpush1.bf16.msra.mxu0 %v5148
        %5214 = vmatprep.subr.bf16.mxu0 %v5151
        %5215 = vmatpush1.bf16.msra.mxu0 %v5150
        %5216 = vmatprep.subr.bf16.mxu0 %v5153
        %5217 = vmatpush1.bf16.msra.mxu0 %v5152
        %5218 = vmatprep.subr.bf16.mxu0 %v5155
        %5219 = vmatpush1.bf16.msra.mxu0 %v5154
        %5220 = vmatprep.subr.bf16.mxu0 %v5157
        %5221 = vmatpush1.bf16.msra.mxu0 %v5156
        %5222 = vmatprep.mubr.bf16.mxu0 %v5027
        %5223 = vmatmul.mubr.bf16.gmra.mrb[0].mxu0 %v5026
        %v5224 = vpop.f32.mrb[0].mxu0
        %v5225 = vadd.f32 %v5013, %v5224
        %v5226 = vpop.f32.mrb[0].mxu0
        %v5227 = vadd.f32 %v5015, %v5226
        %v5228 = vpop.f32.mrb[0].mxu0
        %v5229 = vpop.f32.mrb[0].mxu0
        %5230 = vdwg.mxu0
        %v5231 = vld [vmem:[#allocation7] sm:$0xa]
        %v5232 = vld [vmem:[#allocation29 + $0x200] sm:$0xff]
        %v5233 = vld [vmem:[#allocation29 + $0x208] sm:$0xff]
        %v5234 = vld [vmem:[#allocation29 + $0x210] sm:$0xff]
        %v5235 = vld [vmem:[#allocation29 + $0x218] sm:$0xff]
        %v5236 = vld [vmem:[#allocation29 + $0x220] sm:$0xff]
        %v5237 = vld [vmem:[#allocation29 + $0x228] sm:$0xff]
        %v5238 = vld [vmem:[#allocation29 + $0x230] sm:$0xff]
        %v5239 = vld [vmem:[#allocation29 + $0x238] sm:$0xff]
        %v5240 = vld [vmem:[#allocation29 + $0x240] sm:$0xff]
        %v5241 = vld [vmem:[#allocation29 + $0x248] sm:$0xff]
        %v5242 = vld [vmem:[#allocation29 + $0x250] sm:$0xff]
        %v5243 = vld [vmem:[#allocation29 + $0x258] sm:$0xff]
        %v5244 = vld [vmem:[#allocation29 + $0x260] sm:$0xff]
        %v5245 = vld [vmem:[#allocation29 + $0x268] sm:$0xff]
        %v5246 = vld [vmem:[#allocation29 + $0x270] sm:$0xff]
        %v5247 = vld [vmem:[#allocation29 + $0x278] sm:$0xff]
        %v5248 = vld [vmem:[#allocation29 + $0x280] sm:$0xff]
        %v5249 = vld [vmem:[#allocation29 + $0x288] sm:$0xff]
        %v5250 = vld [vmem:[#allocation29 + $0x290] sm:$0xff]
        %v5251 = vld [vmem:[#allocation29 + $0x298] sm:$0xff]
        %v5252 = vld [vmem:[#allocation29 + $0x2a0] sm:$0xff]
        %v5253 = vld [vmem:[#allocation29 + $0x2a8] sm:$0xff]
        %v5254 = vld [vmem:[#allocation29 + $0x2b0] sm:$0xff]
        %v5255 = vld [vmem:[#allocation29 + $0x2b8] sm:$0xff]
        %v5256 = vld [vmem:[#allocation29 + $0x2c0] sm:$0xff]
        %v5257 = vld [vmem:[#allocation29 + $0x2c8] sm:$0xff]
        %v5258 = vld [vmem:[#allocation29 + $0x2d0] sm:$0xff]
        %v5259 = vld [vmem:[#allocation29 + $0x2d8] sm:$0xff]
        %v5260 = vld [vmem:[#allocation29 + $0x2e0] sm:$0xff]
        %v5261 = vld [vmem:[#allocation29 + $0x2e8] sm:$0xff]
        %v5262 = vld [vmem:[#allocation29 + $0x2f0] sm:$0xff]
        %v5263 = vld [vmem:[#allocation29 + $0x2f8] sm:$0xff]
        %v5266 = vunpack.c.l.s4 1983009808
        %v5267 = vunpack.c.0.s8 %v5266
        %v5268 = vlaneseq
        %v5269 = vshrl.u32 %v5268, 7
        %v5270 = vsub.s32 %v5267, %v5269
        %v5271 = vrot.slane %v5231, %v5270
        %v5272 = vcombine.high %v5271, %v5271
        %v5273 = vrot.slane %v5271, 1
        %v5274 = vrot.slane %v5272, 1
        %v5309 = vunpack.c.l.b16 %v5232
        %v5310 = vunpack.c.h.b16 %v5232
        %v5311 = vunpack.c.l.b16 %v5233
        %v5312 = vunpack.c.h.b16 %v5233
        %v5313 = vunpack.c.l.b16 %v5234
        %v5314 = vunpack.c.h.b16 %v5234
        %v5315 = vunpack.c.l.b16 %v5235
        %v5316 = vunpack.c.h.b16 %v5235
        %v5317 = vunpack.c.l.b16 %v5236
        %v5318 = vunpack.c.h.b16 %v5236
        %v5319 = vunpack.c.l.b16 %v5237
        %v5320 = vunpack.c.h.b16 %v5237
        %v5321 = vunpack.c.l.b16 %v5238
        %v5322 = vunpack.c.h.b16 %v5238
        %v5323 = vunpack.c.l.b16 %v5239
        %v5324 = vunpack.c.h.b16 %v5239
        %v5325 = vunpack.c.l.b16 %v5240
        %v5326 = vunpack.c.h.b16 %v5240
        %v5327 = vunpack.c.l.b16 %v5241
        %v5328 = vunpack.c.h.b16 %v5241
        %v5329 = vunpack.c.l.b16 %v5242
        %v5330 = vunpack.c.h.b16 %v5242
        %v5331 = vunpack.c.l.b16 %v5243
        %v5332 = vunpack.c.h.b16 %v5243
        %v5333 = vunpack.c.l.b16 %v5244
        %v5334 = vunpack.c.h.b16 %v5244
        %v5335 = vunpack.c.l.b16 %v5245
        %v5336 = vunpack.c.h.b16 %v5245
        %v5337 = vunpack.c.l.b16 %v5246
        %v5338 = vunpack.c.h.b16 %v5246
        %v5339 = vunpack.c.l.b16 %v5247
        %v5340 = vunpack.c.h.b16 %v5247
        %v5341 = vunpack.c.l.b16 %v5248
        %v5342 = vunpack.c.h.b16 %v5248
        %v5343 = vunpack.c.l.b16 %v5249
        %v5344 = vunpack.c.h.b16 %v5249
        %v5345 = vunpack.c.l.b16 %v5250
        %v5346 = vunpack.c.h.b16 %v5250
        %v5347 = vunpack.c.l.b16 %v5251
        %v5348 = vunpack.c.h.b16 %v5251
        %v5349 = vunpack.c.l.b16 %v5252
        %v5350 = vunpack.c.h.b16 %v5252
        %v5351 = vunpack.c.l.b16 %v5253
        %v5352 = vunpack.c.h.b16 %v5253
        %v5353 = vunpack.c.l.b16 %v5254
        %v5354 = vunpack.c.h.b16 %v5254
        %v5355 = vunpack.c.l.b16 %v5255
        %v5356 = vunpack.c.h.b16 %v5255
        %v5357 = vunpack.c.l.b16 %v5256
        %v5358 = vunpack.c.h.b16 %v5256
        %v5359 = vunpack.c.l.b16 %v5257
        %v5360 = vunpack.c.h.b16 %v5257
        %v5361 = vunpack.c.l.b16 %v5258
        %v5362 = vunpack.c.h.b16 %v5258
        %v5363 = vunpack.c.l.b16 %v5259
        %v5364 = vunpack.c.h.b16 %v5259
        %v5365 = vunpack.c.l.b16 %v5260
        %v5366 = vunpack.c.h.b16 %v5260
        %v5367 = vunpack.c.l.b16 %v5261
        %v5368 = vunpack.c.h.b16 %v5261
        %v5369 = vunpack.c.l.b16 %v5262
        %v5370 = vunpack.c.h.b16 %v5262
        %v5371 = vunpack.c.l.b16 %v5263
        %v5372 = vunpack.c.h.b16 %v5263
        %v5373 = vpack.c.b16 %v5311, %v5309
        %v5374 = vpack.c.b16 %v5312, %v5310
        %v5375 = vpack.c.b16 %v5315, %v5313
        %v5376 = vpack.c.b16 %v5316, %v5314
        %v5377 = vpack.c.b16 %v5319, %v5317
        %v5378 = vpack.c.b16 %v5320, %v5318
        %v5379 = vpack.c.b16 %v5323, %v5321
        %v5380 = vpack.c.b16 %v5324, %v5322
        %v5381 = vpack.c.b16 %v5327, %v5325
        %v5382 = vpack.c.b16 %v5328, %v5326
        %v5383 = vpack.c.b16 %v5331, %v5329
        %v5384 = vpack.c.b16 %v5332, %v5330
        %v5385 = vpack.c.b16 %v5335, %v5333
        %v5386 = vpack.c.b16 %v5336, %v5334
        %v5387 = vpack.c.b16 %v5339, %v5337
        %v5388 = vpack.c.b16 %v5340, %v5338
        %v5389 = vpack.c.b16 %v5343, %v5341
        %v5390 = vpack.c.b16 %v5344, %v5342
        %v5391 = vpack.c.b16 %v5347, %v5345
        %v5392 = vpack.c.b16 %v5348, %v5346
        %v5393 = vpack.c.b16 %v5351, %v5349
        %v5394 = vpack.c.b16 %v5352, %v5350
        %v5395 = vpack.c.b16 %v5355, %v5353
        %v5396 = vpack.c.b16 %v5356, %v5354
        %v5397 = vpack.c.b16 %v5359, %v5357
        %v5398 = vpack.c.b16 %v5360, %v5358
        %v5399 = vpack.c.b16 %v5363, %v5361
        %v5400 = vpack.c.b16 %v5364, %v5362
        %v5401 = vpack.c.b16 %v5367, %v5365
        %v5402 = vpack.c.b16 %v5368, %v5366
        %v5403 = vpack.c.b16 %v5371, %v5369
        %v5404 = vpack.c.b16 %v5372, %v5370
        %5437 = vmatprep.subr.bf16.mxu0 %v5374
        %5438 = vmatpush1.bf16.msra.mxu0 %v5373
        %5439 = vmatprep.subr.bf16.mxu0 %v5376
        %5440 = vmatpush1.bf16.msra.mxu0 %v5375
        %5441 = vmatprep.subr.bf16.mxu0 %v5378
        %5442 = vmatpush1.bf16.msra.mxu0 %v5377
        %5443 = vmatprep.subr.bf16.mxu0 %v5380
        %5444 = vmatpush1.bf16.msra.mxu0 %v5379
        %5445 = vmatprep.subr.bf16.mxu0 %v5382
        %5446 = vmatpush1.bf16.msra.mxu0 %v5381
        %5447 = vmatprep.subr.bf16.mxu0 %v5384
        %5448 = vmatpush1.bf16.msra.mxu0 %v5383
        %5449 = vmatprep.subr.bf16.mxu0 %v5386
        %5450 = vmatpush1.bf16.msra.mxu0 %v5385
        %5451 = vmatprep.subr.bf16.mxu0 %v5388
        %5452 = vmatpush1.bf16.msra.mxu0 %v5387
        %5453 = vmatprep.subr.bf16.mxu0 %v5390
        %5454 = vmatpush1.bf16.msra.mxu0 %v5389
        %5455 = vmatprep.subr.bf16.mxu0 %v5392
        %5456 = vmatpush1.bf16.msra.mxu0 %v5391
        %5457 = vmatprep.subr.bf16.mxu0 %v5394
        %5458 = vmatpush1.bf16.msra.mxu0 %v5393
        %5459 = vmatprep.subr.bf16.mxu0 %v5396
        %5460 = vmatpush1.bf16.msra.mxu0 %v5395
        %5461 = vmatprep.subr.bf16.mxu0 %v5398
        %5462 = vmatpush1.bf16.msra.mxu0 %v5397
        %5463 = vmatprep.subr.bf16.mxu0 %v5400
        %5464 = vmatpush1.bf16.msra.mxu0 %v5399
        %5465 = vmatprep.subr.bf16.mxu0 %v5402
        %5466 = vmatpush1.bf16.msra.mxu0 %v5401
        %5467 = vmatprep.subr.bf16.mxu0 %v5404
        %5468 = vmatpush1.bf16.msra.mxu0 %v5403
        %5469 = vmatprep.mubr.bf16.mxu0 %v5274
        %5470 = vmatmul.mubr.bf16.gmra.mrb[0].mxu0 %v5273
        %v5471 = vpop.f32.mrb[0].mxu0
        %v5472 = vadd.f32 0.0, %v5471
        %v5473 = vpop.f32.mrb[0].mxu0
        %v5474 = vadd.f32 0.0, %v5473
        %v5475 = vpop.f32.mrb[0].mxu0
        %v5476 = vpop.f32.mrb[0].mxu0
        %5477 = vdwg.mxu0
        %v5478 = vadd.f32 %v5225, %v5472
        %v5479 = vadd.f32 %v5227, %v5474
        %v5480 = vld [vmem:[#allocation31] sm:$0x3]
        %v5482 = vlaneseq
        %v5483 = vshrl.u32 %v5482, 7
        %v5484 = vsub.s32 0, %v5483
        %v5485 = vrot.slane %v5480, %v5484
        %v5486 = vlaneseq
        %v5487 = vshrl.u32 %v5486, 7
        %v5488 = vsub.s32 1, %v5487
        %v5489 = vrot.slane %v5480, %v5488
        %v5492 = vadd.f32 %v5478, %v5485
        %v5493 = vadd.f32 %v5479, %v5489
        %v5494 = vadd.f32 %v5492, %v4690
        %v5495 = vadd.f32 %v5493, %v4692
        %v5496 = vmax.f32 %v5494, 0.0
        %v5497 = vmax.f32 %v5495, 0.0
        %vm5498 = vcmask 1041408
        %v5499 = vsel %vm5498, %v5496, 0.0
        %v5500 = vrot.slane %v5499, 4
        %v5501 = vadd.f32 %v5499, %v5500
        %v5502 = vrot.slane %v5501, 2
        %v5503 = vadd.f32 %v5501, %v5502
        %v5504 = vrot.slane %v5503, 1
        %v5505 = vadd.f32 %v5503, %v5504
        %v5506 = vsel %vm5498, %v5497, 0.0
        %v5507 = vrot.slane %v5506, 4
        %v5508 = vadd.f32 %v5506, %v5507
        %v5509 = vrot.slane %v5508, 2
        %v5510 = vadd.f32 %v5508, %v5509
        %v5511 = vrot.slane %v5510, 1
        %v5512 = vadd.f32 %v5510, %v5511
        %v5513 = vrcp.pop 2.0
        %v5514 = vmul.f32 %v5505, %v5513
        %v5515 = vmul.f32 %v5512, %v5513
        %v5516 = vpack.c.bf16 %v5514, %v5514
        %v5517 = vpack.c.bf16 %v5515, %v5515
        %v5518 = vld [vmem:[%s25] sm:$0xf]
        %v5519 = vld [vmem:[%s25 + $0x4] sm:$0xf]
        %v5520 = vld [vmem:[%s25 + $0x8] sm:$0xf]
        %v5521 = vld [vmem:[%s25 + $0xc] sm:$0xf]
        %v5522 = vld [vmem:[%s25 + $0x10] sm:$0xf]
        %v5523 = vld [vmem:[%s25 + $0x14] sm:$0xf]
        %v5524 = vld [vmem:[%s25 + $0x18] sm:$0xf]
        %v5525 = vld [vmem:[%s25 + $0x1c] sm:$0xf]
        %v5526 = vld [vmem:[%s25 + $0x20] sm:$0xf]
        %v5527 = vld [vmem:[%s25 + $0x24] sm:$0xf]
        %v5528 = vld [vmem:[%s25 + $0x28] sm:$0xf]
        %v5529 = vld [vmem:[%s25 + $0x2c] sm:$0xf]
        %v5530 = vld [vmem:[%s25 + $0x30] sm:$0xf]
        %v5531 = vld [vmem:[%s25 + $0x34] sm:$0xf]
        %v5532 = vld [vmem:[%s25 + $0x38] sm:$0xf]
        %v5533 = vld [vmem:[%s25 + $0x3c] sm:$0xf]
        %v5534 = vld [vmem:[%s25 + $0x40] sm:$0xf]
        %v5535 = vld [vmem:[%s25 + $0x44] sm:$0xf]
        %v5536 = vld [vmem:[%s25 + $0x48] sm:$0xf]
        %v5537 = vld [vmem:[%s25 + $0x4c] sm:$0xf]
        %v5538 = vld [vmem:[%s25 + $0x50] sm:$0xf]
        %v5539 = vld [vmem:[%s25 + $0x54] sm:$0xf]
        %v5540 = vld [vmem:[%s25 + $0x58] sm:$0xf]
        %v5541 = vld [vmem:[%s25 + $0x5c] sm:$0xf]
        %v5542 = vld [vmem:[%s25 + $0x60] sm:$0xf]
        %v5543 = vld [vmem:[%s25 + $0x64] sm:$0xf]
        %v5544 = vld [vmem:[%s25 + $0x68] sm:$0xf]
        %v5545 = vld [vmem:[%s25 + $0x6c] sm:$0xf]
        %v5546 = vld [vmem:[%s25 + $0x70] sm:$0xf]
        %v5547 = vld [vmem:[%s25 + $0x74] sm:$0xf]
        %v5548 = vld [vmem:[%s25 + $0x78] sm:$0xf]
        %v5549 = vld [vmem:[%s25 + $0x7c] sm:$0xf]
        %v5550 = vld [vmem:[#allocation32] sm:$0x1]
        %v5583 = vunpack.c.l.b16 %v5518
        %v5584 = vunpack.c.l.b16 %v5519
        %v5585 = vunpack.c.l.b16 %v5520
        %v5586 = vunpack.c.l.b16 %v5521
        %v5587 = vunpack.c.l.b16 %v5522
        %v5588 = vunpack.c.l.b16 %v5523
        %v5589 = vunpack.c.l.b16 %v5524
        %v5590 = vunpack.c.l.b16 %v5525
        %v5591 = vunpack.c.l.b16 %v5526
        %v5592 = vunpack.c.l.b16 %v5527
        %v5593 = vunpack.c.l.b16 %v5528
        %v5594 = vunpack.c.l.b16 %v5529
        %v5595 = vunpack.c.l.b16 %v5530
        %v5596 = vunpack.c.l.b16 %v5531
        %v5597 = vunpack.c.l.b16 %v5532
        %v5598 = vunpack.c.l.b16 %v5533
        %v5599 = vunpack.c.l.b16 %v5534
        %v5600 = vunpack.c.l.b16 %v5535
        %v5601 = vunpack.c.l.b16 %v5536
        %v5602 = vunpack.c.l.b16 %v5537
        %v5603 = vunpack.c.l.b16 %v5538
        %v5604 = vunpack.c.l.b16 %v5539
        %v5605 = vunpack.c.l.b16 %v5540
        %v5606 = vunpack.c.l.b16 %v5541
        %v5607 = vunpack.c.l.b16 %v5542
        %v5608 = vunpack.c.l.b16 %v5543
        %v5609 = vunpack.c.l.b16 %v5544
        %v5610 = vunpack.c.l.b16 %v5545
        %v5611 = vunpack.c.l.b16 %v5546
        %v5612 = vunpack.c.l.b16 %v5547
        %v5613 = vunpack.c.l.b16 %v5548
        %v5614 = vunpack.c.l.b16 %v5549
        %v5615 = vpack.c.b16 %v5584, %v5583
        %v5616 = vpack.c.b16 %v5586, %v5585
        %v5617 = vpack.c.b16 %v5588, %v5587
        %v5618 = vpack.c.b16 %v5590, %v5589
        %v5619 = vpack.c.b16 %v5592, %v5591
        %v5620 = vpack.c.b16 %v5594, %v5593
        %v5621 = vpack.c.b16 %v5596, %v5595
        %v5622 = vpack.c.b16 %v5598, %v5597
        %v5623 = vpack.c.b16 %v5600, %v5599
        %v5624 = vpack.c.b16 %v5602, %v5601
        %v5625 = vpack.c.b16 %v5604, %v5603
        %v5626 = vpack.c.b16 %v5606, %v5605
        %v5627 = vpack.c.b16 %v5608, %v5607
        %v5628 = vpack.c.b16 %v5610, %v5609
        %v5629 = vpack.c.b16 %v5612, %v5611
        %v5630 = vpack.c.b16 %v5614, %v5613
        %5647 = vmatprep.subr.bf16.mxu0 0
        %5648 = vmatpush1.bf16.msra.mxu0 %v5615
        %5649 = vmatprep.subr.bf16.mxu0 0
        %5650 = vmatpush1.bf16.msra.mxu0 %v5616
        %5651 = vmatprep.subr.bf16.mxu0 0
        %5652 = vmatpush1.bf16.msra.mxu0 %v5617
        %5653 = vmatprep.subr.bf16.mxu0 0
        %5654 = vmatpush1.bf16.msra.mxu0 %v5618
        %5655 = vmatprep.subr.bf16.mxu0 0
        %5656 = vmatpush1.bf16.msra.mxu0 %v5619
        %5657 = vmatprep.subr.bf16.mxu0 0
        %5658 = vmatpush1.bf16.msra.mxu0 %v5620
        %5659 = vmatprep.subr.bf16.mxu0 0
        %5660 = vmatpush1.bf16.msra.mxu0 %v5621
        %5661 = vmatprep.subr.bf16.mxu0 0
        %5662 = vmatpush1.bf16.msra.mxu0 %v5622
        %5663 = vmatprep.subr.bf16.mxu0 0
        %5664 = vmatpush1.bf16.msra.mxu0 %v5623
        %5665 = vmatprep.subr.bf16.mxu0 0
        %5666 = vmatpush1.bf16.msra.mxu0 %v5624
        %5667 = vmatprep.subr.bf16.mxu0 0
        %5668 = vmatpush1.bf16.msra.mxu0 %v5625
        %5669 = vmatprep.subr.bf16.mxu0 0
        %5670 = vmatpush1.bf16.msra.mxu0 %v5626
        %5671 = vmatprep.subr.bf16.mxu0 0
        %5672 = vmatpush1.bf16.msra.mxu0 %v5627
        %5673 = vmatprep.subr.bf16.mxu0 0
        %5674 = vmatpush1.bf16.msra.mxu0 %v5628
        %5675 = vmatprep.subr.bf16.mxu0 0
        %5676 = vmatpush1.bf16.msra.mxu0 %v5629
        %5677 = vmatprep.subr.bf16.mxu0 0
        %5678 = vmatpush1.bf16.msra.mxu0 %v5630
        %5679 = vmatprep.mubr.bf16.mxu0 %v5517
        %5680 = vmatmul.mubr.bf16.gmra.mrb[0].mxu0 %v5516
        %v5681 = vpop.f32.mrb[0].mxu0
        %v5682 = vadd.f32 %v5550, %v5681
        %v5683 = vpop.f32.mrb[0].mxu0
        %v5684 = vpop.f32.mrb[0].mxu0
        %v5685 = vpop.f32.mrb[0].mxu0
        %5686 = vdwg.mxu0
        %vm5687 = vcmask 24576
        %5688 = vst.msk [vmem:[%s1019] sm:$0x1] %vm5687, %v5682
        %s5689 = sand.u32 %s630, 1
        %s5690 = scalar_lea.sflag [#allocation10], %s5689
        %s5691 = sand.u32 %s630, 1
        %s5692 = scalar_lea.vmem [#allocation34], %s5691
        // Predicated region
        $region193: #{resnet1d_forward.1} parent=127 // pred_check
          %p5693 = pneg %p640
        $region194: #{resnet1d_forward.1} parent=127 // pred_check_branch
          %5695 = sbr.rel (%p5693) target = $region196
        $region195: #{resnet1d_forward.1} parent=127 // pred_region
          %s5697 = ssub.s32 16, 16
          %5698 = vsyncadd %s5690, %s5697
          %s5699 = smul.addr %s50, 16
          %s5700 = scalar_lea.hbm %s27, %s5699
          %s5702 = sshll.u32 %s5692, 4
          %s5703 = int_to_ptr.vmem [resolvable:$true] %s5702
          %5705 = dma.vmem_to_hbm [thread:$0]  %s5703, 16, %s5700, %s5690
        $region196: #{resnet1d_forward.1} parent=127 // pred_fallthru
          _
      $region128: #{resnet1d_forward.1} parent=5 // pred_fallthru
        _
      %p5706 = scmp.le.s32.totalorder 2, %s45
      // Predicated region
      $region197: #{resnet1d_forward.1} parent=5 // pred_check
        %p5707 = pneg %p5706
      $region198: #{resnet1d_forward.1} parent=5 // pred_check_branch
        %5709 = sbr.rel (%p5707) target = $region200
      $region199: #{resnet1d_forward.1} parent=5 // pred_region
        %s5710 = ssub.s32 %s45, 2
        // Predicated region
        $region201: #{resnet1d_forward.1} parent=199 // pred_check
          %p5711 = pneg %p646
        $region202: #{resnet1d_forward.1} parent=199 // pred_check_branch
          %5713 = sbr.rel (%p5711) target = $region204
        $region203: #{resnet1d_forward.1} parent=199 // pred_region
          %s5714 = sand.u32 %s631, 1
          %s5715 = scalar_lea.sflag [#allocation10], %s5714
          %s5716 = sand.u32 %s631, 1
          %s5717 = scalar_lea.vmem [#allocation34], %s5716
          %5718 = dma.done %s5715, 16
        $region204: #{resnet1d_forward.1} parent=199 // pred_fallthru
          _
      $region200: #{resnet1d_forward.1} parent=5 // pred_fallthru
        _
    $region6: #{resnet1d_forward.1} parent=1 // loop_footer
      %s49 = sadd.s32 1, %s45
    $region7: #{resnet1d_forward.1} parent=1 // loop_footer_branch
      %44 = sbr.rel target = $region3
    $region8: #{resnet1d_forward.1} parent=1 // loop_exit
      _
    %5719 = vsyncpa [#allocation9], 1
    %s5720 = scalar_lea.sflag [#allocation9], 1
    %5721 = vsyncpa %s5720, 1
    %5722 = vsyncpa [#allocation12], 1
    %5723 = vsyncpa [#allocation15], 1
    %5724 = vsyncpa [#allocation18], 1
    %5725 = vsyncpa [#allocation21], 1
    %5726 = vsyncpa [#allocation24], 1
    %5727 = vsyncpa [#allocation27], 1
    %5728 = vsyncpa [#allocation30], 1
    %5729 = vsyncpa [#allocation33], 1
    %5730 = vsyncpa [#allocation10], 1
    %s5731 = scalar_lea.sflag [#allocation10], 1
    %5732 = vsyncpa %s5731, 1

</llo_original>
